<compile_context>
chip_gen: v7x
topology: tpu7x:2x2x1
jax: 0.10.0
libtpu: 0.0.40
codegen_flags: <defaults>
</compile_context>

<pallas_src>
import functools

import numpy as np
import jax
import jax.numpy as jnp
from jax.experimental import pallas as pl
from jax.experimental.pallas import tpu as pltpu

NEG_SLOPE = 0.2
VMEM_LIMIT = 48 * 1024 * 1024          # leave headroom on v7x (64 MiB / TC)


def _cparams(n_axes):
    return pltpu.CompilerParams(
        dimension_semantics=tuple(["parallel"] * n_axes),
        vmem_limit_bytes=VMEM_LIMIT,
    )


# --------------------------------------------------------------------------
# Wrapper-side folding helpers (pure XLA glue, cheap one-pass rearranges)
# --------------------------------------------------------------------------
def _space_to_depth(x, w, k):
    """Exact rewrite of a stride-2 kxk conv as a stride-1 ceil(k/2) conv."""
    N, Hp, Wp, C = x.shape
    assert Hp % 2 == 0 and Wp % 2 == 0
    x = x.reshape(N, Hp // 2, 2, Wp // 2, 2, C)
    x = x.transpose(0, 1, 3, 2, 4, 5).reshape(N, Hp // 2, Wp // 2, 4 * C)
    kk = (k + 1) // 2
    O = w.shape[-1]
    w = jnp.pad(w, ((0, 2 * kk - k), (0, 2 * kk - k), (0, 0), (0, 0)))
    w = (w.reshape(kk, 2, kk, 2, C, O)
          .transpose(0, 2, 1, 3, 4, 5)
          .reshape(kk, kk, 4 * C, O))
    return x, w


def _fold_hw(x, k):
    """Full im2col: (N,Hp,Wp,C) -> (N,Ho,Wo,k*k*C) in bf16."""
    N, Hp, Wp, C = x.shape
    Ho, Wo = Hp - k + 1, Wp - k + 1
    cols = [x[:, i:i + Ho, j:j + Wo, :] for i in range(k) for j in range(k)]
    return jnp.concatenate(cols, axis=-1).astype(jnp.bfloat16)


def _fold_w(x, k):
    """Fold width taps only: (N,Hp,Wp,C) -> (N,Hp,Wo,k*C) in bf16."""
    N, Hp, Wp, C = x.shape
    Wo = Wp - k + 1
    cols = [x[:, :, j:j + Wo, :] for j in range(k)]
    return jnp.concatenate(cols, axis=-1).astype(jnp.bfloat16)


# --------------------------------------------------------------------------
# Pallas kernel: conv as (row-tap loop of) large-K matmuls on folded input
# --------------------------------------------------------------------------
def _conv_rows(xf, wf, b, *, kh, act):
    """xf: (N, Hf, Wo, K) bf16 folded input (Hf = Ho + kh - 1)
       wf: (kh, K, Cout) bf16 ; b: (1, Cout) f32."""
    N, Hf, Wo, K = xf.shape
    Cout = wf.shape[-1]
    Ho = Hf - kh + 1

    TCO = 128 if Cout % 128 == 0 else Cout
    # Keep the f32 accumulator small (scaled down when more row taps remain).
    budget = max(128 * 1024, (1024 * 1024) // kh)
    TH = Ho
    while TH % 2 == 0 and TH * Wo * max(TCO, 128) * 4 > budget:
        TH //= 2
    assert Ho % TH == 0 and Cout % TCO == 0
    n_t, n_co = Ho // TH, Cout // TCO

    def kernel(x_ref, w_ref, b_ref, o_ref):
        t = pl.program_id(1)
        row0 = pl.multiple_of(t * TH, TH)
        acc = None
        for i in range(kh):
            patch = x_ref[0, pl.ds(row0 + i, TH), :, :]          # (TH, Wo, K)
            d = jnp.dot(patch.reshape(TH * Wo, K).astype(jnp.bfloat16),
                        w_ref[i], preferred_element_type=jnp.float32)
            acc = d if acc is None else acc + d
        out = acc + b_ref[...]
        if act == "lrelu":
            out = jnp.where(out >= 0, out, NEG_SLOPE * out)
        o_ref[0] = out.reshape(TH, Wo, TCO).astype(o_ref.dtype)

    return pl.pallas_call(
        kernel,
        out_shape=jax.ShapeDtypeStruct((N, Ho, Wo, Cout), jnp.float32),
        grid=(N, n_t, n_co),
        in_specs=[
            pl.BlockSpec((1, Hf, Wo, K), lambda n, t, c: (n, 0, 0, 0)),
            pl.BlockSpec((kh, K, TCO), lambda n, t, c: (0, 0, c)),
            pl.BlockSpec((1, TCO), lambda n, t, c: (0, c)),
        ],
        out_specs=pl.BlockSpec((1, TH, Wo, TCO), lambda n, t, c: (n, t, 0, c)),
        compiler_params=_cparams(3),
    )(xf, wf, b)


@functools.partial(jax.jit,
                   static_argnames=("k", "stride", "pad_mode", "act", "cout_pad"))
def conv2d(x, w, b, *, k, stride=1, pad_mode="reflect", act="linear", cout_pad=0):
    """NHWC conv matching ConvNorm / conv3x3 / conv7x7 semantics."""
    pad = k // 2
    if pad:
        mode = "reflect" if pad_mode == "reflect" else "constant"
        x = jnp.pad(x, ((0, 0), (pad, pad), (pad, pad), (0, 0)), mode=mode)
    if stride == 2:
        x, w = _space_to_depth(x, w, k)
        k = (k + 1) // 2
    elif stride != 1:
        raise ValueError("only stride 1 / 2 supported")

    Cin = x.shape[-1]
    Cout = w.shape[-1]
    if cout_pad and Cout < cout_pad:                 # lane-dense output stores
        w = jnp.pad(w, ((0, 0), (0, 0), (0, 0), (0, cout_pad - Cout)))
        b = jnp.pad(b, ((0, 0), (0, cout_pad - Cout)))

    if k * k * Cin <= 256:                           # fold all taps (one dot)
        xf = _fold_hw(x, k)
        wf = w.reshape(1, k * k * Cin, -1)
        kh = 1
    else:                                            # fold width taps only
        xf = _fold_w(x, k)
        wf = w.reshape(k, k * Cin, -1)
        kh = k
    return _conv_rows(xf, wf, b, kh=kh, act=act)


# --------------------------------------------------------------------------
# Pallas kernel: fused RCAB (conv-lrelu-conv + CALayer + residual add)
# --------------------------------------------------------------------------
@jax.jit
def rcab(x, w1, b1, w2, b2, cw1, cb1, cw2, cb2):
    N, H, W, C = x.shape

    def kernel(x_ref, w1_ref, b1_ref, w2_ref, b2_ref,
               cw1_ref, cb1_ref, cw2_ref, cb2_ref, o_ref):
        xv = x_ref[0]                                        # (H, W, C) f32

        def conv3x3(v_bf, w_ref, b_ref):                     # reflect pad 1
            ph = jnp.concatenate([v_bf[1:2], v_bf, v_bf[H - 2:H - 1]], axis=0)
            pw = jnp.concatenate([ph[:, 1:2], ph, ph[:, W - 2:W - 1]], axis=1)
            acc = None
            for i in range(3):
                for j in range(3):
                    patch = pw[i:i + H, j:j + W, :].reshape(H * W, C)
                    d = jnp.dot(patch, w_ref[i, j],
                                preferred_element_type=jnp.float32)
                    acc = d if acc is None else acc + d
            return acc + b_ref[...]                          # (H*W, C) f32

        h = conv3x3(xv.astype(jnp.bfloat16), w1_ref, b1_ref)
        h = jnp.where(h >= 0, h, NEG_SLOPE * h)
        h = conv3x3(h.astype(jnp.bfloat16).reshape(H, W, C), w2_ref, b2_ref)

        # CALayer: GAP -> 1x1 -> ReLU -> 1x1 -> sigmoid -> channel rescale
        pooled = jnp.sum(h, axis=0, keepdims=True) / float(H * W)   # (1, C)
        t = jnp.dot(pooled.astype(jnp.bfloat16), cw1_ref[...],
                    preferred_element_type=jnp.float32) + cb1_ref[...]
        t = jnp.maximum(t, 0.0)
        s = jnp.dot(t.astype(jnp.bfloat16), cw2_ref[...],
                    preferred_element_type=jnp.float32) + cb2_ref[...]
        scale = 1.0 / (1.0 + jnp.exp(-s))                           # (1, C)

        o_ref[0] = (xv + (h * scale).reshape(H, W, C)).astype(o_ref.dtype)

    full = lambda n: (n, 0, 0, 0)
    z4 = lambda n: (0, 0, 0, 0)
    z2 = lambda n: (0, 0)
    return pl.pallas_call(
        kernel,
        out_shape=jax.ShapeDtypeStruct(x.shape, x.dtype),
        grid=(N,),
        in_specs=[
            pl.BlockSpec((1, H, W, C), full),
            pl.BlockSpec(w1.shape, z4), pl.BlockSpec(b1.shape, z2),
            pl.BlockSpec(w2.shape, z4), pl.BlockSpec(b2.shape, z2),
            pl.BlockSpec(cw1.shape, z2), pl.BlockSpec(cb1.shape, z2),
            pl.BlockSpec(cw2.shape, z2), pl.BlockSpec(cb2.shape, z2),
        ],
        out_specs=pl.BlockSpec((1, H, W, C), full),
        compiler_params=_cparams(1),
    )(x, w1, b1, w2, b2, cw1, cb1, cw2, cb2)


# --------------------------------------------------------------------------
# Pallas kernel: sub_mean (per-sample, per-channel spatial mean subtraction)
# --------------------------------------------------------------------------
@jax.jit
def _sub_mean(x):
    N, H, W, C = x.shape

    def kernel(x_ref, y_ref, m_ref):
        xv = x_ref[0]                                   # (H, W, C)
        s = jnp.sum(xv, axis=0)                         # (W, C)
        m = jnp.sum(s, axis=0, keepdims=True) / float(H * W)   # (1, C)
        y_ref[0] = (xv - m.reshape(1, 1, C)).astype(y_ref.dtype)
        m_ref[0] = m.reshape(1, 1, C).astype(m_ref.dtype)

    return pl.pallas_call(
        kernel,
        out_shape=(
            jax.ShapeDtypeStruct((N, H, W, C), x.dtype),
            jax.ShapeDtypeStruct((N, 1, 1, C), x.dtype),
        ),
        grid=(N,),
        in_specs=[pl.BlockSpec((1, H, W, C), lambda n: (n, 0, 0, 0))],
        out_specs=(
            pl.BlockSpec((1, H, W, C), lambda n: (n, 0, 0, 0)),
            pl.BlockSpec((1, 1, 1, C), lambda n: (n, 0, 0, 0)),
        ),
        compiler_params=_cparams(1),
    )(x)


# --------------------------------------------------------------------------
# Glue: pixel shuffle (matches torch pixel_shuffle channel ordering)
# --------------------------------------------------------------------------
def pixel_shuffle(x, r):
    N, H, W, C = x.shape
    co = C // (r * r)
    x = x.reshape(N, H, W, co, r, r)
    x = jnp.transpose(x, (0, 1, 4, 2, 5, 3))            # N, H, i, W, j, co
    return x.reshape(N, H * r, W * r, co)


# --------------------------------------------------------------------------
# Model definition (parameters + forward)
# --------------------------------------------------------------------------
def init_params():
    rng = np.random.default_rng(0)

    def conv_p(cin, cout, k):
        fan = cin * k * k
        w = (rng.standard_normal((k, k, cin, cout)) / np.sqrt(fan)).astype(np.float32)
        b = (rng.standard_normal((1, cout)) * 0.01).astype(np.float32)
        return {"w": jnp.asarray(w, dtype=jnp.bfloat16), "b": jnp.asarray(b)}

    def ca_p(c, red=16):
        cr = c // red
        return {
            "w1": jnp.asarray((rng.standard_normal((c, cr)) / np.sqrt(c)
                               ).astype(np.float32), dtype=jnp.bfloat16),
            "b1": jnp.asarray((rng.standard_normal((1, cr)) * 0.01).astype(np.float32)),
            "w2": jnp.asarray((rng.standard_normal((cr, c)) / np.sqrt(cr)
                               ).astype(np.float32), dtype=jnp.bfloat16),
            "b2": jnp.asarray((rng.standard_normal((1, c)) * 0.01).astype(np.float32)),
        }

    nf = 32  # start_filts
    enc = {
        "c1": conv_p(3, nf, 7),
        "c2": conv_p(nf, nf * 2, 5),
        "c3": conv_p(nf * 2, nf * 4, 5),
        "c4": conv_p(nf * 4, nf * 6, 5),
    }

    C = nf * 6  # 192
    groups = []
    for _ in range(5):          # n_resgroups = 5
        blocks = [
            {"conv1": conv_p(C, C, 3), "conv2": conv_p(C, C, 3), "ca": ca_p(C, 16)}
            for _ in range(12)  # n_resblocks = 12
        ]
        groups.append({"blocks": blocks, "conv": conv_p(C, C, 3)})
    interp = {"head": conv_p(2 * C, C, 3), "groups": groups, "tail": conv_p(C, C, 3)}

    d = [C, C * 2 // 3, C // 3, C // 6]  # [192, 128, 64, 32]
    dec = {
        "up1": conv_p(d[0], 4 * d[1], 3),
        "rb1": {"conv1": conv_p(d[1], d[1], 3), "conv2": conv_p(d[1], d[1], 3)},
        "up2": conv_p(d[1], 4 * d[2], 3),
        "rb2": {"conv1": conv_p(d[2], d[2], 3), "conv2": conv_p(d[2], d[2], 3)},
        "up3": conv_p(d[2], 4 * d[3], 3),
        "rb3": {"conv1": conv_p(d[3], d[3], 3), "conv2": conv_p(d[3], d[3], 3)},
        "tail": conv_p(d[3], 3, 7),
    }
    return {"enc": enc, "interp": interp, "dec": dec}


def _conv(x, p, **kw):
    return conv2d(x, p["w"], p["b"], **kw)


def encoder_body(p, x):
    x = _conv(x, p["c1"], k=7, stride=1, pad_mode="reflect", act="lrelu")
    x = _conv(x, p["c2"], k=5, stride=2, pad_mode="reflect", act="lrelu")
    x = _conv(x, p["c3"], k=5, stride=2, pad_mode="reflect", act="lrelu")
    x = _conv(x, p["c4"], k=5, stride=2, pad_mode="reflect", act="linear")
    return x


def residual_group(p, x):
    r = x
    for blk in p["blocks"]:
        r = rcab(r,
                 blk["conv1"]["w"], blk["conv1"]["b"],
                 blk["conv2"]["w"], blk["conv2"]["b"],
                 blk["ca"]["w1"], blk["ca"]["b1"],
                 blk["ca"]["w2"], blk["ca"]["b2"])
    r = _conv(r, p["conv"], k=3, pad_mode="reflect", act="linear")
    return x + r


def interpolation(p, f1, f2):
    x = jnp.concatenate([f1, f2], axis=-1)
    x = _conv(x, p["head"], k=3, pad_mode="zero", act="linear")
    r = x
    for g in p["groups"]:
        r = residual_group(g, r)
    r = r + x
    return _conv(r, p["tail"], k=3, pad_mode="zero", act="linear")


def resblock(p, x):
    r = _conv(x, p["conv1"], k=3, pad_mode="reflect", act="lrelu")
    r = _conv(r, p["conv2"], k=3, pad_mode="reflect", act="linear")
    return x + r


def upconv(p, x):  # UpConvNorm(mode='shuffle')
    return pixel_shuffle(_conv(x, p, k=3, pad_mode="reflect", act="linear"), 2)


def decoder(p, x):
    x = upconv(p["up1"], x)
    x = resblock(p["rb1"], x)
    x = upconv(p["up2"], x)
    x = resblock(p["rb2"], x)
    x = upconv(p["up3"], x)
    x = resblock(p["rb3"], x)
    # Cout=3 tail: keep the store lane-dense (pad to 128 channels), crop here.
    y = _conv(x, p["tail"], k=7, pad_mode="zero", act="linear", cout_pad=128)
    return y[..., :3]


def cain_encdec_forward(params, x1_nchw, x2_nchw):
    """Eval-mode forward of CAIN_EncDec (includes InOutPaddings pad/crop)."""
    x1 = jnp.transpose(x1_nchw, (0, 2, 3, 1)).astype(jnp.float32)
    x2 = jnp.transpose(x2_nchw, (0, 2, 3, 1)).astype(jnp.float32)

    x1, m1 = _sub_mean(x1)
    x2, m2 = _sub_mean(x2)

    # InOutPaddings: reflect-pad H/W up to the next multiple of 128, crop back.
    N, H, W, _ = x1.shape
    ph, pw = (-H) % 128, (-W) % 128
    pt, pb = ph // 2, ph - ph // 2
    pleft, pright = pw // 2, pw - pw // 2
    assert max(pt, pb) < H and max(pleft, pright) < W, \
        "reflect padding requires pad < spatial dim (same as PyTorch)"
    if ph or pw:
        padfn = lambda t: jnp.pad(
            t, ((0, 0), (pt, pb), (pleft, pright), (0, 0)), mode="reflect")
        x1, x2 = padfn(x1), padfn(x2)

    feats1 = encoder_body(params["enc"], x1)
    feats2 = encoder_body(params["enc"], x2)
    feats = interpolation(params["interp"], feats1, feats2)

    out = decoder(params["dec"], feats)
    out = out[:, pt:pt + H, pleft:pleft + W, :]

    mi = (m1 + m2) / 2.0
    out = out + mi

    return (jnp.transpose(out, (0, 3, 1, 2)),
            jnp.transpose(feats, (0, 3, 1, 2)))


if __name__ == "__main__":
    params = init_params()

    key = jax.random.PRNGKey(0)
    k1, k2 = jax.random.split(key)
    # small inputs; eval-mode path reflect-pads them up to 128x128 internally
    x1 = jax.random.normal(k1, (2, 3, 64, 64), dtype=jnp.float32)
    x2 = jax.random.normal(k2, (2, 3, 64, 64), dtype=jnp.float32)

    out, feats = cain_encdec_forward(params, x1, x2)
    out = jax.block_until_ready(out)
    feats = jax.block_until_ready(feats)

    assert out.shape == (2, 3, 64, 64), out.shape
    assert feats.shape == (2, 192, 16, 16), feats.shape
    assert np.all(np.isfinite(np.asarray(out)))
    assert np.all(np.isfinite(np.asarray(feats)))
    print("KERNEL_OK")
</pallas_src>

<mosaic_0001>
module attributes {stable_mosaic.version = 11 : i64} {
  func.func @kernel(%arg0: i32, %arg1: memref<1x64x64x3xf32, #tpu.memory_space<vmem>>, %arg2: memref<1x64x64x3xf32, #tpu.memory_space<vmem>>, %arg3: memref<1x1x1x3xf32, #tpu.memory_space<vmem>>) attributes {dimension_semantics = [#tpu.dimension_semantics<parallel>], iteration_bounds = array<i64: 2>, scalar_prefetch = 0 : i64, scratch_operands = 0 : i64, tpu.core_type = #tpu.core_type<tc>, window_params = [{transform_indices = @transform_0, window_bounds = array<i64: 1, 64, 64, 3>}, {transform_indices = @transform_1, window_bounds = array<i64: 1, 64, 64, 3>}, {transform_indices = @transform_2, window_bounds = array<i64: 1, 1, 1, 3>}]} {
    %c0 = arith.constant 0 : index
    %c0_0 = arith.constant 0 : index
    %c0_1 = arith.constant 0 : index
    %c0_2 = arith.constant 0 : index
    %0 = vector.load %arg1[%c0, %c0_0, %c0_1, %c0_2] : memref<1x64x64x3xf32, #tpu.memory_space<vmem>>, vector<1x64x64x3xf32>
    %1 = vector.shape_cast %0 : vector<1x64x64x3xf32> to vector<64x64x3xf32>
    %cst = arith.constant dense<0.000000e+00> : vector<64x3xf32>
    %2 = vector.multi_reduction <add>, %1, %cst [0] : vector<64x64x3xf32> to vector<64x3xf32>
    %cst_3 = arith.constant dense<0.000000e+00> : vector<3xf32>
    %3 = vector.multi_reduction <add>, %2, %cst_3 [0] : vector<64x3xf32> to vector<3xf32>
    %4 = vector.shape_cast %3 : vector<3xf32> to vector<1x3xf32>
    %cst_4 = arith.constant 4.096000e+03 : f32
    %5 = vector.broadcast %cst_4 : f32 to vector<1x3xf32>
    %6 = arith.divf %4, %5 : vector<1x3xf32>
    %7 = vector.shape_cast %6 : vector<1x3xf32> to vector<1x1x3xf32>
    %8 = vector.broadcast %7 : vector<1x1x3xf32> to vector<64x64x3xf32>
    %9 = arith.subf %1, %8 : vector<64x64x3xf32>
    %c0_5 = arith.constant 0 : index
    %c0_6 = arith.constant 0 : index
    %c0_7 = arith.constant 0 : index
    %c0_8 = arith.constant 0 : index
    %10 = vector.load %arg2[%c0_5, %c0_6, %c0_7, %c0_8] : memref<1x64x64x3xf32, #tpu.memory_space<vmem>>, vector<1x64x64x3xf32>
    %11 = vector.shape_cast %10 : vector<1x64x64x3xf32> to vector<64x64x3xf32>
    %12 = vector.shape_cast %9 : vector<64x64x3xf32> to vector<1x64x64x3xf32>
    tpu.vector_store %arg2[%c0_5, %c0_6, %c0_7, %c0_8], %12 {strides = array<i32>} : memref<1x64x64x3xf32, #tpu.memory_space<vmem>>, vector<1x64x64x3xf32>,
    %13 = vector.shape_cast %6 : vector<1x3xf32> to vector<1x1x3xf32>
    %c0_9 = arith.constant 0 : index
    %c0_10 = arith.constant 0 : index
    %c0_11 = arith.constant 0 : index
    %c0_12 = arith.constant 0 : index
    %14 = vector.load %arg3[%c0_9, %c0_10, %c0_11, %c0_12] : memref<1x1x1x3xf32, #tpu.memory_space<vmem>>, vector<1x1x1x3xf32>
    %15 = vector.shape_cast %14 : vector<1x1x1x3xf32> to vector<1x1x3xf32>
    %16 = vector.shape_cast %13 : vector<1x1x3xf32> to vector<1x1x1x3xf32>
    tpu.vector_store %arg3[%c0_9, %c0_10, %c0_11, %c0_12], %16 {strides = array<i32>} : memref<1x1x1x3xf32, #tpu.memory_space<vmem>>, vector<1x1x1x3xf32>,
    return
  }
  func.func @transform_0(%arg0: i32) -> (i32, i32, i32, i32) {
    %c0_i32 = arith.constant 0 : i32
    %c0_i32_0 = arith.constant 0 : i32
    %c0_i32_1 = arith.constant 0 : i32
    %c0_i32_2 = arith.constant 0 : i32
    return %arg0, %c0_i32, %c0_i32_0, %c0_i32_1 : i32, i32, i32, i32
  }
  func.func @transform_1(%arg0: i32) -> (i32, i32, i32, i32) {
    %c0_i32 = arith.constant 0 : i32
    %c0_i32_0 = arith.constant 0 : i32
    %c0_i32_1 = arith.constant 0 : i32
    %c0_i32_2 = arith.constant 0 : i32
    return %arg0, %c0_i32, %c0_i32_0, %c0_i32_1 : i32, i32, i32, i32
  }
  func.func @transform_2(%arg0: i32) -> (i32, i32, i32, i32) {
    %c0_i32 = arith.constant 0 : i32
    %c0_i32_0 = arith.constant 0 : i32
    %c0_i32_1 = arith.constant 0 : i32
    %c0_i32_2 = arith.constant 0 : i32
    return %arg0, %c0_i32, %c0_i32_0, %c0_i32_1 : i32, i32, i32, i32
  }
}

</mosaic_0001>

<llo_original>
// kernel: _sub_mean.1
$region0: #{_sub_mean.1}
  #allocation0 [shape = 'u32[]', space=smem, size = 0x4, offset = 0x4, fixed_abs, tag = 'smem constant byte address 0x4 - core index']
  #allocation1 [shape = 'u32[144,128]{1,0:T(1,128)}', space=vmem, size = 0x12000, scoped, tag = 'internal scratch']
  %s0 = inlined_call_operand.vmem [shape: f32[2,64,64,3], index: 0, kind: input, shape index: {}]
  %s1 = inlined_call_operand.vmem [shape: f32[2,64,64,3], index: 1, kind: output, shape index: {0}]
  %s2 = inlined_call_operand.hbm [shape: f32[2,1,1,3], index: 2, kind: output, shape index: {1}]
  %3 = xla_tuple %s1, %s2
  %s4 = sld [smem:[#allocation0]]
  $region45: #{_sub_mean.1} parent=0
    _
  %s6 = ssub.s32 1, %s4
  %s7 = scalar_select 0, %s6, %s4
  $region1: #{_sub_mean.1} parent=0
    #allocation2 [shape = 'u8[1024]{0}', space=vmem, size = 0x400, scoped, tag = 'output window, operand 1']
    #allocation3 [shape = 's32[2]{0}', space=sflag, size = 0x8, scoped, tag = 'scoped memory for _sub_mean.1']
    %8 = vsyncpa [#allocation3], 0
    %s9 = scalar_lea.sflag [#allocation3], 1
    %10 = vsyncpa %s9, 0
    loop: start=0, step=1, limit=4
    $region2: #{_sub_mean.1} parent=1 // loop_pre_header
      _
    $region3: #{_sub_mean.1} parent=1 // loop_header
      %s12 = sphi 0, %s16
      %p13 = scmp.ge.s32.totalorder %s12, 4
      %s22 = sphi 0, %s24
      %s25 = sphi 0, %s22
      %s26 = sphi 0, %s25
      %s42 = sphi 0, %s26
      %s48 = sphi 0, %s50
      %s51 = sphi 0, %s48
      %s52 = sphi 0, %s51
      %s68 = sphi 0, %s52
      %s74 = sphi 0, %s76
      %s77 = sphi 0, %s74
      %s78 = sphi 0, %s77
      %s94 = sphi 0, %s78
    $region4: #{_sub_mean.1} parent=1 // loop_header_branch
      %15 = sbr.rel (%p13) target = $region8
    $region5: #{_sub_mean.1} parent=1 // loop_body
      %s17 = ssub.s32 %s12, 1
      %s18 = ssub.s32 %s12, 2
      %s19 = sadd.s32 %s12, 1
      %s20 = ssub.s32 %s12, %s19
      %p21 = scmp.eq.s32.totalorder %s20, 0
      %s23 = sadd.s32 %s22, 1
      %s24 = scalar_select %p21, %s22, %s23
      %p27 = pneg %p21
      %p28 = scmp.eq.s32.totalorder %s12, 1
      %p29 = por %p27, %p28
      %p30 = scmp.ne.s32.totalorder %s22, %s25
      %p31 = scmp.eq.s32.totalorder %s12, 0
      %p32 = por %p30, %p31
      %p33 = scmp.ne.s32.totalorder %s22, %s25
      %p34 = scmp.eq.s32.totalorder %s17, 1
      %p35 = por %p33, %p34
      %p36 = scmp.ne.s32.totalorder %s25, %s26
      %p37 = scmp.eq.s32.totalorder %s17, 0
      %p38 = por %p36, %p37
      %p39 = scmp.ne.s32.totalorder %s25, %s26
      %p40 = scmp.eq.s32.totalorder %s18, 1
      %p41 = por %p39, %p40
      %p43 = scmp.ne.s32.totalorder %s26, %s42
      %p44 = scmp.eq.s32.totalorder %s18, 0
      %p45 = por %p43, %p44
      %s46 = ssub.s32 %s12, %s19
      %p47 = scmp.eq.s32.totalorder %s46, 0
      %s49 = sadd.s32 %s48, 1
      %s50 = scalar_select %p47, %s48, %s49
      %p53 = pneg %p47
      %p54 = scmp.eq.s32.totalorder %s12, 1
      %p55 = por %p53, %p54
      %p56 = scmp.ne.s32.totalorder %s48, %s51
      %p57 = scmp.eq.s32.totalorder %s12, 0
      %p58 = por %p56, %p57
      %p59 = scmp.ne.s32.totalorder %s48, %s51
      %p60 = scmp.eq.s32.totalorder %s17, 1
      %p61 = por %p59, %p60
      %p62 = scmp.ne.s32.totalorder %s51, %s52
      %p63 = scmp.eq.s32.totalorder %s17, 0
      %p64 = por %p62, %p63
      %p65 = scmp.ne.s32.totalorder %s51, %s52
      %p66 = scmp.eq.s32.totalorder %s18, 1
      %p67 = por %p65, %p66
      %p69 = scmp.ne.s32.totalorder %s52, %s68
      %p70 = scmp.eq.s32.totalorder %s18, 0
      %p71 = por %p69, %p70
      %s72 = ssub.s32 %s12, %s19
      %p73 = scmp.eq.s32.totalorder %s72, 0
      %s75 = sadd.s32 %s74, 1
      %s76 = scalar_select %p73, %s74, %s75
      %p79 = pneg %p73
      %p80 = scmp.eq.s32.totalorder %s12, 1
      %p81 = por %p79, %p80
      %p82 = scmp.ne.s32.totalorder %s74, %s77
      %p83 = scmp.eq.s32.totalorder %s12, 0
      %p84 = por %p82, %p83
      %p85 = scmp.ne.s32.totalorder %s74, %s77
      %p86 = scmp.eq.s32.totalorder %s17, 1
      %p87 = por %p85, %p86
      %p88 = scmp.ne.s32.totalorder %s77, %s78
      %p89 = scmp.eq.s32.totalorder %s17, 0
      %p90 = por %p88, %p89
      %p91 = scmp.ne.s32.totalorder %s77, %s78
      %p92 = scmp.eq.s32.totalorder %s18, 1
      %p93 = por %p91, %p92
      %p95 = scmp.ne.s32.totalorder %s78, %s94
      %p96 = scmp.eq.s32.totalorder %s18, 0
      %p97 = por %p95, %p96
      %p98 = scmp.le.s32.totalorder 1, %s12
      %p99 = scmp.lt.s32.totalorder %s12, 3
      %p100 = pnand %p98, %p99
      %p101 = pneg %p100
      // Predicated region
      $region9: #{_sub_mean.1} parent=5 // pred_check
        _
      $region10: #{_sub_mean.1} parent=5 // pred_check_branch
        %103 = sbr.rel (%p100) target = $region12
      $region11: #{_sub_mean.1} parent=5 // pred_region
        %s104 = ssub.s32 %s12, 1
      $region12: #{_sub_mean.1} parent=5 // pred_fallthru
        _
      %p105 = scmp.lt.s32.totalorder %s12, 2
      // Predicated region
      $region13: #{_sub_mean.1} parent=5 // pred_check
        %p106 = pneg %p105
      $region14: #{_sub_mean.1} parent=5 // pred_check_branch
        %108 = sbr.rel (%p106) target = $region16
      $region15: #{_sub_mean.1} parent=5 // pred_region
        // Predicated region
        $region17: #{_sub_mean.1} parent=15 // pred_check
          %p109 = pneg %p32
        $region18: #{_sub_mean.1} parent=15 // pred_check_branch
          %111 = sbr.rel (%p109) target = $region20
        $region19: #{_sub_mean.1} parent=15 // pred_region
          %p112 = scmp.lt.s32.totalorder %s12, 1
          %s113 = scalar_select %p112, %s12, 1
          %s114 = smul.addr %s113, 512
          %s115 = smul.addr %s114, 8
          %s116 = scalar_lea.vmem %s0, %s115
        $region20: #{_sub_mean.1} parent=15 // pred_fallthru
          _
      $region16: #{_sub_mean.1} parent=5 // pred_fallthru
        _
      %p117 = scmp.le.s32.totalorder 1, %s12
      %p118 = scmp.lt.s32.totalorder %s12, 3
      %p119 = pnand %p117, %p118
      %p120 = pneg %p119
      // Predicated region
      $region21: #{_sub_mean.1} parent=5 // pred_check
        _
      $region22: #{_sub_mean.1} parent=5 // pred_check_branch
        %122 = sbr.rel (%p119) target = $region24
      $region23: #{_sub_mean.1} parent=5 // pred_region
        %s123 = ssub.s32 %s12, 1
        %p124 = scmp.lt.s32.totalorder %s17, 1
        %s125 = scalar_select %p124, %s17, 1
        %s126 = smul.addr %s125, 512
        %s127 = smul.addr %s126, 8
        %s128 = scalar_lea.vmem %s0, %s127
        %p129 = pneg %p38
        %p130 = pneg %p35
        %p131 = pneg %p64
        %p132 = pneg %p61
        %p133 = scmp.lt.s32.totalorder %s17, 1
        %s134 = scalar_select %p133, %s17, 1
        %s135 = smul.addr %s134, 512
        %s136 = smul.addr %s135, 8
        %s137 = scalar_lea.vmem %s1, %s136
        %p138 = pneg %p90
        %p139 = pneg %p87
        %s140 = sand.u32 %s77, 1
        %s141 = scalar_lea.sflag [#allocation3], %s140
        %s142 = sand.u32 %s77, 1
        %s143 = scalar_lea.vmem [#allocation2], %s142
        %p144 = scmp.lt.s32.totalorder %s17, 1
        %s145 = scalar_select %p144, %s17, 1
        %s146 = smul.addr %s145, 512
        %s147 = smul.addr %s146, 8
        %s148 = scalar_lea.vmem %s0, %s147
        %p149 = scmp.lt.s32.totalorder %s17, 1
        %s150 = scalar_select %p149, %s17, 1
        %s151 = smul.addr %s150, 512
        %s152 = smul.addr %s151, 8
        %s153 = scalar_lea.vmem %s1, %s152
        %v154 = vld [vmem:[%s148] sm:$0xff]
        %v155 = vld [vmem:[%s148 + $0x8] sm:$0xff]
        %v156 = vld [vmem:[%s148 + $0x10] sm:$0xff]
        %v157 = vld [vmem:[%s148 + $0x18] sm:$0xff]
        %v158 = vld [vmem:[%s148 + $0x20] sm:$0xff]
        %v159 = vld [vmem:[%s148 + $0x28] sm:$0xff]
        %v160 = vld [vmem:[%s148 + $0x30] sm:$0xff]
        %v161 = vld [vmem:[%s148 + $0x38] sm:$0xff]
        %v162 = vld [vmem:[%s148 + $0x40] sm:$0xff]
        %v163 = vld [vmem:[%s148 + $0x48] sm:$0xff]
        %v164 = vld [vmem:[%s148 + $0x50] sm:$0xff]
        %v165 = vld [vmem:[%s148 + $0x58] sm:$0xff]
        %v166 = vld [vmem:[%s148 + $0x60] sm:$0xff]
        %v167 = vld [vmem:[%s148 + $0x68] sm:$0xff]
        %v168 = vld [vmem:[%s148 + $0x70] sm:$0xff]
        %v169 = vld [vmem:[%s148 + $0x78] sm:$0xff]
        %v170 = vld [vmem:[%s148 + $0x80] sm:$0xff]
        %v171 = vld [vmem:[%s148 + $0x88] sm:$0xff]
        %v172 = vld [vmem:[%s148 + $0x90] sm:$0xff]
        %v173 = vld [vmem:[%s148 + $0x98] sm:$0xff]
        %v174 = vld [vmem:[%s148 + $0xa0] sm:$0xff]
        %v175 = vld [vmem:[%s148 + $0xa8] sm:$0xff]
        %v176 = vld [vmem:[%s148 + $0xb0] sm:$0xff]
        %v177 = vld [vmem:[%s148 + $0xb8] sm:$0xff]
        %v178 = vld [vmem:[%s148 + $0xc0] sm:$0xff]
        %v179 = vld [vmem:[%s148 + $0xc8] sm:$0xff]
        %v180 = vld [vmem:[%s148 + $0xd0] sm:$0xff]
        %v181 = vld [vmem:[%s148 + $0xd8] sm:$0xff]
        %v182 = vld [vmem:[%s148 + $0xe0] sm:$0xff]
        %v183 = vld [vmem:[%s148 + $0xe8] sm:$0xff]
        %v184 = vld [vmem:[%s148 + $0xf0] sm:$0xff]
        %v185 = vld [vmem:[%s148 + $0xf8] sm:$0xff]
        %v186 = vld [vmem:[%s148 + $0x100] sm:$0xff]
        %v187 = vld [vmem:[%s148 + $0x108] sm:$0xff]
        %v188 = vld [vmem:[%s148 + $0x110] sm:$0xff]
        %v189 = vld [vmem:[%s148 + $0x118] sm:$0xff]
        %v190 = vld [vmem:[%s148 + $0x120] sm:$0xff]
        %v191 = vld [vmem:[%s148 + $0x128] sm:$0xff]
        %v192 = vld [vmem:[%s148 + $0x130] sm:$0xff]
        %v193 = vld [vmem:[%s148 + $0x138] sm:$0xff]
        %v194 = vld [vmem:[%s148 + $0x140] sm:$0xff]
        %v195 = vld [vmem:[%s148 + $0x148] sm:$0xff]
        %v196 = vld [vmem:[%s148 + $0x150] sm:$0xff]
        %v197 = vld [vmem:[%s148 + $0x158] sm:$0xff]
        %v198 = vld [vmem:[%s148 + $0x160] sm:$0xff]
        %v199 = vld [vmem:[%s148 + $0x168] sm:$0xff]
        %v200 = vld [vmem:[%s148 + $0x170] sm:$0xff]
        %v201 = vld [vmem:[%s148 + $0x178] sm:$0xff]
        %v202 = vld [vmem:[%s148 + $0x180] sm:$0xff]
        %v203 = vld [vmem:[%s148 + $0x188] sm:$0xff]
        %v204 = vld [vmem:[%s148 + $0x190] sm:$0xff]
        %v205 = vld [vmem:[%s148 + $0x198] sm:$0xff]
        %v206 = vld [vmem:[%s148 + $0x1a0] sm:$0xff]
        %v207 = vld [vmem:[%s148 + $0x1a8] sm:$0xff]
        %v208 = vld [vmem:[%s148 + $0x1b0] sm:$0xff]
        %v209 = vld [vmem:[%s148 + $0x1b8] sm:$0xff]
        %v210 = vld [vmem:[%s148 + $0x1c0] sm:$0xff]
        %v211 = vld [vmem:[%s148 + $0x1c8] sm:$0xff]
        %v212 = vld [vmem:[%s148 + $0x1d0] sm:$0xff]
        %v213 = vld [vmem:[%s148 + $0x1d8] sm:$0xff]
        %v214 = vld [vmem:[%s148 + $0x1e0] sm:$0xff]
        %v215 = vld [vmem:[%s148 + $0x1e8] sm:$0xff]
        %v216 = vld [vmem:[%s148 + $0x1f0] sm:$0xff]
        %v217 = vld [vmem:[%s148 + $0x1f8] sm:$0xff]
        %v218 = vld [vmem:[%s148 + $0x200] sm:$0xff]
        %v219 = vld [vmem:[%s148 + $0x208] sm:$0xff]
        %v220 = vld [vmem:[%s148 + $0x210] sm:$0xff]
        %v221 = vld [vmem:[%s148 + $0x218] sm:$0xff]
        %v222 = vld [vmem:[%s148 + $0x220] sm:$0xff]
        %v223 = vld [vmem:[%s148 + $0x228] sm:$0xff]
        %v224 = vld [vmem:[%s148 + $0x230] sm:$0xff]
        %v225 = vld [vmem:[%s148 + $0x238] sm:$0xff]
        %v226 = vld [vmem:[%s148 + $0x240] sm:$0xff]
        %v227 = vld [vmem:[%s148 + $0x248] sm:$0xff]
        %v228 = vld [vmem:[%s148 + $0x250] sm:$0xff]
        %v229 = vld [vmem:[%s148 + $0x258] sm:$0xff]
        %v230 = vld [vmem:[%s148 + $0x260] sm:$0xff]
        %v231 = vld [vmem:[%s148 + $0x268] sm:$0xff]
        %v232 = vld [vmem:[%s148 + $0x270] sm:$0xff]
        %v233 = vld [vmem:[%s148 + $0x278] sm:$0xff]
        %v234 = vld [vmem:[%s148 + $0x280] sm:$0xff]
        %v235 = vld [vmem:[%s148 + $0x288] sm:$0xff]
        %v236 = vld [vmem:[%s148 + $0x290] sm:$0xff]
        %v237 = vld [vmem:[%s148 + $0x298] sm:$0xff]
        %v238 = vld [vmem:[%s148 + $0x2a0] sm:$0xff]
        %v239 = vld [vmem:[%s148 + $0x2a8] sm:$0xff]
        %v240 = vld [vmem:[%s148 + $0x2b0] sm:$0xff]
        %v241 = vld [vmem:[%s148 + $0x2b8] sm:$0xff]
        %v242 = vld [vmem:[%s148 + $0x2c0] sm:$0xff]
        %v243 = vld [vmem:[%s148 + $0x2c8] sm:$0xff]
        %v244 = vld [vmem:[%s148 + $0x2d0] sm:$0xff]
        %v245 = vld [vmem:[%s148 + $0x2d8] sm:$0xff]
        %v246 = vld [vmem:[%s148 + $0x2e0] sm:$0xff]
        %v247 = vld [vmem:[%s148 + $0x2e8] sm:$0xff]
        %v248 = vld [vmem:[%s148 + $0x2f0] sm:$0xff]
        %v249 = vld [vmem:[%s148 + $0x2f8] sm:$0xff]
        %v250 = vld [vmem:[%s148 + $0x300] sm:$0xff]
        %v251 = vld [vmem:[%s148 + $0x308] sm:$0xff]
        %v252 = vld [vmem:[%s148 + $0x310] sm:$0xff]
        %v253 = vld [vmem:[%s148 + $0x318] sm:$0xff]
        %v254 = vld [vmem:[%s148 + $0x320] sm:$0xff]
        %v255 = vld [vmem:[%s148 + $0x328] sm:$0xff]
        %v256 = vld [vmem:[%s148 + $0x330] sm:$0xff]
        %v257 = vld [vmem:[%s148 + $0x338] sm:$0xff]
        %v258 = vld [vmem:[%s148 + $0x340] sm:$0xff]
        %v259 = vld [vmem:[%s148 + $0x348] sm:$0xff]
        %v260 = vld [vmem:[%s148 + $0x350] sm:$0xff]
        %v261 = vld [vmem:[%s148 + $0x358] sm:$0xff]
        %v262 = vld [vmem:[%s148 + $0x360] sm:$0xff]
        %v263 = vld [vmem:[%s148 + $0x368] sm:$0xff]
        %v264 = vld [vmem:[%s148 + $0x370] sm:$0xff]
        %v265 = vld [vmem:[%s148 + $0x378] sm:$0xff]
        %v266 = vld [vmem:[%s148 + $0x380] sm:$0xff]
        %v267 = vld [vmem:[%s148 + $0x388] sm:$0xff]
        %v268 = vld [vmem:[%s148 + $0x390] sm:$0xff]
        %v269 = vld [vmem:[%s148 + $0x398] sm:$0xff]
        %v270 = vld [vmem:[%s148 + $0x3a0] sm:$0xff]
        %v271 = vld [vmem:[%s148 + $0x3a8] sm:$0xff]
        %v272 = vld [vmem:[%s148 + $0x3b0] sm:$0xff]
        %v273 = vld [vmem:[%s148 + $0x3b8] sm:$0xff]
        %v274 = vld [vmem:[%s148 + $0x3c0] sm:$0xff]
        %v275 = vld [vmem:[%s148 + $0x3c8] sm:$0xff]
        %v276 = vld [vmem:[%s148 + $0x3d0] sm:$0xff]
        %v277 = vld [vmem:[%s148 + $0x3d8] sm:$0xff]
        %v278 = vld [vmem:[%s148 + $0x3e0] sm:$0xff]
        %v279 = vld [vmem:[%s148 + $0x3e8] sm:$0xff]
        %v280 = vld [vmem:[%s148 + $0x3f0] sm:$0xff]
        %v281 = vld [vmem:[%s148 + $0x3f8] sm:$0xff]
        %v282 = vld [vmem:[%s148 + $0x400] sm:$0xff]
        %v283 = vld [vmem:[%s148 + $0x408] sm:$0xff]
        %v284 = vld [vmem:[%s148 + $0x410] sm:$0xff]
        %v285 = vld [vmem:[%s148 + $0x418] sm:$0xff]
        %v286 = vld [vmem:[%s148 + $0x420] sm:$0xff]
        %v287 = vld [vmem:[%s148 + $0x428] sm:$0xff]
        %v288 = vld [vmem:[%s148 + $0x430] sm:$0xff]
        %v289 = vld [vmem:[%s148 + $0x438] sm:$0xff]
        %v290 = vld [vmem:[%s148 + $0x440] sm:$0xff]
        %v291 = vld [vmem:[%s148 + $0x448] sm:$0xff]
        %v292 = vld [vmem:[%s148 + $0x450] sm:$0xff]
        %v293 = vld [vmem:[%s148 + $0x458] sm:$0xff]
        %v294 = vld [vmem:[%s148 + $0x460] sm:$0xff]
        %v295 = vld [vmem:[%s148 + $0x468] sm:$0xff]
        %v296 = vld [vmem:[%s148 + $0x470] sm:$0xff]
        %v297 = vld [vmem:[%s148 + $0x478] sm:$0xff]
        %v298 = vld [vmem:[%s148 + $0x480] sm:$0xff]
        %v299 = vld [vmem:[%s148 + $0x488] sm:$0xff]
        %v300 = vld [vmem:[%s148 + $0x490] sm:$0xff]
        %v301 = vld [vmem:[%s148 + $0x498] sm:$0xff]
        %v302 = vld [vmem:[%s148 + $0x4a0] sm:$0xff]
        %v303 = vld [vmem:[%s148 + $0x4a8] sm:$0xff]
        %v304 = vld [vmem:[%s148 + $0x4b0] sm:$0xff]
        %v305 = vld [vmem:[%s148 + $0x4b8] sm:$0xff]
        %v306 = vld [vmem:[%s148 + $0x4c0] sm:$0xff]
        %v307 = vld [vmem:[%s148 + $0x4c8] sm:$0xff]
        %v308 = vld [vmem:[%s148 + $0x4d0] sm:$0xff]
        %v309 = vld [vmem:[%s148 + $0x4d8] sm:$0xff]
        %v310 = vld [vmem:[%s148 + $0x4e0] sm:$0xff]
        %v311 = vld [vmem:[%s148 + $0x4e8] sm:$0xff]
        %v312 = vld [vmem:[%s148 + $0x4f0] sm:$0xff]
        %v313 = vld [vmem:[%s148 + $0x4f8] sm:$0xff]
        %v314 = vld [vmem:[%s148 + $0x500] sm:$0xff]
        %v315 = vld [vmem:[%s148 + $0x508] sm:$0xff]
        %v316 = vld [vmem:[%s148 + $0x510] sm:$0xff]
        %v317 = vld [vmem:[%s148 + $0x518] sm:$0xff]
        %v318 = vld [vmem:[%s148 + $0x520] sm:$0xff]
        %v319 = vld [vmem:[%s148 + $0x528] sm:$0xff]
        %v320 = vld [vmem:[%s148 + $0x530] sm:$0xff]
        %v321 = vld [vmem:[%s148 + $0x538] sm:$0xff]
        %v322 = vld [vmem:[%s148 + $0x540] sm:$0xff]
        %v323 = vld [vmem:[%s148 + $0x548] sm:$0xff]
        %v324 = vld [vmem:[%s148 + $0x550] sm:$0xff]
        %v325 = vld [vmem:[%s148 + $0x558] sm:$0xff]
        %v326 = vld [vmem:[%s148 + $0x560] sm:$0xff]
        %v327 = vld [vmem:[%s148 + $0x568] sm:$0xff]
        %v328 = vld [vmem:[%s148 + $0x570] sm:$0xff]
        %v329 = vld [vmem:[%s148 + $0x578] sm:$0xff]
        %v330 = vld [vmem:[%s148 + $0x580] sm:$0xff]
        %v331 = vld [vmem:[%s148 + $0x588] sm:$0xff]
        %v332 = vld [vmem:[%s148 + $0x590] sm:$0xff]
        %v333 = vld [vmem:[%s148 + $0x598] sm:$0xff]
        %v334 = vld [vmem:[%s148 + $0x5a0] sm:$0xff]
        %v335 = vld [vmem:[%s148 + $0x5a8] sm:$0xff]
        %v336 = vld [vmem:[%s148 + $0x5b0] sm:$0xff]
        %v337 = vld [vmem:[%s148 + $0x5b8] sm:$0xff]
        %v338 = vld [vmem:[%s148 + $0x5c0] sm:$0xff]
        %v339 = vld [vmem:[%s148 + $0x5c8] sm:$0xff]
        %v340 = vld [vmem:[%s148 + $0x5d0] sm:$0xff]
        %v341 = vld [vmem:[%s148 + $0x5d8] sm:$0xff]
        %v342 = vld [vmem:[%s148 + $0x5e0] sm:$0xff]
        %v343 = vld [vmem:[%s148 + $0x5e8] sm:$0xff]
        %v344 = vld [vmem:[%s148 + $0x5f0] sm:$0xff]
        %v345 = vld [vmem:[%s148 + $0x5f8] sm:$0xff]
        %v346 = vld [vmem:[%s148 + $0x600] sm:$0xff]
        %v347 = vld [vmem:[%s148 + $0x608] sm:$0xff]
        %v348 = vld [vmem:[%s148 + $0x610] sm:$0xff]
        %v349 = vld [vmem:[%s148 + $0x618] sm:$0xff]
        %v350 = vld [vmem:[%s148 + $0x620] sm:$0xff]
        %v351 = vld [vmem:[%s148 + $0x628] sm:$0xff]
        %v352 = vld [vmem:[%s148 + $0x630] sm:$0xff]
        %v353 = vld [vmem:[%s148 + $0x638] sm:$0xff]
        %v354 = vld [vmem:[%s148 + $0x640] sm:$0xff]
        %v355 = vld [vmem:[%s148 + $0x648] sm:$0xff]
        %v356 = vld [vmem:[%s148 + $0x650] sm:$0xff]
        %v357 = vld [vmem:[%s148 + $0x658] sm:$0xff]
        %v358 = vld [vmem:[%s148 + $0x660] sm:$0xff]
        %v359 = vld [vmem:[%s148 + $0x668] sm:$0xff]
        %v360 = vld [vmem:[%s148 + $0x670] sm:$0xff]
        %v361 = vld [vmem:[%s148 + $0x678] sm:$0xff]
        %v362 = vld [vmem:[%s148 + $0x680] sm:$0xff]
        %v363 = vld [vmem:[%s148 + $0x688] sm:$0xff]
        %v364 = vld [vmem:[%s148 + $0x690] sm:$0xff]
        %v365 = vld [vmem:[%s148 + $0x698] sm:$0xff]
        %v366 = vld [vmem:[%s148 + $0x6a0] sm:$0xff]
        %v367 = vld [vmem:[%s148 + $0x6a8] sm:$0xff]
        %v368 = vld [vmem:[%s148 + $0x6b0] sm:$0xff]
        %v369 = vld [vmem:[%s148 + $0x6b8] sm:$0xff]
        %v370 = vld [vmem:[%s148 + $0x6c0] sm:$0xff]
        %v371 = vld [vmem:[%s148 + $0x6c8] sm:$0xff]
        %v372 = vld [vmem:[%s148 + $0x6d0] sm:$0xff]
        %v373 = vld [vmem:[%s148 + $0x6d8] sm:$0xff]
        %v374 = vld [vmem:[%s148 + $0x6e0] sm:$0xff]
        %v375 = vld [vmem:[%s148 + $0x6e8] sm:$0xff]
        %v376 = vld [vmem:[%s148 + $0x6f0] sm:$0xff]
        %v377 = vld [vmem:[%s148 + $0x6f8] sm:$0xff]
        %v378 = vld [vmem:[%s148 + $0x700] sm:$0xff]
        %v379 = vld [vmem:[%s148 + $0x708] sm:$0xff]
        %v380 = vld [vmem:[%s148 + $0x710] sm:$0xff]
        %v381 = vld [vmem:[%s148 + $0x718] sm:$0xff]
        %v382 = vld [vmem:[%s148 + $0x720] sm:$0xff]
        %v383 = vld [vmem:[%s148 + $0x728] sm:$0xff]
        %v384 = vld [vmem:[%s148 + $0x730] sm:$0xff]
        %v385 = vld [vmem:[%s148 + $0x738] sm:$0xff]
        %v386 = vld [vmem:[%s148 + $0x740] sm:$0xff]
        %v387 = vld [vmem:[%s148 + $0x748] sm:$0xff]
        %v388 = vld [vmem:[%s148 + $0x750] sm:$0xff]
        %v389 = vld [vmem:[%s148 + $0x758] sm:$0xff]
        %v390 = vld [vmem:[%s148 + $0x760] sm:$0xff]
        %v391 = vld [vmem:[%s148 + $0x768] sm:$0xff]
        %v392 = vld [vmem:[%s148 + $0x770] sm:$0xff]
        %v393 = vld [vmem:[%s148 + $0x778] sm:$0xff]
        %v394 = vld [vmem:[%s148 + $0x780] sm:$0xff]
        %v395 = vld [vmem:[%s148 + $0x788] sm:$0xff]
        %v396 = vld [vmem:[%s148 + $0x790] sm:$0xff]
        %v397 = vld [vmem:[%s148 + $0x798] sm:$0xff]
        %v398 = vld [vmem:[%s148 + $0x7a0] sm:$0xff]
        %v399 = vld [vmem:[%s148 + $0x7a8] sm:$0xff]
        %v400 = vld [vmem:[%s148 + $0x7b0] sm:$0xff]
        %v401 = vld [vmem:[%s148 + $0x7b8] sm:$0xff]
        %v402 = vld [vmem:[%s148 + $0x7c0] sm:$0xff]
        %v403 = vld [vmem:[%s148 + $0x7c8] sm:$0xff]
        %v404 = vld [vmem:[%s148 + $0x7d0] sm:$0xff]
        %v405 = vld [vmem:[%s148 + $0x7d8] sm:$0xff]
        %v406 = vld [vmem:[%s148 + $0x7e0] sm:$0xff]
        %v407 = vld [vmem:[%s148 + $0x7e8] sm:$0xff]
        %v408 = vld [vmem:[%s148 + $0x7f0] sm:$0xff]
        %v409 = vld [vmem:[%s148 + $0x7f8] sm:$0xff]
        %v410 = vld [vmem:[%s148 + $0x800] sm:$0xff]
        %v411 = vld [vmem:[%s148 + $0x808] sm:$0xff]
        %v412 = vld [vmem:[%s148 + $0x810] sm:$0xff]
        %v413 = vld [vmem:[%s148 + $0x818] sm:$0xff]
        %v414 = vld [vmem:[%s148 + $0x820] sm:$0xff]
        %v415 = vld [vmem:[%s148 + $0x828] sm:$0xff]
        %v416 = vld [vmem:[%s148 + $0x830] sm:$0xff]
        %v417 = vld [vmem:[%s148 + $0x838] sm:$0xff]
        %v418 = vld [vmem:[%s148 + $0x840] sm:$0xff]
        %v419 = vld [vmem:[%s148 + $0x848] sm:$0xff]
        %v420 = vld [vmem:[%s148 + $0x850] sm:$0xff]
        %v421 = vld [vmem:[%s148 + $0x858] sm:$0xff]
        %v422 = vld [vmem:[%s148 + $0x860] sm:$0xff]
        %v423 = vld [vmem:[%s148 + $0x868] sm:$0xff]
        %v424 = vld [vmem:[%s148 + $0x870] sm:$0xff]
        %v425 = vld [vmem:[%s148 + $0x878] sm:$0xff]
        %v426 = vld [vmem:[%s148 + $0x880] sm:$0xff]
        %v427 = vld [vmem:[%s148 + $0x888] sm:$0xff]
        %v428 = vld [vmem:[%s148 + $0x890] sm:$0xff]
        %v429 = vld [vmem:[%s148 + $0x898] sm:$0xff]
        %v430 = vld [vmem:[%s148 + $0x8a0] sm:$0xff]
        %v431 = vld [vmem:[%s148 + $0x8a8] sm:$0xff]
        %v432 = vld [vmem:[%s148 + $0x8b0] sm:$0xff]
        %v433 = vld [vmem:[%s148 + $0x8b8] sm:$0xff]
        %v434 = vld [vmem:[%s148 + $0x8c0] sm:$0xff]
        %v435 = vld [vmem:[%s148 + $0x8c8] sm:$0xff]
        %v436 = vld [vmem:[%s148 + $0x8d0] sm:$0xff]
        %v437 = vld [vmem:[%s148 + $0x8d8] sm:$0xff]
        %v438 = vld [vmem:[%s148 + $0x8e0] sm:$0xff]
        %v439 = vld [vmem:[%s148 + $0x8e8] sm:$0xff]
        %v440 = vld [vmem:[%s148 + $0x8f0] sm:$0xff]
        %v441 = vld [vmem:[%s148 + $0x8f8] sm:$0xff]
        %v442 = vld [vmem:[%s148 + $0x900] sm:$0xff]
        %v443 = vld [vmem:[%s148 + $0x908] sm:$0xff]
        %v444 = vld [vmem:[%s148 + $0x910] sm:$0xff]
        %v445 = vld [vmem:[%s148 + $0x918] sm:$0xff]
        %v446 = vld [vmem:[%s148 + $0x920] sm:$0xff]
        %v447 = vld [vmem:[%s148 + $0x928] sm:$0xff]
        %v448 = vld [vmem:[%s148 + $0x930] sm:$0xff]
        %v449 = vld [vmem:[%s148 + $0x938] sm:$0xff]
        %v450 = vld [vmem:[%s148 + $0x940] sm:$0xff]
        %v451 = vld [vmem:[%s148 + $0x948] sm:$0xff]
        %v452 = vld [vmem:[%s148 + $0x950] sm:$0xff]
        %v453 = vld [vmem:[%s148 + $0x958] sm:$0xff]
        %v454 = vld [vmem:[%s148 + $0x960] sm:$0xff]
        %v455 = vld [vmem:[%s148 + $0x968] sm:$0xff]
        %v456 = vld [vmem:[%s148 + $0x970] sm:$0xff]
        %v457 = vld [vmem:[%s148 + $0x978] sm:$0xff]
        %v458 = vld [vmem:[%s148 + $0x980] sm:$0xff]
        %v459 = vld [vmem:[%s148 + $0x988] sm:$0xff]
        %v460 = vld [vmem:[%s148 + $0x990] sm:$0xff]
        %v461 = vld [vmem:[%s148 + $0x998] sm:$0xff]
        %v462 = vld [vmem:[%s148 + $0x9a0] sm:$0xff]
        %v463 = vld [vmem:[%s148 + $0x9a8] sm:$0xff]
        %v464 = vld [vmem:[%s148 + $0x9b0] sm:$0xff]
        %v465 = vld [vmem:[%s148 + $0x9b8] sm:$0xff]
        %v466 = vld [vmem:[%s148 + $0x9c0] sm:$0xff]
        %v467 = vld [vmem:[%s148 + $0x9c8] sm:$0xff]
        %v468 = vld [vmem:[%s148 + $0x9d0] sm:$0xff]
        %v469 = vld [vmem:[%s148 + $0x9d8] sm:$0xff]
        %v470 = vld [vmem:[%s148 + $0x9e0] sm:$0xff]
        %v471 = vld [vmem:[%s148 + $0x9e8] sm:$0xff]
        %v472 = vld [vmem:[%s148 + $0x9f0] sm:$0xff]
        %v473 = vld [vmem:[%s148 + $0x9f8] sm:$0xff]
        %v474 = vld [vmem:[%s148 + $0xa00] sm:$0xff]
        %v475 = vld [vmem:[%s148 + $0xa08] sm:$0xff]
        %v476 = vld [vmem:[%s148 + $0xa10] sm:$0xff]
        %v477 = vld [vmem:[%s148 + $0xa18] sm:$0xff]
        %v478 = vld [vmem:[%s148 + $0xa20] sm:$0xff]
        %v479 = vld [vmem:[%s148 + $0xa28] sm:$0xff]
        %v480 = vld [vmem:[%s148 + $0xa30] sm:$0xff]
        %v481 = vld [vmem:[%s148 + $0xa38] sm:$0xff]
        %v482 = vld [vmem:[%s148 + $0xa40] sm:$0xff]
        %v483 = vld [vmem:[%s148 + $0xa48] sm:$0xff]
        %v484 = vld [vmem:[%s148 + $0xa50] sm:$0xff]
        %v485 = vld [vmem:[%s148 + $0xa58] sm:$0xff]
        %v486 = vld [vmem:[%s148 + $0xa60] sm:$0xff]
        %v487 = vld [vmem:[%s148 + $0xa68] sm:$0xff]
        %v488 = vld [vmem:[%s148 + $0xa70] sm:$0xff]
        %v489 = vld [vmem:[%s148 + $0xa78] sm:$0xff]
        %v490 = vld [vmem:[%s148 + $0xa80] sm:$0xff]
        %v491 = vld [vmem:[%s148 + $0xa88] sm:$0xff]
        %v492 = vld [vmem:[%s148 + $0xa90] sm:$0xff]
        %v493 = vld [vmem:[%s148 + $0xa98] sm:$0xff]
        %v494 = vld [vmem:[%s148 + $0xaa0] sm:$0xff]
        %v495 = vld [vmem:[%s148 + $0xaa8] sm:$0xff]
        %v496 = vld [vmem:[%s148 + $0xab0] sm:$0xff]
        %v497 = vld [vmem:[%s148 + $0xab8] sm:$0xff]
        %v498 = vld [vmem:[%s148 + $0xac0] sm:$0xff]
        %v499 = vld [vmem:[%s148 + $0xac8] sm:$0xff]
        %v500 = vld [vmem:[%s148 + $0xad0] sm:$0xff]
        %v501 = vld [vmem:[%s148 + $0xad8] sm:$0xff]
        %v502 = vld [vmem:[%s148 + $0xae0] sm:$0xff]
        %v503 = vld [vmem:[%s148 + $0xae8] sm:$0xff]
        %v504 = vld [vmem:[%s148 + $0xaf0] sm:$0xff]
        %v505 = vld [vmem:[%s148 + $0xaf8] sm:$0xff]
        %v506 = vld [vmem:[%s148 + $0xb00] sm:$0xff]
        %v507 = vld [vmem:[%s148 + $0xb08] sm:$0xff]
        %v508 = vld [vmem:[%s148 + $0xb10] sm:$0xff]
        %v509 = vld [vmem:[%s148 + $0xb18] sm:$0xff]
        %v510 = vld [vmem:[%s148 + $0xb20] sm:$0xff]
        %v511 = vld [vmem:[%s148 + $0xb28] sm:$0xff]
        %v512 = vld [vmem:[%s148 + $0xb30] sm:$0xff]
        %v513 = vld [vmem:[%s148 + $0xb38] sm:$0xff]
        %v514 = vld [vmem:[%s148 + $0xb40] sm:$0xff]
        %v515 = vld [vmem:[%s148 + $0xb48] sm:$0xff]
        %v516 = vld [vmem:[%s148 + $0xb50] sm:$0xff]
        %v517 = vld [vmem:[%s148 + $0xb58] sm:$0xff]
        %v518 = vld [vmem:[%s148 + $0xb60] sm:$0xff]
        %v519 = vld [vmem:[%s148 + $0xb68] sm:$0xff]
        %v520 = vld [vmem:[%s148 + $0xb70] sm:$0xff]
        %v521 = vld [vmem:[%s148 + $0xb78] sm:$0xff]
        %v522 = vld [vmem:[%s148 + $0xb80] sm:$0xff]
        %v523 = vld [vmem:[%s148 + $0xb88] sm:$0xff]
        %v524 = vld [vmem:[%s148 + $0xb90] sm:$0xff]
        %v525 = vld [vmem:[%s148 + $0xb98] sm:$0xff]
        %v526 = vld [vmem:[%s148 + $0xba0] sm:$0xff]
        %v527 = vld [vmem:[%s148 + $0xba8] sm:$0xff]
        %v528 = vld [vmem:[%s148 + $0xbb0] sm:$0xff]
        %v529 = vld [vmem:[%s148 + $0xbb8] sm:$0xff]
        %v530 = vld [vmem:[%s148 + $0xbc0] sm:$0xff]
        %v531 = vld [vmem:[%s148 + $0xbc8] sm:$0xff]
        %v532 = vld [vmem:[%s148 + $0xbd0] sm:$0xff]
        %v533 = vld [vmem:[%s148 + $0xbd8] sm:$0xff]
        %v534 = vld [vmem:[%s148 + $0xbe0] sm:$0xff]
        %v535 = vld [vmem:[%s148 + $0xbe8] sm:$0xff]
        %v536 = vld [vmem:[%s148 + $0xbf0] sm:$0xff]
        %v537 = vld [vmem:[%s148 + $0xbf8] sm:$0xff]
        %v538 = vld [vmem:[%s148 + $0xc00] sm:$0xff]
        %v539 = vld [vmem:[%s148 + $0xc08] sm:$0xff]
        %v540 = vld [vmem:[%s148 + $0xc10] sm:$0xff]
        %v541 = vld [vmem:[%s148 + $0xc18] sm:$0xff]
        %v542 = vld [vmem:[%s148 + $0xc20] sm:$0xff]
        %v543 = vld [vmem:[%s148 + $0xc28] sm:$0xff]
        %v544 = vld [vmem:[%s148 + $0xc30] sm:$0xff]
        %v545 = vld [vmem:[%s148 + $0xc38] sm:$0xff]
        %v546 = vld [vmem:[%s148 + $0xc40] sm:$0xff]
        %v547 = vld [vmem:[%s148 + $0xc48] sm:$0xff]
        %v548 = vld [vmem:[%s148 + $0xc50] sm:$0xff]
        %v549 = vld [vmem:[%s148 + $0xc58] sm:$0xff]
        %v550 = vld [vmem:[%s148 + $0xc60] sm:$0xff]
        %v551 = vld [vmem:[%s148 + $0xc68] sm:$0xff]
        %v552 = vld [vmem:[%s148 + $0xc70] sm:$0xff]
        %v553 = vld [vmem:[%s148 + $0xc78] sm:$0xff]
        %v554 = vld [vmem:[%s148 + $0xc80] sm:$0xff]
        %v555 = vld [vmem:[%s148 + $0xc88] sm:$0xff]
        %v556 = vld [vmem:[%s148 + $0xc90] sm:$0xff]
        %v557 = vld [vmem:[%s148 + $0xc98] sm:$0xff]
        %v558 = vld [vmem:[%s148 + $0xca0] sm:$0xff]
        %v559 = vld [vmem:[%s148 + $0xca8] sm:$0xff]
        %v560 = vld [vmem:[%s148 + $0xcb0] sm:$0xff]
        %v561 = vld [vmem:[%s148 + $0xcb8] sm:$0xff]
        %v562 = vld [vmem:[%s148 + $0xcc0] sm:$0xff]
        %v563 = vld [vmem:[%s148 + $0xcc8] sm:$0xff]
        %v564 = vld [vmem:[%s148 + $0xcd0] sm:$0xff]
        %v565 = vld [vmem:[%s148 + $0xcd8] sm:$0xff]
        %v566 = vld [vmem:[%s148 + $0xce0] sm:$0xff]
        %v567 = vld [vmem:[%s148 + $0xce8] sm:$0xff]
        %v568 = vld [vmem:[%s148 + $0xcf0] sm:$0xff]
        %v569 = vld [vmem:[%s148 + $0xcf8] sm:$0xff]
        %v570 = vld [vmem:[%s148 + $0xd00] sm:$0xff]
        %v571 = vld [vmem:[%s148 + $0xd08] sm:$0xff]
        %v572 = vld [vmem:[%s148 + $0xd10] sm:$0xff]
        %v573 = vld [vmem:[%s148 + $0xd18] sm:$0xff]
        %v574 = vld [vmem:[%s148 + $0xd20] sm:$0xff]
        %v575 = vld [vmem:[%s148 + $0xd28] sm:$0xff]
        %v576 = vld [vmem:[%s148 + $0xd30] sm:$0xff]
        %v577 = vld [vmem:[%s148 + $0xd38] sm:$0xff]
        %v578 = vld [vmem:[%s148 + $0xd40] sm:$0xff]
        %v579 = vld [vmem:[%s148 + $0xd48] sm:$0xff]
        %v580 = vld [vmem:[%s148 + $0xd50] sm:$0xff]
        %v581 = vld [vmem:[%s148 + $0xd58] sm:$0xff]
        %v582 = vld [vmem:[%s148 + $0xd60] sm:$0xff]
        %v583 = vld [vmem:[%s148 + $0xd68] sm:$0xff]
        %v584 = vld [vmem:[%s148 + $0xd70] sm:$0xff]
        %v585 = vld [vmem:[%s148 + $0xd78] sm:$0xff]
        %v586 = vld [vmem:[%s148 + $0xd80] sm:$0xff]
        %v587 = vld [vmem:[%s148 + $0xd88] sm:$0xff]
        %v588 = vld [vmem:[%s148 + $0xd90] sm:$0xff]
        %v589 = vld [vmem:[%s148 + $0xd98] sm:$0xff]
        %v590 = vld [vmem:[%s148 + $0xda0] sm:$0xff]
        %v591 = vld [vmem:[%s148 + $0xda8] sm:$0xff]
        %v592 = vld [vmem:[%s148 + $0xdb0] sm:$0xff]
        %v593 = vld [vmem:[%s148 + $0xdb8] sm:$0xff]
        %v594 = vld [vmem:[%s148 + $0xdc0] sm:$0xff]
        %v595 = vld [vmem:[%s148 + $0xdc8] sm:$0xff]
        %v596 = vld [vmem:[%s148 + $0xdd0] sm:$0xff]
        %v597 = vld [vmem:[%s148 + $0xdd8] sm:$0xff]
        %v598 = vld [vmem:[%s148 + $0xde0] sm:$0xff]
        %v599 = vld [vmem:[%s148 + $0xde8] sm:$0xff]
        %v600 = vld [vmem:[%s148 + $0xdf0] sm:$0xff]
        %v601 = vld [vmem:[%s148 + $0xdf8] sm:$0xff]
        %v602 = vld [vmem:[%s148 + $0xe00] sm:$0xff]
        %v603 = vld [vmem:[%s148 + $0xe08] sm:$0xff]
        %v604 = vld [vmem:[%s148 + $0xe10] sm:$0xff]
        %v605 = vld [vmem:[%s148 + $0xe18] sm:$0xff]
        %v606 = vld [vmem:[%s148 + $0xe20] sm:$0xff]
        %v607 = vld [vmem:[%s148 + $0xe28] sm:$0xff]
        %v608 = vld [vmem:[%s148 + $0xe30] sm:$0xff]
        %v609 = vld [vmem:[%s148 + $0xe38] sm:$0xff]
        %v610 = vld [vmem:[%s148 + $0xe40] sm:$0xff]
        %v611 = vld [vmem:[%s148 + $0xe48] sm:$0xff]
        %v612 = vld [vmem:[%s148 + $0xe50] sm:$0xff]
        %v613 = vld [vmem:[%s148 + $0xe58] sm:$0xff]
        %v614 = vld [vmem:[%s148 + $0xe60] sm:$0xff]
        %v615 = vld [vmem:[%s148 + $0xe68] sm:$0xff]
        %v616 = vld [vmem:[%s148 + $0xe70] sm:$0xff]
        %v617 = vld [vmem:[%s148 + $0xe78] sm:$0xff]
        %v618 = vld [vmem:[%s148 + $0xe80] sm:$0xff]
        %v619 = vld [vmem:[%s148 + $0xe88] sm:$0xff]
        %v620 = vld [vmem:[%s148 + $0xe90] sm:$0xff]
        %v621 = vld [vmem:[%s148 + $0xe98] sm:$0xff]
        %v622 = vld [vmem:[%s148 + $0xea0] sm:$0xff]
        %v623 = vld [vmem:[%s148 + $0xea8] sm:$0xff]
        %v624 = vld [vmem:[%s148 + $0xeb0] sm:$0xff]
        %v625 = vld [vmem:[%s148 + $0xeb8] sm:$0xff]
        %v626 = vld [vmem:[%s148 + $0xec0] sm:$0xff]
        %v627 = vld [vmem:[%s148 + $0xec8] sm:$0xff]
        %v628 = vld [vmem:[%s148 + $0xed0] sm:$0xff]
        %v629 = vld [vmem:[%s148 + $0xed8] sm:$0xff]
        %v630 = vld [vmem:[%s148 + $0xee0] sm:$0xff]
        %v631 = vld [vmem:[%s148 + $0xee8] sm:$0xff]
        %v632 = vld [vmem:[%s148 + $0xef0] sm:$0xff]
        %v633 = vld [vmem:[%s148 + $0xef8] sm:$0xff]
        %v634 = vld [vmem:[%s148 + $0xf00] sm:$0xff]
        %v635 = vld [vmem:[%s148 + $0xf08] sm:$0xff]
        %v636 = vld [vmem:[%s148 + $0xf10] sm:$0xff]
        %v637 = vld [vmem:[%s148 + $0xf18] sm:$0xff]
        %v638 = vld [vmem:[%s148 + $0xf20] sm:$0xff]
        %v639 = vld [vmem:[%s148 + $0xf28] sm:$0xff]
        %v640 = vld [vmem:[%s148 + $0xf30] sm:$0xff]
        %v641 = vld [vmem:[%s148 + $0xf38] sm:$0xff]
        %v642 = vld [vmem:[%s148 + $0xf40] sm:$0xff]
        %v643 = vld [vmem:[%s148 + $0xf48] sm:$0xff]
        %v644 = vld [vmem:[%s148 + $0xf50] sm:$0xff]
        %v645 = vld [vmem:[%s148 + $0xf58] sm:$0xff]
        %v646 = vld [vmem:[%s148 + $0xf60] sm:$0xff]
        %v647 = vld [vmem:[%s148 + $0xf68] sm:$0xff]
        %v648 = vld [vmem:[%s148 + $0xf70] sm:$0xff]
        %v649 = vld [vmem:[%s148 + $0xf78] sm:$0xff]
        %v650 = vld [vmem:[%s148 + $0xf80] sm:$0xff]
        %v651 = vld [vmem:[%s148 + $0xf88] sm:$0xff]
        %v652 = vld [vmem:[%s148 + $0xf90] sm:$0xff]
        %v653 = vld [vmem:[%s148 + $0xf98] sm:$0xff]
        %v654 = vld [vmem:[%s148 + $0xfa0] sm:$0xff]
        %v655 = vld [vmem:[%s148 + $0xfa8] sm:$0xff]
        %v656 = vld [vmem:[%s148 + $0xfb0] sm:$0xff]
        %v657 = vld [vmem:[%s148 + $0xfb8] sm:$0xff]
        %v658 = vld [vmem:[%s148 + $0xfc0] sm:$0xff]
        %v659 = vld [vmem:[%s148 + $0xfc8] sm:$0xff]
        %v660 = vld [vmem:[%s148 + $0xfd0] sm:$0xff]
        %v661 = vld [vmem:[%s148 + $0xfd8] sm:$0xff]
        %v662 = vld [vmem:[%s148 + $0xfe0] sm:$0xff]
        %v663 = vld [vmem:[%s148 + $0xfe8] sm:$0xff]
        %v664 = vld [vmem:[%s148 + $0xff0] sm:$0xff]
        %v665 = vld [vmem:[%s148 + $0xff8] sm:$0xff]
        %vm666 = vcmask 23552
        %v667 = vsel %vm666, %v154, 0.0
        %v668 = vsel %vm666, %v162, 0.0
        %v669 = vadd.f32 %v667, %v668
        %v670 = vsel %vm666, %v170, 0.0
        %v671 = vadd.f32 %v669, %v670
        %v672 = vsel %vm666, %v178, 0.0
        %v673 = vadd.f32 %v671, %v672
        %v674 = vsel %vm666, %v186, 0.0
        %v675 = vadd.f32 %v673, %v674
        %v676 = vsel %vm666, %v194, 0.0
        %v677 = vadd.f32 %v675, %v676
        %v678 = vsel %vm666, %v202, 0.0
        %v679 = vadd.f32 %v677, %v678
        %v680 = vsel %vm666, %v210, 0.0
        %v681 = vadd.f32 %v679, %v680
        %v682 = vsel %vm666, %v218, 0.0
        %v683 = vadd.f32 %v681, %v682
        %v684 = vsel %vm666, %v226, 0.0
        %v685 = vadd.f32 %v683, %v684
        %v686 = vsel %vm666, %v234, 0.0
        %v687 = vadd.f32 %v685, %v686
        %v688 = vsel %vm666, %v242, 0.0
        %v689 = vadd.f32 %v687, %v688
        %v690 = vsel %vm666, %v250, 0.0
        %v691 = vadd.f32 %v689, %v690
        %v692 = vsel %vm666, %v258, 0.0
        %v693 = vadd.f32 %v691, %v692
        %v694 = vsel %vm666, %v266, 0.0
        %v695 = vadd.f32 %v693, %v694
        %v696 = vsel %vm666, %v274, 0.0
        %v697 = vadd.f32 %v695, %v696
        %v698 = vsel %vm666, %v282, 0.0
        %v699 = vadd.f32 %v697, %v698
        %v700 = vsel %vm666, %v290, 0.0
        %v701 = vadd.f32 %v699, %v700
        %v702 = vsel %vm666, %v298, 0.0
        %v703 = vadd.f32 %v701, %v702
        %v704 = vsel %vm666, %v306, 0.0
        %v705 = vadd.f32 %v703, %v704
        %v706 = vsel %vm666, %v314, 0.0
        %v707 = vadd.f32 %v705, %v706
        %v708 = vsel %vm666, %v322, 0.0
        %v709 = vadd.f32 %v707, %v708
        %v710 = vsel %vm666, %v330, 0.0
        %v711 = vadd.f32 %v709, %v710
        %v712 = vsel %vm666, %v338, 0.0
        %v713 = vadd.f32 %v711, %v712
        %v714 = vsel %vm666, %v346, 0.0
        %v715 = vadd.f32 %v713, %v714
        %v716 = vsel %vm666, %v354, 0.0
        %v717 = vadd.f32 %v715, %v716
        %v718 = vsel %vm666, %v362, 0.0
        %v719 = vadd.f32 %v717, %v718
        %v720 = vsel %vm666, %v370, 0.0
        %v721 = vadd.f32 %v719, %v720
        %v722 = vsel %vm666, %v378, 0.0
        %v723 = vadd.f32 %v721, %v722
        %v724 = vsel %vm666, %v386, 0.0
        %v725 = vadd.f32 %v723, %v724
        %v726 = vsel %vm666, %v394, 0.0
        %v727 = vadd.f32 %v725, %v726
        %v728 = vsel %vm666, %v402, 0.0
        %v729 = vadd.f32 %v727, %v728
        %v730 = vsel %vm666, %v410, 0.0
        %v731 = vadd.f32 %v729, %v730
        %v732 = vsel %vm666, %v418, 0.0
        %v733 = vadd.f32 %v731, %v732
        %v734 = vsel %vm666, %v426, 0.0
        %v735 = vadd.f32 %v733, %v734
        %v736 = vsel %vm666, %v434, 0.0
        %v737 = vadd.f32 %v735, %v736
        %v738 = vsel %vm666, %v442, 0.0
        %v739 = vadd.f32 %v737, %v738
        %v740 = vsel %vm666, %v450, 0.0
        %v741 = vadd.f32 %v739, %v740
        %v742 = vsel %vm666, %v458, 0.0
        %v743 = vadd.f32 %v741, %v742
        %v744 = vsel %vm666, %v466, 0.0
        %v745 = vadd.f32 %v743, %v744
        %v746 = vsel %vm666, %v474, 0.0
        %v747 = vadd.f32 %v745, %v746
        %v748 = vsel %vm666, %v482, 0.0
        %v749 = vadd.f32 %v747, %v748
        %v750 = vsel %vm666, %v490, 0.0
        %v751 = vadd.f32 %v749, %v750
        %v752 = vsel %vm666, %v498, 0.0
        %v753 = vadd.f32 %v751, %v752
        %v754 = vsel %vm666, %v506, 0.0
        %v755 = vadd.f32 %v753, %v754
        %v756 = vsel %vm666, %v514, 0.0
        %v757 = vadd.f32 %v755, %v756
        %v758 = vsel %vm666, %v522, 0.0
        %v759 = vadd.f32 %v757, %v758
        %v760 = vsel %vm666, %v530, 0.0
        %v761 = vadd.f32 %v759, %v760
        %v762 = vsel %vm666, %v538, 0.0
        %v763 = vadd.f32 %v761, %v762
        %v764 = vsel %vm666, %v546, 0.0
        %v765 = vadd.f32 %v763, %v764
        %v766 = vsel %vm666, %v554, 0.0
        %v767 = vadd.f32 %v765, %v766
        %v768 = vsel %vm666, %v562, 0.0
        %v769 = vadd.f32 %v767, %v768
        %v770 = vsel %vm666, %v570, 0.0
        %v771 = vadd.f32 %v769, %v770
        %v772 = vsel %vm666, %v578, 0.0
        %v773 = vadd.f32 %v771, %v772
        %v774 = vsel %vm666, %v586, 0.0
        %v775 = vadd.f32 %v773, %v774
        %v776 = vsel %vm666, %v594, 0.0
        %v777 = vadd.f32 %v775, %v776
        %v778 = vsel %vm666, %v602, 0.0
        %v779 = vadd.f32 %v777, %v778
        %v780 = vsel %vm666, %v610, 0.0
        %v781 = vadd.f32 %v779, %v780
        %v782 = vsel %vm666, %v618, 0.0
        %v783 = vadd.f32 %v781, %v782
        %v784 = vsel %vm666, %v626, 0.0
        %v785 = vadd.f32 %v783, %v784
        %v786 = vsel %vm666, %v634, 0.0
        %v787 = vadd.f32 %v785, %v786
        %v788 = vsel %vm666, %v642, 0.0
        %v789 = vadd.f32 %v787, %v788
        %v790 = vsel %vm666, %v650, 0.0
        %v791 = vadd.f32 %v789, %v790
        %v792 = vsel %vm666, %v658, 0.0
        %v793 = vadd.f32 %v791, %v792
        %v794 = vsel %vm666, %v155, 0.0
        %v795 = vsel %vm666, %v163, 0.0
        %v796 = vadd.f32 %v794, %v795
        %v797 = vsel %vm666, %v171, 0.0
        %v798 = vadd.f32 %v796, %v797
        %v799 = vsel %vm666, %v179, 0.0
        %v800 = vadd.f32 %v798, %v799
        %v801 = vsel %vm666, %v187, 0.0
        %v802 = vadd.f32 %v800, %v801
        %v803 = vsel %vm666, %v195, 0.0
        %v804 = vadd.f32 %v802, %v803
        %v805 = vsel %vm666, %v203, 0.0
        %v806 = vadd.f32 %v804, %v805
        %v807 = vsel %vm666, %v211, 0.0
        %v808 = vadd.f32 %v806, %v807
        %v809 = vsel %vm666, %v219, 0.0
        %v810 = vadd.f32 %v808, %v809
        %v811 = vsel %vm666, %v227, 0.0
        %v812 = vadd.f32 %v810, %v811
        %v813 = vsel %vm666, %v235, 0.0
        %v814 = vadd.f32 %v812, %v813
        %v815 = vsel %vm666, %v243, 0.0
        %v816 = vadd.f32 %v814, %v815
        %v817 = vsel %vm666, %v251, 0.0
        %v818 = vadd.f32 %v816, %v817
        %v819 = vsel %vm666, %v259, 0.0
        %v820 = vadd.f32 %v818, %v819
        %v821 = vsel %vm666, %v267, 0.0
        %v822 = vadd.f32 %v820, %v821
        %v823 = vsel %vm666, %v275, 0.0
        %v824 = vadd.f32 %v822, %v823
        %v825 = vsel %vm666, %v283, 0.0
        %v826 = vadd.f32 %v824, %v825
        %v827 = vsel %vm666, %v291, 0.0
        %v828 = vadd.f32 %v826, %v827
        %v829 = vsel %vm666, %v299, 0.0
        %v830 = vadd.f32 %v828, %v829
        %v831 = vsel %vm666, %v307, 0.0
        %v832 = vadd.f32 %v830, %v831
        %v833 = vsel %vm666, %v315, 0.0
        %v834 = vadd.f32 %v832, %v833
        %v835 = vsel %vm666, %v323, 0.0
        %v836 = vadd.f32 %v834, %v835
        %v837 = vsel %vm666, %v331, 0.0
        %v838 = vadd.f32 %v836, %v837
        %v839 = vsel %vm666, %v339, 0.0
        %v840 = vadd.f32 %v838, %v839
        %v841 = vsel %vm666, %v347, 0.0
        %v842 = vadd.f32 %v840, %v841
        %v843 = vsel %vm666, %v355, 0.0
        %v844 = vadd.f32 %v842, %v843
        %v845 = vsel %vm666, %v363, 0.0
        %v846 = vadd.f32 %v844, %v845
        %v847 = vsel %vm666, %v371, 0.0
        %v848 = vadd.f32 %v846, %v847
        %v849 = vsel %vm666, %v379, 0.0
        %v850 = vadd.f32 %v848, %v849
        %v851 = vsel %vm666, %v387, 0.0
        %v852 = vadd.f32 %v850, %v851
        %v853 = vsel %vm666, %v395, 0.0
        %v854 = vadd.f32 %v852, %v853
        %v855 = vsel %vm666, %v403, 0.0
        %v856 = vadd.f32 %v854, %v855
        %v857 = vsel %vm666, %v411, 0.0
        %v858 = vadd.f32 %v856, %v857
        %v859 = vsel %vm666, %v419, 0.0
        %v860 = vadd.f32 %v858, %v859
        %v861 = vsel %vm666, %v427, 0.0
        %v862 = vadd.f32 %v860, %v861
        %v863 = vsel %vm666, %v435, 0.0
        %v864 = vadd.f32 %v862, %v863
        %v865 = vsel %vm666, %v443, 0.0
        %v866 = vadd.f32 %v864, %v865
        %v867 = vsel %vm666, %v451, 0.0
        %v868 = vadd.f32 %v866, %v867
        %v869 = vsel %vm666, %v459, 0.0
        %v870 = vadd.f32 %v868, %v869
        %v871 = vsel %vm666, %v467, 0.0
        %v872 = vadd.f32 %v870, %v871
        %v873 = vsel %vm666, %v475, 0.0
        %v874 = vadd.f32 %v872, %v873
        %v875 = vsel %vm666, %v483, 0.0
        %v876 = vadd.f32 %v874, %v875
        %v877 = vsel %vm666, %v491, 0.0
        %v878 = vadd.f32 %v876, %v877
        %v879 = vsel %vm666, %v499, 0.0
        %v880 = vadd.f32 %v878, %v879
        %v881 = vsel %vm666, %v507, 0.0
        %v882 = vadd.f32 %v880, %v881
        %v883 = vsel %vm666, %v515, 0.0
        %v884 = vadd.f32 %v882, %v883
        %v885 = vsel %vm666, %v523, 0.0
        %v886 = vadd.f32 %v884, %v885
        %v887 = vsel %vm666, %v531, 0.0
        %v888 = vadd.f32 %v886, %v887
        %v889 = vsel %vm666, %v539, 0.0
        %v890 = vadd.f32 %v888, %v889
        %v891 = vsel %vm666, %v547, 0.0
        %v892 = vadd.f32 %v890, %v891
        %v893 = vsel %vm666, %v555, 0.0
        %v894 = vadd.f32 %v892, %v893
        %v895 = vsel %vm666, %v563, 0.0
        %v896 = vadd.f32 %v894, %v895
        %v897 = vsel %vm666, %v571, 0.0
        %v898 = vadd.f32 %v896, %v897
        %v899 = vsel %vm666, %v579, 0.0
        %v900 = vadd.f32 %v898, %v899
        %v901 = vsel %vm666, %v587, 0.0
        %v902 = vadd.f32 %v900, %v901
        %v903 = vsel %vm666, %v595, 0.0
        %v904 = vadd.f32 %v902, %v903
        %v905 = vsel %vm666, %v603, 0.0
        %v906 = vadd.f32 %v904, %v905
        %v907 = vsel %vm666, %v611, 0.0
        %v908 = vadd.f32 %v906, %v907
        %v909 = vsel %vm666, %v619, 0.0
        %v910 = vadd.f32 %v908, %v909
        %v911 = vsel %vm666, %v627, 0.0
        %v912 = vadd.f32 %v910, %v911
        %v913 = vsel %vm666, %v635, 0.0
        %v914 = vadd.f32 %v912, %v913
        %v915 = vsel %vm666, %v643, 0.0
        %v916 = vadd.f32 %v914, %v915
        %v917 = vsel %vm666, %v651, 0.0
        %v918 = vadd.f32 %v916, %v917
        %v919 = vsel %vm666, %v659, 0.0
        %v920 = vadd.f32 %v918, %v919
        %v921 = vsel %vm666, %v156, 0.0
        %v922 = vsel %vm666, %v164, 0.0
        %v923 = vadd.f32 %v921, %v922
        %v924 = vsel %vm666, %v172, 0.0
        %v925 = vadd.f32 %v923, %v924
        %v926 = vsel %vm666, %v180, 0.0
        %v927 = vadd.f32 %v925, %v926
        %v928 = vsel %vm666, %v188, 0.0
        %v929 = vadd.f32 %v927, %v928
        %v930 = vsel %vm666, %v196, 0.0
        %v931 = vadd.f32 %v929, %v930
        %v932 = vsel %vm666, %v204, 0.0
        %v933 = vadd.f32 %v931, %v932
        %v934 = vsel %vm666, %v212, 0.0
        %v935 = vadd.f32 %v933, %v934
        %v936 = vsel %vm666, %v220, 0.0
        %v937 = vadd.f32 %v935, %v936
        %v938 = vsel %vm666, %v228, 0.0
        %v939 = vadd.f32 %v937, %v938
        %v940 = vsel %vm666, %v236, 0.0
        %v941 = vadd.f32 %v939, %v940
        %v942 = vsel %vm666, %v244, 0.0
        %v943 = vadd.f32 %v941, %v942
        %v944 = vsel %vm666, %v252, 0.0
        %v945 = vadd.f32 %v943, %v944
        %v946 = vsel %vm666, %v260, 0.0
        %v947 = vadd.f32 %v945, %v946
        %v948 = vsel %vm666, %v268, 0.0
        %v949 = vadd.f32 %v947, %v948
        %v950 = vsel %vm666, %v276, 0.0
        %v951 = vadd.f32 %v949, %v950
        %v952 = vsel %vm666, %v284, 0.0
        %v953 = vadd.f32 %v951, %v952
        %v954 = vsel %vm666, %v292, 0.0
        %v955 = vadd.f32 %v953, %v954
        %v956 = vsel %vm666, %v300, 0.0
        %v957 = vadd.f32 %v955, %v956
        %v958 = vsel %vm666, %v308, 0.0
        %v959 = vadd.f32 %v957, %v958
        %v960 = vsel %vm666, %v316, 0.0
        %v961 = vadd.f32 %v959, %v960
        %v962 = vsel %vm666, %v324, 0.0
        %v963 = vadd.f32 %v961, %v962
        %v964 = vsel %vm666, %v332, 0.0
        %v965 = vadd.f32 %v963, %v964
        %v966 = vsel %vm666, %v340, 0.0
        %v967 = vadd.f32 %v965, %v966
        %v968 = vsel %vm666, %v348, 0.0
        %v969 = vadd.f32 %v967, %v968
        %v970 = vsel %vm666, %v356, 0.0
        %v971 = vadd.f32 %v969, %v970
        %v972 = vsel %vm666, %v364, 0.0
        %v973 = vadd.f32 %v971, %v972
        %v974 = vsel %vm666, %v372, 0.0
        %v975 = vadd.f32 %v973, %v974
        %v976 = vsel %vm666, %v380, 0.0
        %v977 = vadd.f32 %v975, %v976
        %v978 = vsel %vm666, %v388, 0.0
        %v979 = vadd.f32 %v977, %v978
        %v980 = vsel %vm666, %v396, 0.0
        %v981 = vadd.f32 %v979, %v980
        %v982 = vsel %vm666, %v404, 0.0
        %v983 = vadd.f32 %v981, %v982
        %v984 = vsel %vm666, %v412, 0.0
        %v985 = vadd.f32 %v983, %v984
        %v986 = vsel %vm666, %v420, 0.0
        %v987 = vadd.f32 %v985, %v986
        %v988 = vsel %vm666, %v428, 0.0
        %v989 = vadd.f32 %v987, %v988
        %v990 = vsel %vm666, %v436, 0.0
        %v991 = vadd.f32 %v989, %v990
        %v992 = vsel %vm666, %v444, 0.0
        %v993 = vadd.f32 %v991, %v992
        %v994 = vsel %vm666, %v452, 0.0
        %v995 = vadd.f32 %v993, %v994
        %v996 = vsel %vm666, %v460, 0.0
        %v997 = vadd.f32 %v995, %v996
        %v998 = vsel %vm666, %v468, 0.0
        %v999 = vadd.f32 %v997, %v998
        %v1000 = vsel %vm666, %v476, 0.0
        %v1001 = vadd.f32 %v999, %v1000
        %v1002 = vsel %vm666, %v484, 0.0
        %v1003 = vadd.f32 %v1001, %v1002
        %v1004 = vsel %vm666, %v492, 0.0
        %v1005 = vadd.f32 %v1003, %v1004
        %v1006 = vsel %vm666, %v500, 0.0
        %v1007 = vadd.f32 %v1005, %v1006
        %v1008 = vsel %vm666, %v508, 0.0
        %v1009 = vadd.f32 %v1007, %v1008
        %v1010 = vsel %vm666, %v516, 0.0
        %v1011 = vadd.f32 %v1009, %v1010
        %v1012 = vsel %vm666, %v524, 0.0
        %v1013 = vadd.f32 %v1011, %v1012
        %v1014 = vsel %vm666, %v532, 0.0
        %v1015 = vadd.f32 %v1013, %v1014
        %v1016 = vsel %vm666, %v540, 0.0
        %v1017 = vadd.f32 %v1015, %v1016
        %v1018 = vsel %vm666, %v548, 0.0
        %v1019 = vadd.f32 %v1017, %v1018
        %v1020 = vsel %vm666, %v556, 0.0
        %v1021 = vadd.f32 %v1019, %v1020
        %v1022 = vsel %vm666, %v564, 0.0
        %v1023 = vadd.f32 %v1021, %v1022
        %v1024 = vsel %vm666, %v572, 0.0
        %v1025 = vadd.f32 %v1023, %v1024
        %v1026 = vsel %vm666, %v580, 0.0
        %v1027 = vadd.f32 %v1025, %v1026
        %v1028 = vsel %vm666, %v588, 0.0
        %v1029 = vadd.f32 %v1027, %v1028
        %v1030 = vsel %vm666, %v596, 0.0
        %v1031 = vadd.f32 %v1029, %v1030
        %v1032 = vsel %vm666, %v604, 0.0
        %v1033 = vadd.f32 %v1031, %v1032
        %v1034 = vsel %vm666, %v612, 0.0
        %v1035 = vadd.f32 %v1033, %v1034
        %v1036 = vsel %vm666, %v620, 0.0
        %v1037 = vadd.f32 %v1035, %v1036
        %v1038 = vsel %vm666, %v628, 0.0
        %v1039 = vadd.f32 %v1037, %v1038
        %v1040 = vsel %vm666, %v636, 0.0
        %v1041 = vadd.f32 %v1039, %v1040
        %v1042 = vsel %vm666, %v644, 0.0
        %v1043 = vadd.f32 %v1041, %v1042
        %v1044 = vsel %vm666, %v652, 0.0
        %v1045 = vadd.f32 %v1043, %v1044
        %v1046 = vsel %vm666, %v660, 0.0
        %v1047 = vadd.f32 %v1045, %v1046
        %v1048 = vsel %vm666, %v157, 0.0
        %v1049 = vsel %vm666, %v165, 0.0
        %v1050 = vadd.f32 %v1048, %v1049
        %v1051 = vsel %vm666, %v173, 0.0
        %v1052 = vadd.f32 %v1050, %v1051
        %v1053 = vsel %vm666, %v181, 0.0
        %v1054 = vadd.f32 %v1052, %v1053
        %v1055 = vsel %vm666, %v189, 0.0
        %v1056 = vadd.f32 %v1054, %v1055
        %v1057 = vsel %vm666, %v197, 0.0
        %v1058 = vadd.f32 %v1056, %v1057
        %v1059 = vsel %vm666, %v205, 0.0
        %v1060 = vadd.f32 %v1058, %v1059
        %v1061 = vsel %vm666, %v213, 0.0
        %v1062 = vadd.f32 %v1060, %v1061
        %v1063 = vsel %vm666, %v221, 0.0
        %v1064 = vadd.f32 %v1062, %v1063
        %v1065 = vsel %vm666, %v229, 0.0
        %v1066 = vadd.f32 %v1064, %v1065
        %v1067 = vsel %vm666, %v237, 0.0
        %v1068 = vadd.f32 %v1066, %v1067
        %v1069 = vsel %vm666, %v245, 0.0
        %v1070 = vadd.f32 %v1068, %v1069
        %v1071 = vsel %vm666, %v253, 0.0
        %v1072 = vadd.f32 %v1070, %v1071
        %v1073 = vsel %vm666, %v261, 0.0
        %v1074 = vadd.f32 %v1072, %v1073
        %v1075 = vsel %vm666, %v269, 0.0
        %v1076 = vadd.f32 %v1074, %v1075
        %v1077 = vsel %vm666, %v277, 0.0
        %v1078 = vadd.f32 %v1076, %v1077
        %v1079 = vsel %vm666, %v285, 0.0
        %v1080 = vadd.f32 %v1078, %v1079
        %v1081 = vsel %vm666, %v293, 0.0
        %v1082 = vadd.f32 %v1080, %v1081
        %v1083 = vsel %vm666, %v301, 0.0
        %v1084 = vadd.f32 %v1082, %v1083
        %v1085 = vsel %vm666, %v309, 0.0
        %v1086 = vadd.f32 %v1084, %v1085
        %v1087 = vsel %vm666, %v317, 0.0
        %v1088 = vadd.f32 %v1086, %v1087
        %v1089 = vsel %vm666, %v325, 0.0
        %v1090 = vadd.f32 %v1088, %v1089
        %v1091 = vsel %vm666, %v333, 0.0
        %v1092 = vadd.f32 %v1090, %v1091
        %v1093 = vsel %vm666, %v341, 0.0
        %v1094 = vadd.f32 %v1092, %v1093
        %v1095 = vsel %vm666, %v349, 0.0
        %v1096 = vadd.f32 %v1094, %v1095
        %v1097 = vsel %vm666, %v357, 0.0
        %v1098 = vadd.f32 %v1096, %v1097
        %v1099 = vsel %vm666, %v365, 0.0
        %v1100 = vadd.f32 %v1098, %v1099
        %v1101 = vsel %vm666, %v373, 0.0
        %v1102 = vadd.f32 %v1100, %v1101
        %v1103 = vsel %vm666, %v381, 0.0
        %v1104 = vadd.f32 %v1102, %v1103
        %v1105 = vsel %vm666, %v389, 0.0
        %v1106 = vadd.f32 %v1104, %v1105
        %v1107 = vsel %vm666, %v397, 0.0
        %v1108 = vadd.f32 %v1106, %v1107
        %v1109 = vsel %vm666, %v405, 0.0
        %v1110 = vadd.f32 %v1108, %v1109
        %v1111 = vsel %vm666, %v413, 0.0
        %v1112 = vadd.f32 %v1110, %v1111
        %v1113 = vsel %vm666, %v421, 0.0
        %v1114 = vadd.f32 %v1112, %v1113
        %v1115 = vsel %vm666, %v429, 0.0
        %v1116 = vadd.f32 %v1114, %v1115
        %v1117 = vsel %vm666, %v437, 0.0
        %v1118 = vadd.f32 %v1116, %v1117
        %v1119 = vsel %vm666, %v445, 0.0
        %v1120 = vadd.f32 %v1118, %v1119
        %v1121 = vsel %vm666, %v453, 0.0
        %v1122 = vadd.f32 %v1120, %v1121
        %v1123 = vsel %vm666, %v461, 0.0
        %v1124 = vadd.f32 %v1122, %v1123
        %v1125 = vsel %vm666, %v469, 0.0
        %v1126 = vadd.f32 %v1124, %v1125
        %v1127 = vsel %vm666, %v477, 0.0
        %v1128 = vadd.f32 %v1126, %v1127
        %v1129 = vsel %vm666, %v485, 0.0
        %v1130 = vadd.f32 %v1128, %v1129
        %v1131 = vsel %vm666, %v493, 0.0
        %v1132 = vadd.f32 %v1130, %v1131
        %v1133 = vsel %vm666, %v501, 0.0
        %v1134 = vadd.f32 %v1132, %v1133
        %v1135 = vsel %vm666, %v509, 0.0
        %v1136 = vadd.f32 %v1134, %v1135
        %v1137 = vsel %vm666, %v517, 0.0
        %v1138 = vadd.f32 %v1136, %v1137
        %v1139 = vsel %vm666, %v525, 0.0
        %v1140 = vadd.f32 %v1138, %v1139
        %v1141 = vsel %vm666, %v533, 0.0
        %v1142 = vadd.f32 %v1140, %v1141
        %v1143 = vsel %vm666, %v541, 0.0
        %v1144 = vadd.f32 %v1142, %v1143
        %v1145 = vsel %vm666, %v549, 0.0
        %v1146 = vadd.f32 %v1144, %v1145
        %v1147 = vsel %vm666, %v557, 0.0
        %v1148 = vadd.f32 %v1146, %v1147
        %v1149 = vsel %vm666, %v565, 0.0
        %v1150 = vadd.f32 %v1148, %v1149
        %v1151 = vsel %vm666, %v573, 0.0
        %v1152 = vadd.f32 %v1150, %v1151
        %v1153 = vsel %vm666, %v581, 0.0
        %v1154 = vadd.f32 %v1152, %v1153
        %v1155 = vsel %vm666, %v589, 0.0
        %v1156 = vadd.f32 %v1154, %v1155
        %v1157 = vsel %vm666, %v597, 0.0
        %v1158 = vadd.f32 %v1156, %v1157
        %v1159 = vsel %vm666, %v605, 0.0
        %v1160 = vadd.f32 %v1158, %v1159
        %v1161 = vsel %vm666, %v613, 0.0
        %v1162 = vadd.f32 %v1160, %v1161
        %v1163 = vsel %vm666, %v621, 0.0
        %v1164 = vadd.f32 %v1162, %v1163
        %v1165 = vsel %vm666, %v629, 0.0
        %v1166 = vadd.f32 %v1164, %v1165
        %v1167 = vsel %vm666, %v637, 0.0
        %v1168 = vadd.f32 %v1166, %v1167
        %v1169 = vsel %vm666, %v645, 0.0
        %v1170 = vadd.f32 %v1168, %v1169
        %v1171 = vsel %vm666, %v653, 0.0
        %v1172 = vadd.f32 %v1170, %v1171
        %v1173 = vsel %vm666, %v661, 0.0
        %v1174 = vadd.f32 %v1172, %v1173
        %v1175 = vsel %vm666, %v158, 0.0
        %v1176 = vsel %vm666, %v166, 0.0
        %v1177 = vadd.f32 %v1175, %v1176
        %v1178 = vsel %vm666, %v174, 0.0
        %v1179 = vadd.f32 %v1177, %v1178
        %v1180 = vsel %vm666, %v182, 0.0
        %v1181 = vadd.f32 %v1179, %v1180
        %v1182 = vsel %vm666, %v190, 0.0
        %v1183 = vadd.f32 %v1181, %v1182
        %v1184 = vsel %vm666, %v198, 0.0
        %v1185 = vadd.f32 %v1183, %v1184
        %v1186 = vsel %vm666, %v206, 0.0
        %v1187 = vadd.f32 %v1185, %v1186
        %v1188 = vsel %vm666, %v214, 0.0
        %v1189 = vadd.f32 %v1187, %v1188
        %v1190 = vsel %vm666, %v222, 0.0
        %v1191 = vadd.f32 %v1189, %v1190
        %v1192 = vsel %vm666, %v230, 0.0
        %v1193 = vadd.f32 %v1191, %v1192
        %v1194 = vsel %vm666, %v238, 0.0
        %v1195 = vadd.f32 %v1193, %v1194
        %v1196 = vsel %vm666, %v246, 0.0
        %v1197 = vadd.f32 %v1195, %v1196
        %v1198 = vsel %vm666, %v254, 0.0
        %v1199 = vadd.f32 %v1197, %v1198
        %v1200 = vsel %vm666, %v262, 0.0
        %v1201 = vadd.f32 %v1199, %v1200
        %v1202 = vsel %vm666, %v270, 0.0
        %v1203 = vadd.f32 %v1201, %v1202
        %v1204 = vsel %vm666, %v278, 0.0
        %v1205 = vadd.f32 %v1203, %v1204
        %v1206 = vsel %vm666, %v286, 0.0
        %v1207 = vadd.f32 %v1205, %v1206
        %v1208 = vsel %vm666, %v294, 0.0
        %v1209 = vadd.f32 %v1207, %v1208
        %v1210 = vsel %vm666, %v302, 0.0
        %v1211 = vadd.f32 %v1209, %v1210
        %v1212 = vsel %vm666, %v310, 0.0
        %v1213 = vadd.f32 %v1211, %v1212
        %v1214 = vsel %vm666, %v318, 0.0
        %v1215 = vadd.f32 %v1213, %v1214
        %v1216 = vsel %vm666, %v326, 0.0
        %v1217 = vadd.f32 %v1215, %v1216
        %v1218 = vsel %vm666, %v334, 0.0
        %v1219 = vadd.f32 %v1217, %v1218
        %v1220 = vsel %vm666, %v342, 0.0
        %v1221 = vadd.f32 %v1219, %v1220
        %v1222 = vsel %vm666, %v350, 0.0
        %v1223 = vadd.f32 %v1221, %v1222
        %v1224 = vsel %vm666, %v358, 0.0
        %v1225 = vadd.f32 %v1223, %v1224
        %v1226 = vsel %vm666, %v366, 0.0
        %v1227 = vadd.f32 %v1225, %v1226
        %v1228 = vsel %vm666, %v374, 0.0
        %v1229 = vadd.f32 %v1227, %v1228
        %v1230 = vsel %vm666, %v382, 0.0
        %v1231 = vadd.f32 %v1229, %v1230
        %v1232 = vsel %vm666, %v390, 0.0
        %v1233 = vadd.f32 %v1231, %v1232
        %v1234 = vsel %vm666, %v398, 0.0
        %v1235 = vadd.f32 %v1233, %v1234
        %v1236 = vsel %vm666, %v406, 0.0
        %v1237 = vadd.f32 %v1235, %v1236
        %v1238 = vsel %vm666, %v414, 0.0
        %v1239 = vadd.f32 %v1237, %v1238
        %v1240 = vsel %vm666, %v422, 0.0
        %v1241 = vadd.f32 %v1239, %v1240
        %v1242 = vsel %vm666, %v430, 0.0
        %v1243 = vadd.f32 %v1241, %v1242
        %v1244 = vsel %vm666, %v438, 0.0
        %v1245 = vadd.f32 %v1243, %v1244
        %v1246 = vsel %vm666, %v446, 0.0
        %v1247 = vadd.f32 %v1245, %v1246
        %v1248 = vsel %vm666, %v454, 0.0
        %v1249 = vadd.f32 %v1247, %v1248
        %v1250 = vsel %vm666, %v462, 0.0
        %v1251 = vadd.f32 %v1249, %v1250
        %v1252 = vsel %vm666, %v470, 0.0
        %v1253 = vadd.f32 %v1251, %v1252
        %v1254 = vsel %vm666, %v478, 0.0
        %v1255 = vadd.f32 %v1253, %v1254
        %v1256 = vsel %vm666, %v486, 0.0
        %v1257 = vadd.f32 %v1255, %v1256
        %v1258 = vsel %vm666, %v494, 0.0
        %v1259 = vadd.f32 %v1257, %v1258
        %v1260 = vsel %vm666, %v502, 0.0
        %v1261 = vadd.f32 %v1259, %v1260
        %v1262 = vsel %vm666, %v510, 0.0
        %v1263 = vadd.f32 %v1261, %v1262
        %v1264 = vsel %vm666, %v518, 0.0
        %v1265 = vadd.f32 %v1263, %v1264
        %v1266 = vsel %vm666, %v526, 0.0
        %v1267 = vadd.f32 %v1265, %v1266
        %v1268 = vsel %vm666, %v534, 0.0
        %v1269 = vadd.f32 %v1267, %v1268
        %v1270 = vsel %vm666, %v542, 0.0
        %v1271 = vadd.f32 %v1269, %v1270
        %v1272 = vsel %vm666, %v550, 0.0
        %v1273 = vadd.f32 %v1271, %v1272
        %v1274 = vsel %vm666, %v558, 0.0
        %v1275 = vadd.f32 %v1273, %v1274
        %v1276 = vsel %vm666, %v566, 0.0
        %v1277 = vadd.f32 %v1275, %v1276
        %v1278 = vsel %vm666, %v574, 0.0
        %v1279 = vadd.f32 %v1277, %v1278
        %v1280 = vsel %vm666, %v582, 0.0
        %v1281 = vadd.f32 %v1279, %v1280
        %v1282 = vsel %vm666, %v590, 0.0
        %v1283 = vadd.f32 %v1281, %v1282
        %v1284 = vsel %vm666, %v598, 0.0
        %v1285 = vadd.f32 %v1283, %v1284
        %v1286 = vsel %vm666, %v606, 0.0
        %v1287 = vadd.f32 %v1285, %v1286
        %v1288 = vsel %vm666, %v614, 0.0
        %v1289 = vadd.f32 %v1287, %v1288
        %v1290 = vsel %vm666, %v622, 0.0
        %v1291 = vadd.f32 %v1289, %v1290
        %v1292 = vsel %vm666, %v630, 0.0
        %v1293 = vadd.f32 %v1291, %v1292
        %v1294 = vsel %vm666, %v638, 0.0
        %v1295 = vadd.f32 %v1293, %v1294
        %v1296 = vsel %vm666, %v646, 0.0
        %v1297 = vadd.f32 %v1295, %v1296
        %v1298 = vsel %vm666, %v654, 0.0
        %v1299 = vadd.f32 %v1297, %v1298
        %v1300 = vsel %vm666, %v662, 0.0
        %v1301 = vadd.f32 %v1299, %v1300
        %v1302 = vsel %vm666, %v159, 0.0
        %v1303 = vsel %vm666, %v167, 0.0
        %v1304 = vadd.f32 %v1302, %v1303
        %v1305 = vsel %vm666, %v175, 0.0
        %v1306 = vadd.f32 %v1304, %v1305
        %v1307 = vsel %vm666, %v183, 0.0
        %v1308 = vadd.f32 %v1306, %v1307
        %v1309 = vsel %vm666, %v191, 0.0
        %v1310 = vadd.f32 %v1308, %v1309
        %v1311 = vsel %vm666, %v199, 0.0
        %v1312 = vadd.f32 %v1310, %v1311
        %v1313 = vsel %vm666, %v207, 0.0
        %v1314 = vadd.f32 %v1312, %v1313
        %v1315 = vsel %vm666, %v215, 0.0
        %v1316 = vadd.f32 %v1314, %v1315
        %v1317 = vsel %vm666, %v223, 0.0
        %v1318 = vadd.f32 %v1316, %v1317
        %v1319 = vsel %vm666, %v231, 0.0
        %v1320 = vadd.f32 %v1318, %v1319
        %v1321 = vsel %vm666, %v239, 0.0
        %v1322 = vadd.f32 %v1320, %v1321
        %v1323 = vsel %vm666, %v247, 0.0
        %v1324 = vadd.f32 %v1322, %v1323
        %v1325 = vsel %vm666, %v255, 0.0
        %v1326 = vadd.f32 %v1324, %v1325
        %v1327 = vsel %vm666, %v263, 0.0
        %v1328 = vadd.f32 %v1326, %v1327
        %v1329 = vsel %vm666, %v271, 0.0
        %v1330 = vadd.f32 %v1328, %v1329
        %v1331 = vsel %vm666, %v279, 0.0
        %v1332 = vadd.f32 %v1330, %v1331
        %v1333 = vsel %vm666, %v287, 0.0
        %v1334 = vadd.f32 %v1332, %v1333
        %v1335 = vsel %vm666, %v295, 0.0
        %v1336 = vadd.f32 %v1334, %v1335
        %v1337 = vsel %vm666, %v303, 0.0
        %v1338 = vadd.f32 %v1336, %v1337
        %v1339 = vsel %vm666, %v311, 0.0
        %v1340 = vadd.f32 %v1338, %v1339
        %v1341 = vsel %vm666, %v319, 0.0
        %v1342 = vadd.f32 %v1340, %v1341
        %v1343 = vsel %vm666, %v327, 0.0
        %v1344 = vadd.f32 %v1342, %v1343
        %v1345 = vsel %vm666, %v335, 0.0
        %v1346 = vadd.f32 %v1344, %v1345
        %v1347 = vsel %vm666, %v343, 0.0
        %v1348 = vadd.f32 %v1346, %v1347
        %v1349 = vsel %vm666, %v351, 0.0
        %v1350 = vadd.f32 %v1348, %v1349
        %v1351 = vsel %vm666, %v359, 0.0
        %v1352 = vadd.f32 %v1350, %v1351
        %v1353 = vsel %vm666, %v367, 0.0
        %v1354 = vadd.f32 %v1352, %v1353
        %v1355 = vsel %vm666, %v375, 0.0
        %v1356 = vadd.f32 %v1354, %v1355
        %v1357 = vsel %vm666, %v383, 0.0
        %v1358 = vadd.f32 %v1356, %v1357
        %v1359 = vsel %vm666, %v391, 0.0
        %v1360 = vadd.f32 %v1358, %v1359
        %v1361 = vsel %vm666, %v399, 0.0
        %v1362 = vadd.f32 %v1360, %v1361
        %v1363 = vsel %vm666, %v407, 0.0
        %v1364 = vadd.f32 %v1362, %v1363
        %v1365 = vsel %vm666, %v415, 0.0
        %v1366 = vadd.f32 %v1364, %v1365
        %v1367 = vsel %vm666, %v423, 0.0
        %v1368 = vadd.f32 %v1366, %v1367
        %v1369 = vsel %vm666, %v431, 0.0
        %v1370 = vadd.f32 %v1368, %v1369
        %v1371 = vsel %vm666, %v439, 0.0
        %v1372 = vadd.f32 %v1370, %v1371
        %v1373 = vsel %vm666, %v447, 0.0
        %v1374 = vadd.f32 %v1372, %v1373
        %v1375 = vsel %vm666, %v455, 0.0
        %v1376 = vadd.f32 %v1374, %v1375
        %v1377 = vsel %vm666, %v463, 0.0
        %v1378 = vadd.f32 %v1376, %v1377
        %v1379 = vsel %vm666, %v471, 0.0
        %v1380 = vadd.f32 %v1378, %v1379
        %v1381 = vsel %vm666, %v479, 0.0
        %v1382 = vadd.f32 %v1380, %v1381
        %v1383 = vsel %vm666, %v487, 0.0
        %v1384 = vadd.f32 %v1382, %v1383
        %v1385 = vsel %vm666, %v495, 0.0
        %v1386 = vadd.f32 %v1384, %v1385
        %v1387 = vsel %vm666, %v503, 0.0
        %v1388 = vadd.f32 %v1386, %v1387
        %v1389 = vsel %vm666, %v511, 0.0
        %v1390 = vadd.f32 %v1388, %v1389
        %v1391 = vsel %vm666, %v519, 0.0
        %v1392 = vadd.f32 %v1390, %v1391
        %v1393 = vsel %vm666, %v527, 0.0
        %v1394 = vadd.f32 %v1392, %v1393
        %v1395 = vsel %vm666, %v535, 0.0
        %v1396 = vadd.f32 %v1394, %v1395
        %v1397 = vsel %vm666, %v543, 0.0
        %v1398 = vadd.f32 %v1396, %v1397
        %v1399 = vsel %vm666, %v551, 0.0
        %v1400 = vadd.f32 %v1398, %v1399
        %v1401 = vsel %vm666, %v559, 0.0
        %v1402 = vadd.f32 %v1400, %v1401
        %v1403 = vsel %vm666, %v567, 0.0
        %v1404 = vadd.f32 %v1402, %v1403
        %v1405 = vsel %vm666, %v575, 0.0
        %v1406 = vadd.f32 %v1404, %v1405
        %v1407 = vsel %vm666, %v583, 0.0
        %v1408 = vadd.f32 %v1406, %v1407
        %v1409 = vsel %vm666, %v591, 0.0
        %v1410 = vadd.f32 %v1408, %v1409
        %v1411 = vsel %vm666, %v599, 0.0
        %v1412 = vadd.f32 %v1410, %v1411
        %v1413 = vsel %vm666, %v607, 0.0
        %v1414 = vadd.f32 %v1412, %v1413
        %v1415 = vsel %vm666, %v615, 0.0
        %v1416 = vadd.f32 %v1414, %v1415
        %v1417 = vsel %vm666, %v623, 0.0
        %v1418 = vadd.f32 %v1416, %v1417
        %v1419 = vsel %vm666, %v631, 0.0
        %v1420 = vadd.f32 %v1418, %v1419
        %v1421 = vsel %vm666, %v639, 0.0
        %v1422 = vadd.f32 %v1420, %v1421
        %v1423 = vsel %vm666, %v647, 0.0
        %v1424 = vadd.f32 %v1422, %v1423
        %v1425 = vsel %vm666, %v655, 0.0
        %v1426 = vadd.f32 %v1424, %v1425
        %v1427 = vsel %vm666, %v663, 0.0
        %v1428 = vadd.f32 %v1426, %v1427
        %v1429 = vsel %vm666, %v160, 0.0
        %v1430 = vsel %vm666, %v168, 0.0
        %v1431 = vadd.f32 %v1429, %v1430
        %v1432 = vsel %vm666, %v176, 0.0
        %v1433 = vadd.f32 %v1431, %v1432
        %v1434 = vsel %vm666, %v184, 0.0
        %v1435 = vadd.f32 %v1433, %v1434
        %v1436 = vsel %vm666, %v192, 0.0
        %v1437 = vadd.f32 %v1435, %v1436
        %v1438 = vsel %vm666, %v200, 0.0
        %v1439 = vadd.f32 %v1437, %v1438
        %v1440 = vsel %vm666, %v208, 0.0
        %v1441 = vadd.f32 %v1439, %v1440
        %v1442 = vsel %vm666, %v216, 0.0
        %v1443 = vadd.f32 %v1441, %v1442
        %v1444 = vsel %vm666, %v224, 0.0
        %v1445 = vadd.f32 %v1443, %v1444
        %v1446 = vsel %vm666, %v232, 0.0
        %v1447 = vadd.f32 %v1445, %v1446
        %v1448 = vsel %vm666, %v240, 0.0
        %v1449 = vadd.f32 %v1447, %v1448
        %v1450 = vsel %vm666, %v248, 0.0
        %v1451 = vadd.f32 %v1449, %v1450
        %v1452 = vsel %vm666, %v256, 0.0
        %v1453 = vadd.f32 %v1451, %v1452
        %v1454 = vsel %vm666, %v264, 0.0
        %v1455 = vadd.f32 %v1453, %v1454
        %v1456 = vsel %vm666, %v272, 0.0
        %v1457 = vadd.f32 %v1455, %v1456
        %v1458 = vsel %vm666, %v280, 0.0
        %v1459 = vadd.f32 %v1457, %v1458
        %v1460 = vsel %vm666, %v288, 0.0
        %v1461 = vadd.f32 %v1459, %v1460
        %v1462 = vsel %vm666, %v296, 0.0
        %v1463 = vadd.f32 %v1461, %v1462
        %v1464 = vsel %vm666, %v304, 0.0
        %v1465 = vadd.f32 %v1463, %v1464
        %v1466 = vsel %vm666, %v312, 0.0
        %v1467 = vadd.f32 %v1465, %v1466
        %v1468 = vsel %vm666, %v320, 0.0
        %v1469 = vadd.f32 %v1467, %v1468
        %v1470 = vsel %vm666, %v328, 0.0
        %v1471 = vadd.f32 %v1469, %v1470
        %v1472 = vsel %vm666, %v336, 0.0
        %v1473 = vadd.f32 %v1471, %v1472
        %v1474 = vsel %vm666, %v344, 0.0
        %v1475 = vadd.f32 %v1473, %v1474
        %v1476 = vsel %vm666, %v352, 0.0
        %v1477 = vadd.f32 %v1475, %v1476
        %v1478 = vsel %vm666, %v360, 0.0
        %v1479 = vadd.f32 %v1477, %v1478
        %v1480 = vsel %vm666, %v368, 0.0
        %v1481 = vadd.f32 %v1479, %v1480
        %v1482 = vsel %vm666, %v376, 0.0
        %v1483 = vadd.f32 %v1481, %v1482
        %v1484 = vsel %vm666, %v384, 0.0
        %v1485 = vadd.f32 %v1483, %v1484
        %v1486 = vsel %vm666, %v392, 0.0
        %v1487 = vadd.f32 %v1485, %v1486
        %v1488 = vsel %vm666, %v400, 0.0
        %v1489 = vadd.f32 %v1487, %v1488
        %v1490 = vsel %vm666, %v408, 0.0
        %v1491 = vadd.f32 %v1489, %v1490
        %v1492 = vsel %vm666, %v416, 0.0
        %v1493 = vadd.f32 %v1491, %v1492
        %v1494 = vsel %vm666, %v424, 0.0
        %v1495 = vadd.f32 %v1493, %v1494
        %v1496 = vsel %vm666, %v432, 0.0
        %v1497 = vadd.f32 %v1495, %v1496
        %v1498 = vsel %vm666, %v440, 0.0
        %v1499 = vadd.f32 %v1497, %v1498
        %v1500 = vsel %vm666, %v448, 0.0
        %v1501 = vadd.f32 %v1499, %v1500
        %v1502 = vsel %vm666, %v456, 0.0
        %v1503 = vadd.f32 %v1501, %v1502
        %v1504 = vsel %vm666, %v464, 0.0
        %v1505 = vadd.f32 %v1503, %v1504
        %v1506 = vsel %vm666, %v472, 0.0
        %v1507 = vadd.f32 %v1505, %v1506
        %v1508 = vsel %vm666, %v480, 0.0
        %v1509 = vadd.f32 %v1507, %v1508
        %v1510 = vsel %vm666, %v488, 0.0
        %v1511 = vadd.f32 %v1509, %v1510
        %v1512 = vsel %vm666, %v496, 0.0
        %v1513 = vadd.f32 %v1511, %v1512
        %v1514 = vsel %vm666, %v504, 0.0
        %v1515 = vadd.f32 %v1513, %v1514
        %v1516 = vsel %vm666, %v512, 0.0
        %v1517 = vadd.f32 %v1515, %v1516
        %v1518 = vsel %vm666, %v520, 0.0
        %v1519 = vadd.f32 %v1517, %v1518
        %v1520 = vsel %vm666, %v528, 0.0
        %v1521 = vadd.f32 %v1519, %v1520
        %v1522 = vsel %vm666, %v536, 0.0
        %v1523 = vadd.f32 %v1521, %v1522
        %v1524 = vsel %vm666, %v544, 0.0
        %v1525 = vadd.f32 %v1523, %v1524
        %v1526 = vsel %vm666, %v552, 0.0
        %v1527 = vadd.f32 %v1525, %v1526
        %v1528 = vsel %vm666, %v560, 0.0
        %v1529 = vadd.f32 %v1527, %v1528
        %v1530 = vsel %vm666, %v568, 0.0
        %v1531 = vadd.f32 %v1529, %v1530
        %v1532 = vsel %vm666, %v576, 0.0
        %v1533 = vadd.f32 %v1531, %v1532
        %v1534 = vsel %vm666, %v584, 0.0
        %v1535 = vadd.f32 %v1533, %v1534
        %v1536 = vsel %vm666, %v592, 0.0
        %v1537 = vadd.f32 %v1535, %v1536
        %v1538 = vsel %vm666, %v600, 0.0
        %v1539 = vadd.f32 %v1537, %v1538
        %v1540 = vsel %vm666, %v608, 0.0
        %v1541 = vadd.f32 %v1539, %v1540
        %v1542 = vsel %vm666, %v616, 0.0
        %v1543 = vadd.f32 %v1541, %v1542
        %v1544 = vsel %vm666, %v624, 0.0
        %v1545 = vadd.f32 %v1543, %v1544
        %v1546 = vsel %vm666, %v632, 0.0
        %v1547 = vadd.f32 %v1545, %v1546
        %v1548 = vsel %vm666, %v640, 0.0
        %v1549 = vadd.f32 %v1547, %v1548
        %v1550 = vsel %vm666, %v648, 0.0
        %v1551 = vadd.f32 %v1549, %v1550
        %v1552 = vsel %vm666, %v656, 0.0
        %v1553 = vadd.f32 %v1551, %v1552
        %v1554 = vsel %vm666, %v664, 0.0
        %v1555 = vadd.f32 %v1553, %v1554
        %v1556 = vsel %vm666, %v161, 0.0
        %v1557 = vsel %vm666, %v169, 0.0
        %v1558 = vadd.f32 %v1556, %v1557
        %v1559 = vsel %vm666, %v177, 0.0
        %v1560 = vadd.f32 %v1558, %v1559
        %v1561 = vsel %vm666, %v185, 0.0
        %v1562 = vadd.f32 %v1560, %v1561
        %v1563 = vsel %vm666, %v193, 0.0
        %v1564 = vadd.f32 %v1562, %v1563
        %v1565 = vsel %vm666, %v201, 0.0
        %v1566 = vadd.f32 %v1564, %v1565
        %v1567 = vsel %vm666, %v209, 0.0
        %v1568 = vadd.f32 %v1566, %v1567
        %v1569 = vsel %vm666, %v217, 0.0
        %v1570 = vadd.f32 %v1568, %v1569
        %v1571 = vsel %vm666, %v225, 0.0
        %v1572 = vadd.f32 %v1570, %v1571
        %v1573 = vsel %vm666, %v233, 0.0
        %v1574 = vadd.f32 %v1572, %v1573
        %v1575 = vsel %vm666, %v241, 0.0
        %v1576 = vadd.f32 %v1574, %v1575
        %v1577 = vsel %vm666, %v249, 0.0
        %v1578 = vadd.f32 %v1576, %v1577
        %v1579 = vsel %vm666, %v257, 0.0
        %v1580 = vadd.f32 %v1578, %v1579
        %v1581 = vsel %vm666, %v265, 0.0
        %v1582 = vadd.f32 %v1580, %v1581
        %v1583 = vsel %vm666, %v273, 0.0
        %v1584 = vadd.f32 %v1582, %v1583
        %v1585 = vsel %vm666, %v281, 0.0
        %v1586 = vadd.f32 %v1584, %v1585
        %v1587 = vsel %vm666, %v289, 0.0
        %v1588 = vadd.f32 %v1586, %v1587
        %v1589 = vsel %vm666, %v297, 0.0
        %v1590 = vadd.f32 %v1588, %v1589
        %v1591 = vsel %vm666, %v305, 0.0
        %v1592 = vadd.f32 %v1590, %v1591
        %v1593 = vsel %vm666, %v313, 0.0
        %v1594 = vadd.f32 %v1592, %v1593
        %v1595 = vsel %vm666, %v321, 0.0
        %v1596 = vadd.f32 %v1594, %v1595
        %v1597 = vsel %vm666, %v329, 0.0
        %v1598 = vadd.f32 %v1596, %v1597
        %v1599 = vsel %vm666, %v337, 0.0
        %v1600 = vadd.f32 %v1598, %v1599
        %v1601 = vsel %vm666, %v345, 0.0
        %v1602 = vadd.f32 %v1600, %v1601
        %v1603 = vsel %vm666, %v353, 0.0
        %v1604 = vadd.f32 %v1602, %v1603
        %v1605 = vsel %vm666, %v361, 0.0
        %v1606 = vadd.f32 %v1604, %v1605
        %v1607 = vsel %vm666, %v369, 0.0
        %v1608 = vadd.f32 %v1606, %v1607
        %v1609 = vsel %vm666, %v377, 0.0
        %v1610 = vadd.f32 %v1608, %v1609
        %v1611 = vsel %vm666, %v385, 0.0
        %v1612 = vadd.f32 %v1610, %v1611
        %v1613 = vsel %vm666, %v393, 0.0
        %v1614 = vadd.f32 %v1612, %v1613
        %v1615 = vsel %vm666, %v401, 0.0
        %v1616 = vadd.f32 %v1614, %v1615
        %v1617 = vsel %vm666, %v409, 0.0
        %v1618 = vadd.f32 %v1616, %v1617
        %v1619 = vsel %vm666, %v417, 0.0
        %v1620 = vadd.f32 %v1618, %v1619
        %v1621 = vsel %vm666, %v425, 0.0
        %v1622 = vadd.f32 %v1620, %v1621
        %v1623 = vsel %vm666, %v433, 0.0
        %v1624 = vadd.f32 %v1622, %v1623
        %v1625 = vsel %vm666, %v441, 0.0
        %v1626 = vadd.f32 %v1624, %v1625
        %v1627 = vsel %vm666, %v449, 0.0
        %v1628 = vadd.f32 %v1626, %v1627
        %v1629 = vsel %vm666, %v457, 0.0
        %v1630 = vadd.f32 %v1628, %v1629
        %v1631 = vsel %vm666, %v465, 0.0
        %v1632 = vadd.f32 %v1630, %v1631
        %v1633 = vsel %vm666, %v473, 0.0
        %v1634 = vadd.f32 %v1632, %v1633
        %v1635 = vsel %vm666, %v481, 0.0
        %v1636 = vadd.f32 %v1634, %v1635
        %v1637 = vsel %vm666, %v489, 0.0
        %v1638 = vadd.f32 %v1636, %v1637
        %v1639 = vsel %vm666, %v497, 0.0
        %v1640 = vadd.f32 %v1638, %v1639
        %v1641 = vsel %vm666, %v505, 0.0
        %v1642 = vadd.f32 %v1640, %v1641
        %v1643 = vsel %vm666, %v513, 0.0
        %v1644 = vadd.f32 %v1642, %v1643
        %v1645 = vsel %vm666, %v521, 0.0
        %v1646 = vadd.f32 %v1644, %v1645
        %v1647 = vsel %vm666, %v529, 0.0
        %v1648 = vadd.f32 %v1646, %v1647
        %v1649 = vsel %vm666, %v537, 0.0
        %v1650 = vadd.f32 %v1648, %v1649
        %v1651 = vsel %vm666, %v545, 0.0
        %v1652 = vadd.f32 %v1650, %v1651
        %v1653 = vsel %vm666, %v553, 0.0
        %v1654 = vadd.f32 %v1652, %v1653
        %v1655 = vsel %vm666, %v561, 0.0
        %v1656 = vadd.f32 %v1654, %v1655
        %v1657 = vsel %vm666, %v569, 0.0
        %v1658 = vadd.f32 %v1656, %v1657
        %v1659 = vsel %vm666, %v577, 0.0
        %v1660 = vadd.f32 %v1658, %v1659
        %v1661 = vsel %vm666, %v585, 0.0
        %v1662 = vadd.f32 %v1660, %v1661
        %v1663 = vsel %vm666, %v593, 0.0
        %v1664 = vadd.f32 %v1662, %v1663
        %v1665 = vsel %vm666, %v601, 0.0
        %v1666 = vadd.f32 %v1664, %v1665
        %v1667 = vsel %vm666, %v609, 0.0
        %v1668 = vadd.f32 %v1666, %v1667
        %v1669 = vsel %vm666, %v617, 0.0
        %v1670 = vadd.f32 %v1668, %v1669
        %v1671 = vsel %vm666, %v625, 0.0
        %v1672 = vadd.f32 %v1670, %v1671
        %v1673 = vsel %vm666, %v633, 0.0
        %v1674 = vadd.f32 %v1672, %v1673
        %v1675 = vsel %vm666, %v641, 0.0
        %v1676 = vadd.f32 %v1674, %v1675
        %v1677 = vsel %vm666, %v649, 0.0
        %v1678 = vadd.f32 %v1676, %v1677
        %v1679 = vsel %vm666, %v657, 0.0
        %v1680 = vadd.f32 %v1678, %v1679
        %v1681 = vsel %vm666, %v665, 0.0
        %v1682 = vadd.f32 %v1680, %v1681
        %v1683 = vsel %vm666, %v793, 0.0
        %v1684 = vsel %vm666, %v920, 0.0
        %v1685 = vadd.f32 %v1683, %v1684
        %v1686 = vsel %vm666, %v1047, 0.0
        %v1687 = vadd.f32 %v1685, %v1686
        %v1688 = vsel %vm666, %v1174, 0.0
        %v1689 = vadd.f32 %v1687, %v1688
        %v1690 = vsel %vm666, %v1301, 0.0
        %v1691 = vadd.f32 %v1689, %v1690
        %v1692 = vsel %vm666, %v1428, 0.0
        %v1693 = vadd.f32 %v1691, %v1692
        %v1694 = vsel %vm666, %v1555, 0.0
        %v1695 = vadd.f32 %v1693, %v1694
        %v1696 = vsel %vm666, %v1682, 0.0
        %v1697 = vadd.f32 %v1695, %v1696
        %v1698 = vrot.slane %v1697, 4
        %v1699 = vadd.f32 %v1697, %v1698
        %v1700 = vrot.slane %v1699, 2
        %v1701 = vadd.f32 %v1699, %v1700
        %v1702 = vrot.slane %v1701, 1
        %v1703 = vadd.f32 %v1701, %v1702
        %v1704 = vrcp.pop 4096.0
        %v1705 = vmul.f32 %v1703, %v1704
        %v1706 = vsub.f32 %v154, %v1705
        %v1707 = vsub.f32 %v155, %v1705
        %v1708 = vsub.f32 %v156, %v1705
        %v1709 = vsub.f32 %v157, %v1705
        %v1710 = vsub.f32 %v158, %v1705
        %v1711 = vsub.f32 %v159, %v1705
        %v1712 = vsub.f32 %v160, %v1705
        %v1713 = vsub.f32 %v161, %v1705
        %v1714 = vsub.f32 %v162, %v1705
        %v1715 = vsub.f32 %v163, %v1705
        %v1716 = vsub.f32 %v164, %v1705
        %v1717 = vsub.f32 %v165, %v1705
        %v1718 = vsub.f32 %v166, %v1705
        %v1719 = vsub.f32 %v167, %v1705
        %v1720 = vsub.f32 %v168, %v1705
        %v1721 = vsub.f32 %v169, %v1705
        %v1722 = vsub.f32 %v170, %v1705
        %v1723 = vsub.f32 %v171, %v1705
        %v1724 = vsub.f32 %v172, %v1705
        %v1725 = vsub.f32 %v173, %v1705
        %v1726 = vsub.f32 %v174, %v1705
        %v1727 = vsub.f32 %v175, %v1705
        %v1728 = vsub.f32 %v176, %v1705
        %v1729 = vsub.f32 %v177, %v1705
        %v1730 = vsub.f32 %v178, %v1705
        %v1731 = vsub.f32 %v179, %v1705
        %v1732 = vsub.f32 %v180, %v1705
        %v1733 = vsub.f32 %v181, %v1705
        %v1734 = vsub.f32 %v182, %v1705
        %v1735 = vsub.f32 %v183, %v1705
        %v1736 = vsub.f32 %v184, %v1705
        %v1737 = vsub.f32 %v185, %v1705
        %v1738 = vsub.f32 %v186, %v1705
        %v1739 = vsub.f32 %v187, %v1705
        %v1740 = vsub.f32 %v188, %v1705
        %v1741 = vsub.f32 %v189, %v1705
        %v1742 = vsub.f32 %v190, %v1705
        %v1743 = vsub.f32 %v191, %v1705
        %v1744 = vsub.f32 %v192, %v1705
        %v1745 = vsub.f32 %v193, %v1705
        %v1746 = vsub.f32 %v194, %v1705
        %v1747 = vsub.f32 %v195, %v1705
        %v1748 = vsub.f32 %v196, %v1705
        %v1749 = vsub.f32 %v197, %v1705
        %v1750 = vsub.f32 %v198, %v1705
        %v1751 = vsub.f32 %v199, %v1705
        %v1752 = vsub.f32 %v200, %v1705
        %v1753 = vsub.f32 %v201, %v1705
        %v1754 = vsub.f32 %v202, %v1705
        %v1755 = vsub.f32 %v203, %v1705
        %v1756 = vsub.f32 %v204, %v1705
        %v1757 = vsub.f32 %v205, %v1705
        %v1758 = vsub.f32 %v206, %v1705
        %v1759 = vsub.f32 %v207, %v1705
        %v1760 = vsub.f32 %v208, %v1705
        %v1761 = vsub.f32 %v209, %v1705
        %v1762 = vsub.f32 %v210, %v1705
        %v1763 = vsub.f32 %v211, %v1705
        %v1764 = vsub.f32 %v212, %v1705
        %v1765 = vsub.f32 %v213, %v1705
        %v1766 = vsub.f32 %v214, %v1705
        %v1767 = vsub.f32 %v215, %v1705
        %v1768 = vsub.f32 %v216, %v1705
        %v1769 = vsub.f32 %v217, %v1705
        %v1770 = vsub.f32 %v218, %v1705
        %v1771 = vsub.f32 %v219, %v1705
        %v1772 = vsub.f32 %v220, %v1705
        %v1773 = vsub.f32 %v221, %v1705
        %v1774 = vsub.f32 %v222, %v1705
        %v1775 = vsub.f32 %v223, %v1705
        %v1776 = vsub.f32 %v224, %v1705
        %v1777 = vsub.f32 %v225, %v1705
        %v1778 = vsub.f32 %v226, %v1705
        %v1779 = vsub.f32 %v227, %v1705
        %v1780 = vsub.f32 %v228, %v1705
        %v1781 = vsub.f32 %v229, %v1705
        %v1782 = vsub.f32 %v230, %v1705
        %v1783 = vsub.f32 %v231, %v1705
        %v1784 = vsub.f32 %v232, %v1705
        %v1785 = vsub.f32 %v233, %v1705
        %v1786 = vsub.f32 %v234, %v1705
        %v1787 = vsub.f32 %v235, %v1705
        %v1788 = vsub.f32 %v236, %v1705
        %v1789 = vsub.f32 %v237, %v1705
        %v1790 = vsub.f32 %v238, %v1705
        %v1791 = vsub.f32 %v239, %v1705
        %v1792 = vsub.f32 %v240, %v1705
        %v1793 = vsub.f32 %v241, %v1705
        %v1794 = vsub.f32 %v242, %v1705
        %v1795 = vsub.f32 %v243, %v1705
        %v1796 = vsub.f32 %v244, %v1705
        %v1797 = vsub.f32 %v245, %v1705
        %v1798 = vsub.f32 %v246, %v1705
        %v1799 = vsub.f32 %v247, %v1705
        %v1800 = vsub.f32 %v248, %v1705
        %v1801 = vsub.f32 %v249, %v1705
        %v1802 = vsub.f32 %v250, %v1705
        %v1803 = vsub.f32 %v251, %v1705
        %v1804 = vsub.f32 %v252, %v1705
        %v1805 = vsub.f32 %v253, %v1705
        %v1806 = vsub.f32 %v254, %v1705
        %v1807 = vsub.f32 %v255, %v1705
        %v1808 = vsub.f32 %v256, %v1705
        %v1809 = vsub.f32 %v257, %v1705
        %v1810 = vsub.f32 %v258, %v1705
        %v1811 = vsub.f32 %v259, %v1705
        %v1812 = vsub.f32 %v260, %v1705
        %v1813 = vsub.f32 %v261, %v1705
        %v1814 = vsub.f32 %v262, %v1705
        %v1815 = vsub.f32 %v263, %v1705
        %v1816 = vsub.f32 %v264, %v1705
        %v1817 = vsub.f32 %v265, %v1705
        %v1818 = vsub.f32 %v266, %v1705
        %v1819 = vsub.f32 %v267, %v1705
        %v1820 = vsub.f32 %v268, %v1705
        %v1821 = vsub.f32 %v269, %v1705
        %v1822 = vsub.f32 %v270, %v1705
        %v1823 = vsub.f32 %v271, %v1705
        %v1824 = vsub.f32 %v272, %v1705
        %v1825 = vsub.f32 %v273, %v1705
        %v1826 = vsub.f32 %v274, %v1705
        %v1827 = vsub.f32 %v275, %v1705
        %v1828 = vsub.f32 %v276, %v1705
        %v1829 = vsub.f32 %v277, %v1705
        %v1830 = vsub.f32 %v278, %v1705
        %v1831 = vsub.f32 %v279, %v1705
        %v1832 = vsub.f32 %v280, %v1705
        %v1833 = vsub.f32 %v281, %v1705
        %v1834 = vsub.f32 %v282, %v1705
        %v1835 = vsub.f32 %v283, %v1705
        %v1836 = vsub.f32 %v284, %v1705
        %v1837 = vsub.f32 %v285, %v1705
        %v1838 = vsub.f32 %v286, %v1705
        %v1839 = vsub.f32 %v287, %v1705
        %v1840 = vsub.f32 %v288, %v1705
        %v1841 = vsub.f32 %v289, %v1705
        %v1842 = vsub.f32 %v290, %v1705
        %v1843 = vsub.f32 %v291, %v1705
        %v1844 = vsub.f32 %v292, %v1705
        %v1845 = vsub.f32 %v293, %v1705
        %v1846 = vsub.f32 %v294, %v1705
        %v1847 = vsub.f32 %v295, %v1705
        %v1848 = vsub.f32 %v296, %v1705
        %v1849 = vsub.f32 %v297, %v1705
        %v1850 = vsub.f32 %v298, %v1705
        %v1851 = vsub.f32 %v299, %v1705
        %v1852 = vsub.f32 %v300, %v1705
        %v1853 = vsub.f32 %v301, %v1705
        %v1854 = vsub.f32 %v302, %v1705
        %v1855 = vsub.f32 %v303, %v1705
        %v1856 = vsub.f32 %v304, %v1705
        %v1857 = vsub.f32 %v305, %v1705
        %v1858 = vsub.f32 %v306, %v1705
        %v1859 = vsub.f32 %v307, %v1705
        %v1860 = vsub.f32 %v308, %v1705
        %v1861 = vsub.f32 %v309, %v1705
        %v1862 = vsub.f32 %v310, %v1705
        %v1863 = vsub.f32 %v311, %v1705
        %v1864 = vsub.f32 %v312, %v1705
        %v1865 = vsub.f32 %v313, %v1705
        %v1866 = vsub.f32 %v314, %v1705
        %v1867 = vsub.f32 %v315, %v1705
        %v1868 = vsub.f32 %v316, %v1705
        %v1869 = vsub.f32 %v317, %v1705
        %v1870 = vsub.f32 %v318, %v1705
        %v1871 = vsub.f32 %v319, %v1705
        %v1872 = vsub.f32 %v320, %v1705
        %v1873 = vsub.f32 %v321, %v1705
        %v1874 = vsub.f32 %v322, %v1705
        %v1875 = vsub.f32 %v323, %v1705
        %v1876 = vsub.f32 %v324, %v1705
        %v1877 = vsub.f32 %v325, %v1705
        %v1878 = vsub.f32 %v326, %v1705
        %v1879 = vsub.f32 %v327, %v1705
        %v1880 = vsub.f32 %v328, %v1705
        %v1881 = vsub.f32 %v329, %v1705
        %v1882 = vsub.f32 %v330, %v1705
        %v1883 = vsub.f32 %v331, %v1705
        %v1884 = vsub.f32 %v332, %v1705
        %v1885 = vsub.f32 %v333, %v1705
        %v1886 = vsub.f32 %v334, %v1705
        %v1887 = vsub.f32 %v335, %v1705
        %v1888 = vsub.f32 %v336, %v1705
        %v1889 = vsub.f32 %v337, %v1705
        %v1890 = vsub.f32 %v338, %v1705
        %v1891 = vsub.f32 %v339, %v1705
        %v1892 = vsub.f32 %v340, %v1705
        %v1893 = vsub.f32 %v341, %v1705
        %v1894 = vsub.f32 %v342, %v1705
        %v1895 = vsub.f32 %v343, %v1705
        %v1896 = vsub.f32 %v344, %v1705
        %v1897 = vsub.f32 %v345, %v1705
        %v1898 = vsub.f32 %v346, %v1705
        %v1899 = vsub.f32 %v347, %v1705
        %v1900 = vsub.f32 %v348, %v1705
        %v1901 = vsub.f32 %v349, %v1705
        %v1902 = vsub.f32 %v350, %v1705
        %v1903 = vsub.f32 %v351, %v1705
        %v1904 = vsub.f32 %v352, %v1705
        %v1905 = vsub.f32 %v353, %v1705
        %v1906 = vsub.f32 %v354, %v1705
        %v1907 = vsub.f32 %v355, %v1705
        %v1908 = vsub.f32 %v356, %v1705
        %v1909 = vsub.f32 %v357, %v1705
        %v1910 = vsub.f32 %v358, %v1705
        %v1911 = vsub.f32 %v359, %v1705
        %v1912 = vsub.f32 %v360, %v1705
        %v1913 = vsub.f32 %v361, %v1705
        %v1914 = vsub.f32 %v362, %v1705
        %v1915 = vsub.f32 %v363, %v1705
        %v1916 = vsub.f32 %v364, %v1705
        %v1917 = vsub.f32 %v365, %v1705
        %v1918 = vsub.f32 %v366, %v1705
        %v1919 = vsub.f32 %v367, %v1705
        %v1920 = vsub.f32 %v368, %v1705
        %v1921 = vsub.f32 %v369, %v1705
        %v1922 = vsub.f32 %v370, %v1705
        %v1923 = vsub.f32 %v371, %v1705
        %v1924 = vsub.f32 %v372, %v1705
        %v1925 = vsub.f32 %v373, %v1705
        %v1926 = vsub.f32 %v374, %v1705
        %v1927 = vsub.f32 %v375, %v1705
        %v1928 = vsub.f32 %v376, %v1705
        %v1929 = vsub.f32 %v377, %v1705
        %v1930 = vsub.f32 %v378, %v1705
        %v1931 = vsub.f32 %v379, %v1705
        %v1932 = vsub.f32 %v380, %v1705
        %v1933 = vsub.f32 %v381, %v1705
        %v1934 = vsub.f32 %v382, %v1705
        %v1935 = vsub.f32 %v383, %v1705
        %v1936 = vsub.f32 %v384, %v1705
        %v1937 = vsub.f32 %v385, %v1705
        %v1938 = vsub.f32 %v386, %v1705
        %v1939 = vsub.f32 %v387, %v1705
        %v1940 = vsub.f32 %v388, %v1705
        %v1941 = vsub.f32 %v389, %v1705
        %v1942 = vsub.f32 %v390, %v1705
        %v1943 = vsub.f32 %v391, %v1705
        %v1944 = vsub.f32 %v392, %v1705
        %v1945 = vsub.f32 %v393, %v1705
        %v1946 = vsub.f32 %v394, %v1705
        %v1947 = vsub.f32 %v395, %v1705
        %v1948 = vsub.f32 %v396, %v1705
        %v1949 = vsub.f32 %v397, %v1705
        %v1950 = vsub.f32 %v398, %v1705
        %v1951 = vsub.f32 %v399, %v1705
        %v1952 = vsub.f32 %v400, %v1705
        %v1953 = vsub.f32 %v401, %v1705
        %v1954 = vsub.f32 %v402, %v1705
        %v1955 = vsub.f32 %v403, %v1705
        %v1956 = vsub.f32 %v404, %v1705
        %v1957 = vsub.f32 %v405, %v1705
        %v1958 = vsub.f32 %v406, %v1705
        %v1959 = vsub.f32 %v407, %v1705
        %v1960 = vsub.f32 %v408, %v1705
        %v1961 = vsub.f32 %v409, %v1705
        %v1962 = vsub.f32 %v410, %v1705
        %v1963 = vsub.f32 %v411, %v1705
        %v1964 = vsub.f32 %v412, %v1705
        %v1965 = vsub.f32 %v413, %v1705
        %v1966 = vsub.f32 %v414, %v1705
        %v1967 = vsub.f32 %v415, %v1705
        %v1968 = vsub.f32 %v416, %v1705
        %v1969 = vsub.f32 %v417, %v1705
        %v1970 = vsub.f32 %v418, %v1705
        %v1971 = vsub.f32 %v419, %v1705
        %v1972 = vsub.f32 %v420, %v1705
        %v1973 = vsub.f32 %v421, %v1705
        %v1974 = vsub.f32 %v422, %v1705
        %v1975 = vsub.f32 %v423, %v1705
        %v1976 = vsub.f32 %v424, %v1705
        %v1977 = vsub.f32 %v425, %v1705
        %v1978 = vsub.f32 %v426, %v1705
        %v1979 = vsub.f32 %v427, %v1705
        %v1980 = vsub.f32 %v428, %v1705
        %v1981 = vsub.f32 %v429, %v1705
        %v1982 = vsub.f32 %v430, %v1705
        %v1983 = vsub.f32 %v431, %v1705
        %v1984 = vsub.f32 %v432, %v1705
        %v1985 = vsub.f32 %v433, %v1705
        %v1986 = vsub.f32 %v434, %v1705
        %v1987 = vsub.f32 %v435, %v1705
        %v1988 = vsub.f32 %v436, %v1705
        %v1989 = vsub.f32 %v437, %v1705
        %v1990 = vsub.f32 %v438, %v1705
        %v1991 = vsub.f32 %v439, %v1705
        %v1992 = vsub.f32 %v440, %v1705
        %v1993 = vsub.f32 %v441, %v1705
        %v1994 = vsub.f32 %v442, %v1705
        %v1995 = vsub.f32 %v443, %v1705
        %v1996 = vsub.f32 %v444, %v1705
        %v1997 = vsub.f32 %v445, %v1705
        %v1998 = vsub.f32 %v446, %v1705
        %v1999 = vsub.f32 %v447, %v1705
        %v2000 = vsub.f32 %v448, %v1705
        %v2001 = vsub.f32 %v449, %v1705
        %v2002 = vsub.f32 %v450, %v1705
        %v2003 = vsub.f32 %v451, %v1705
        %v2004 = vsub.f32 %v452, %v1705
        %v2005 = vsub.f32 %v453, %v1705
        %v2006 = vsub.f32 %v454, %v1705
        %v2007 = vsub.f32 %v455, %v1705
        %v2008 = vsub.f32 %v456, %v1705
        %v2009 = vsub.f32 %v457, %v1705
        %v2010 = vsub.f32 %v458, %v1705
        %v2011 = vsub.f32 %v459, %v1705
        %v2012 = vsub.f32 %v460, %v1705
        %v2013 = vsub.f32 %v461, %v1705
        %v2014 = vsub.f32 %v462, %v1705
        %v2015 = vsub.f32 %v463, %v1705
        %v2016 = vsub.f32 %v464, %v1705
        %v2017 = vsub.f32 %v465, %v1705
        %v2018 = vsub.f32 %v466, %v1705
        %v2019 = vsub.f32 %v467, %v1705
        %v2020 = vsub.f32 %v468, %v1705
        %v2021 = vsub.f32 %v469, %v1705
        %v2022 = vsub.f32 %v470, %v1705
        %v2023 = vsub.f32 %v471, %v1705
        %v2024 = vsub.f32 %v472, %v1705
        %v2025 = vsub.f32 %v473, %v1705
        %v2026 = vsub.f32 %v474, %v1705
        %v2027 = vsub.f32 %v475, %v1705
        %v2028 = vsub.f32 %v476, %v1705
        %v2029 = vsub.f32 %v477, %v1705
        %v2030 = vsub.f32 %v478, %v1705
        %v2031 = vsub.f32 %v479, %v1705
        %v2032 = vsub.f32 %v480, %v1705
        %v2033 = vsub.f32 %v481, %v1705
        %v2034 = vsub.f32 %v482, %v1705
        %v2035 = vsub.f32 %v483, %v1705
        %v2036 = vsub.f32 %v484, %v1705
        %v2037 = vsub.f32 %v485, %v1705
        %v2038 = vsub.f32 %v486, %v1705
        %v2039 = vsub.f32 %v487, %v1705
        %v2040 = vsub.f32 %v488, %v1705
        %v2041 = vsub.f32 %v489, %v1705
        %v2042 = vsub.f32 %v490, %v1705
        %v2043 = vsub.f32 %v491, %v1705
        %v2044 = vsub.f32 %v492, %v1705
        %v2045 = vsub.f32 %v493, %v1705
        %v2046 = vsub.f32 %v494, %v1705
        %v2047 = vsub.f32 %v495, %v1705
        %v2048 = vsub.f32 %v496, %v1705
        %v2049 = vsub.f32 %v497, %v1705
        %v2050 = vsub.f32 %v498, %v1705
        %v2051 = vsub.f32 %v499, %v1705
        %v2052 = vsub.f32 %v500, %v1705
        %v2053 = vsub.f32 %v501, %v1705
        %v2054 = vsub.f32 %v502, %v1705
        %v2055 = vsub.f32 %v503, %v1705
        %v2056 = vsub.f32 %v504, %v1705
        %v2057 = vsub.f32 %v505, %v1705
        %v2058 = vsub.f32 %v506, %v1705
        %v2059 = vsub.f32 %v507, %v1705
        %v2060 = vsub.f32 %v508, %v1705
        %v2061 = vsub.f32 %v509, %v1705
        %v2062 = vsub.f32 %v510, %v1705
        %v2063 = vsub.f32 %v511, %v1705
        %v2064 = vsub.f32 %v512, %v1705
        %v2065 = vsub.f32 %v513, %v1705
        %v2066 = vsub.f32 %v514, %v1705
        %v2067 = vsub.f32 %v515, %v1705
        %v2068 = vsub.f32 %v516, %v1705
        %v2069 = vsub.f32 %v517, %v1705
        %v2070 = vsub.f32 %v518, %v1705
        %v2071 = vsub.f32 %v519, %v1705
        %v2072 = vsub.f32 %v520, %v1705
        %v2073 = vsub.f32 %v521, %v1705
        %v2074 = vsub.f32 %v522, %v1705
        %v2075 = vsub.f32 %v523, %v1705
        %v2076 = vsub.f32 %v524, %v1705
        %v2077 = vsub.f32 %v525, %v1705
        %v2078 = vsub.f32 %v526, %v1705
        %v2079 = vsub.f32 %v527, %v1705
        %v2080 = vsub.f32 %v528, %v1705
        %v2081 = vsub.f32 %v529, %v1705
        %v2082 = vsub.f32 %v530, %v1705
        %v2083 = vsub.f32 %v531, %v1705
        %v2084 = vsub.f32 %v532, %v1705
        %v2085 = vsub.f32 %v533, %v1705
        %v2086 = vsub.f32 %v534, %v1705
        %v2087 = vsub.f32 %v535, %v1705
        %v2088 = vsub.f32 %v536, %v1705
        %v2089 = vsub.f32 %v537, %v1705
        %v2090 = vsub.f32 %v538, %v1705
        %v2091 = vsub.f32 %v539, %v1705
        %v2092 = vsub.f32 %v540, %v1705
        %v2093 = vsub.f32 %v541, %v1705
        %v2094 = vsub.f32 %v542, %v1705
        %v2095 = vsub.f32 %v543, %v1705
        %v2096 = vsub.f32 %v544, %v1705
        %v2097 = vsub.f32 %v545, %v1705
        %v2098 = vsub.f32 %v546, %v1705
        %v2099 = vsub.f32 %v547, %v1705
        %v2100 = vsub.f32 %v548, %v1705
        %v2101 = vsub.f32 %v549, %v1705
        %v2102 = vsub.f32 %v550, %v1705
        %v2103 = vsub.f32 %v551, %v1705
        %v2104 = vsub.f32 %v552, %v1705
        %v2105 = vsub.f32 %v553, %v1705
        %v2106 = vsub.f32 %v554, %v1705
        %v2107 = vsub.f32 %v555, %v1705
        %v2108 = vsub.f32 %v556, %v1705
        %v2109 = vsub.f32 %v557, %v1705
        %v2110 = vsub.f32 %v558, %v1705
        %v2111 = vsub.f32 %v559, %v1705
        %v2112 = vsub.f32 %v560, %v1705
        %v2113 = vsub.f32 %v561, %v1705
        %v2114 = vsub.f32 %v562, %v1705
        %v2115 = vsub.f32 %v563, %v1705
        %v2116 = vsub.f32 %v564, %v1705
        %v2117 = vsub.f32 %v565, %v1705
        %v2118 = vsub.f32 %v566, %v1705
        %v2119 = vsub.f32 %v567, %v1705
        %v2120 = vsub.f32 %v568, %v1705
        %v2121 = vsub.f32 %v569, %v1705
        %v2122 = vsub.f32 %v570, %v1705
        %v2123 = vsub.f32 %v571, %v1705
        %v2124 = vsub.f32 %v572, %v1705
        %v2125 = vsub.f32 %v573, %v1705
        %v2126 = vsub.f32 %v574, %v1705
        %v2127 = vsub.f32 %v575, %v1705
        %v2128 = vsub.f32 %v576, %v1705
        %v2129 = vsub.f32 %v577, %v1705
        %v2130 = vsub.f32 %v578, %v1705
        %v2131 = vsub.f32 %v579, %v1705
        %v2132 = vsub.f32 %v580, %v1705
        %v2133 = vsub.f32 %v581, %v1705
        %v2134 = vsub.f32 %v582, %v1705
        %v2135 = vsub.f32 %v583, %v1705
        %v2136 = vsub.f32 %v584, %v1705
        %v2137 = vsub.f32 %v585, %v1705
        %v2138 = vsub.f32 %v586, %v1705
        %v2139 = vsub.f32 %v587, %v1705
        %v2140 = vsub.f32 %v588, %v1705
        %v2141 = vsub.f32 %v589, %v1705
        %v2142 = vsub.f32 %v590, %v1705
        %v2143 = vsub.f32 %v591, %v1705
        %v2144 = vsub.f32 %v592, %v1705
        %v2145 = vsub.f32 %v593, %v1705
        %v2146 = vsub.f32 %v594, %v1705
        %v2147 = vsub.f32 %v595, %v1705
        %v2148 = vsub.f32 %v596, %v1705
        %v2149 = vsub.f32 %v597, %v1705
        %v2150 = vsub.f32 %v598, %v1705
        %v2151 = vsub.f32 %v599, %v1705
        %v2152 = vsub.f32 %v600, %v1705
        %v2153 = vsub.f32 %v601, %v1705
        %v2154 = vsub.f32 %v602, %v1705
        %v2155 = vsub.f32 %v603, %v1705
        %v2156 = vsub.f32 %v604, %v1705
        %v2157 = vsub.f32 %v605, %v1705
        %v2158 = vsub.f32 %v606, %v1705
        %v2159 = vsub.f32 %v607, %v1705
        %v2160 = vsub.f32 %v608, %v1705
        %v2161 = vsub.f32 %v609, %v1705
        %v2162 = vsub.f32 %v610, %v1705
        %v2163 = vsub.f32 %v611, %v1705
        %v2164 = vsub.f32 %v612, %v1705
        %v2165 = vsub.f32 %v613, %v1705
        %v2166 = vsub.f32 %v614, %v1705
        %v2167 = vsub.f32 %v615, %v1705
        %v2168 = vsub.f32 %v616, %v1705
        %v2169 = vsub.f32 %v617, %v1705
        %v2170 = vsub.f32 %v618, %v1705
        %v2171 = vsub.f32 %v619, %v1705
        %v2172 = vsub.f32 %v620, %v1705
        %v2173 = vsub.f32 %v621, %v1705
        %v2174 = vsub.f32 %v622, %v1705
        %v2175 = vsub.f32 %v623, %v1705
        %v2176 = vsub.f32 %v624, %v1705
        %v2177 = vsub.f32 %v625, %v1705
        %v2178 = vsub.f32 %v626, %v1705
        %v2179 = vsub.f32 %v627, %v1705
        %v2180 = vsub.f32 %v628, %v1705
        %v2181 = vsub.f32 %v629, %v1705
        %v2182 = vsub.f32 %v630, %v1705
        %v2183 = vsub.f32 %v631, %v1705
        %v2184 = vsub.f32 %v632, %v1705
        %v2185 = vsub.f32 %v633, %v1705
        %v2186 = vsub.f32 %v634, %v1705
        %v2187 = vsub.f32 %v635, %v1705
        %v2188 = vsub.f32 %v636, %v1705
        %v2189 = vsub.f32 %v637, %v1705
        %v2190 = vsub.f32 %v638, %v1705
        %v2191 = vsub.f32 %v639, %v1705
        %v2192 = vsub.f32 %v640, %v1705
        %v2193 = vsub.f32 %v641, %v1705
        %v2194 = vsub.f32 %v642, %v1705
        %v2195 = vsub.f32 %v643, %v1705
        %v2196 = vsub.f32 %v644, %v1705
        %v2197 = vsub.f32 %v645, %v1705
        %v2198 = vsub.f32 %v646, %v1705
        %v2199 = vsub.f32 %v647, %v1705
        %v2200 = vsub.f32 %v648, %v1705
        %v2201 = vsub.f32 %v649, %v1705
        %v2202 = vsub.f32 %v650, %v1705
        %v2203 = vsub.f32 %v651, %v1705
        %v2204 = vsub.f32 %v652, %v1705
        %v2205 = vsub.f32 %v653, %v1705
        %v2206 = vsub.f32 %v654, %v1705
        %v2207 = vsub.f32 %v655, %v1705
        %v2208 = vsub.f32 %v656, %v1705
        %v2209 = vsub.f32 %v657, %v1705
        %v2210 = vsub.f32 %v658, %v1705
        %v2211 = vsub.f32 %v659, %v1705
        %v2212 = vsub.f32 %v660, %v1705
        %v2213 = vsub.f32 %v661, %v1705
        %v2214 = vsub.f32 %v662, %v1705
        %v2215 = vsub.f32 %v663, %v1705
        %v2216 = vsub.f32 %v664, %v1705
        %v2217 = vsub.f32 %v665, %v1705
        %2218 = vst.msk [vmem:[%s153] sm:$0xff] %vm666, %v1706
        %2219 = vst.msk [vmem:[%s153 + $0x8] sm:$0xff] %vm666, %v1707
        %2220 = vst.msk [vmem:[%s153 + $0x10] sm:$0xff] %vm666, %v1708
        %2221 = vst.msk [vmem:[%s153 + $0x18] sm:$0xff] %vm666, %v1709
        %2222 = vst.msk [vmem:[%s153 + $0x20] sm:$0xff] %vm666, %v1710
        %2223 = vst.msk [vmem:[%s153 + $0x28] sm:$0xff] %vm666, %v1711
        %2224 = vst.msk [vmem:[%s153 + $0x30] sm:$0xff] %vm666, %v1712
        %2225 = vst.msk [vmem:[%s153 + $0x38] sm:$0xff] %vm666, %v1713
        %2226 = vst.msk [vmem:[%s153 + $0x40] sm:$0xff] %vm666, %v1714
        %2227 = vst.msk [vmem:[%s153 + $0x48] sm:$0xff] %vm666, %v1715
        %2228 = vst.msk [vmem:[%s153 + $0x50] sm:$0xff] %vm666, %v1716
        %2229 = vst.msk [vmem:[%s153 + $0x58] sm:$0xff] %vm666, %v1717
        %2230 = vst.msk [vmem:[%s153 + $0x60] sm:$0xff] %vm666, %v1718
        %2231 = vst.msk [vmem:[%s153 + $0x68] sm:$0xff] %vm666, %v1719
        %2232 = vst.msk [vmem:[%s153 + $0x70] sm:$0xff] %vm666, %v1720
        %2233 = vst.msk [vmem:[%s153 + $0x78] sm:$0xff] %vm666, %v1721
        %2234 = vst.msk [vmem:[%s153 + $0x80] sm:$0xff] %vm666, %v1722
        %2235 = vst.msk [vmem:[%s153 + $0x88] sm:$0xff] %vm666, %v1723
        %2236 = vst.msk [vmem:[%s153 + $0x90] sm:$0xff] %vm666, %v1724
        %2237 = vst.msk [vmem:[%s153 + $0x98] sm:$0xff] %vm666, %v1725
        %2238 = vst.msk [vmem:[%s153 + $0xa0] sm:$0xff] %vm666, %v1726
        %2239 = vst.msk [vmem:[%s153 + $0xa8] sm:$0xff] %vm666, %v1727
        %2240 = vst.msk [vmem:[%s153 + $0xb0] sm:$0xff] %vm666, %v1728
        %2241 = vst.msk [vmem:[%s153 + $0xb8] sm:$0xff] %vm666, %v1729
        %2242 = vst.msk [vmem:[%s153 + $0xc0] sm:$0xff] %vm666, %v1730
        %2243 = vst.msk [vmem:[%s153 + $0xc8] sm:$0xff] %vm666, %v1731
        %2244 = vst.msk [vmem:[%s153 + $0xd0] sm:$0xff] %vm666, %v1732
        %2245 = vst.msk [vmem:[%s153 + $0xd8] sm:$0xff] %vm666, %v1733
        %2246 = vst.msk [vmem:[%s153 + $0xe0] sm:$0xff] %vm666, %v1734
        %2247 = vst.msk [vmem:[%s153 + $0xe8] sm:$0xff] %vm666, %v1735
        %2248 = vst.msk [vmem:[%s153 + $0xf0] sm:$0xff] %vm666, %v1736
        %2249 = vst.msk [vmem:[%s153 + $0xf8] sm:$0xff] %vm666, %v1737
        %2250 = vst.msk [vmem:[%s153 + $0x100] sm:$0xff] %vm666, %v1738
        %2251 = vst.msk [vmem:[%s153 + $0x108] sm:$0xff] %vm666, %v1739
        %2252 = vst.msk [vmem:[%s153 + $0x110] sm:$0xff] %vm666, %v1740
        %2253 = vst.msk [vmem:[%s153 + $0x118] sm:$0xff] %vm666, %v1741
        %2254 = vst.msk [vmem:[%s153 + $0x120] sm:$0xff] %vm666, %v1742
        %2255 = vst.msk [vmem:[%s153 + $0x128] sm:$0xff] %vm666, %v1743
        %2256 = vst.msk [vmem:[%s153 + $0x130] sm:$0xff] %vm666, %v1744
        %2257 = vst.msk [vmem:[%s153 + $0x138] sm:$0xff] %vm666, %v1745
        %2258 = vst.msk [vmem:[%s153 + $0x140] sm:$0xff] %vm666, %v1746
        %2259 = vst.msk [vmem:[%s153 + $0x148] sm:$0xff] %vm666, %v1747
        %2260 = vst.msk [vmem:[%s153 + $0x150] sm:$0xff] %vm666, %v1748
        %2261 = vst.msk [vmem:[%s153 + $0x158] sm:$0xff] %vm666, %v1749
        %2262 = vst.msk [vmem:[%s153 + $0x160] sm:$0xff] %vm666, %v1750
        %2263 = vst.msk [vmem:[%s153 + $0x168] sm:$0xff] %vm666, %v1751
        %2264 = vst.msk [vmem:[%s153 + $0x170] sm:$0xff] %vm666, %v1752
        %2265 = vst.msk [vmem:[%s153 + $0x178] sm:$0xff] %vm666, %v1753
        %2266 = vst.msk [vmem:[%s153 + $0x180] sm:$0xff] %vm666, %v1754
        %2267 = vst.msk [vmem:[%s153 + $0x188] sm:$0xff] %vm666, %v1755
        %2268 = vst.msk [vmem:[%s153 + $0x190] sm:$0xff] %vm666, %v1756
        %2269 = vst.msk [vmem:[%s153 + $0x198] sm:$0xff] %vm666, %v1757
        %2270 = vst.msk [vmem:[%s153 + $0x1a0] sm:$0xff] %vm666, %v1758
        %2271 = vst.msk [vmem:[%s153 + $0x1a8] sm:$0xff] %vm666, %v1759
        %2272 = vst.msk [vmem:[%s153 + $0x1b0] sm:$0xff] %vm666, %v1760
        %2273 = vst.msk [vmem:[%s153 + $0x1b8] sm:$0xff] %vm666, %v1761
        %2274 = vst.msk [vmem:[%s153 + $0x1c0] sm:$0xff] %vm666, %v1762
        %2275 = vst.msk [vmem:[%s153 + $0x1c8] sm:$0xff] %vm666, %v1763
        %2276 = vst.msk [vmem:[%s153 + $0x1d0] sm:$0xff] %vm666, %v1764
        %2277 = vst.msk [vmem:[%s153 + $0x1d8] sm:$0xff] %vm666, %v1765
        %2278 = vst.msk [vmem:[%s153 + $0x1e0] sm:$0xff] %vm666, %v1766
        %2279 = vst.msk [vmem:[%s153 + $0x1e8] sm:$0xff] %vm666, %v1767
        %2280 = vst.msk [vmem:[%s153 + $0x1f0] sm:$0xff] %vm666, %v1768
        %2281 = vst.msk [vmem:[%s153 + $0x1f8] sm:$0xff] %vm666, %v1769
        %2282 = vst.msk [vmem:[%s153 + $0x200] sm:$0xff] %vm666, %v1770
        %2283 = vst.msk [vmem:[%s153 + $0x208] sm:$0xff] %vm666, %v1771
        %2284 = vst.msk [vmem:[%s153 + $0x210] sm:$0xff] %vm666, %v1772
        %2285 = vst.msk [vmem:[%s153 + $0x218] sm:$0xff] %vm666, %v1773
        %2286 = vst.msk [vmem:[%s153 + $0x220] sm:$0xff] %vm666, %v1774
        %2287 = vst.msk [vmem:[%s153 + $0x228] sm:$0xff] %vm666, %v1775
        %2288 = vst.msk [vmem:[%s153 + $0x230] sm:$0xff] %vm666, %v1776
        %2289 = vst.msk [vmem:[%s153 + $0x238] sm:$0xff] %vm666, %v1777
        %2290 = vst.msk [vmem:[%s153 + $0x240] sm:$0xff] %vm666, %v1778
        %2291 = vst.msk [vmem:[%s153 + $0x248] sm:$0xff] %vm666, %v1779
        %2292 = vst.msk [vmem:[%s153 + $0x250] sm:$0xff] %vm666, %v1780
        %2293 = vst.msk [vmem:[%s153 + $0x258] sm:$0xff] %vm666, %v1781
        %2294 = vst.msk [vmem:[%s153 + $0x260] sm:$0xff] %vm666, %v1782
        %2295 = vst.msk [vmem:[%s153 + $0x268] sm:$0xff] %vm666, %v1783
        %2296 = vst.msk [vmem:[%s153 + $0x270] sm:$0xff] %vm666, %v1784
        %2297 = vst.msk [vmem:[%s153 + $0x278] sm:$0xff] %vm666, %v1785
        %2298 = vst.msk [vmem:[%s153 + $0x280] sm:$0xff] %vm666, %v1786
        %2299 = vst.msk [vmem:[%s153 + $0x288] sm:$0xff] %vm666, %v1787
        %2300 = vst.msk [vmem:[%s153 + $0x290] sm:$0xff] %vm666, %v1788
        %2301 = vst.msk [vmem:[%s153 + $0x298] sm:$0xff] %vm666, %v1789
        %2302 = vst.msk [vmem:[%s153 + $0x2a0] sm:$0xff] %vm666, %v1790
        %2303 = vst.msk [vmem:[%s153 + $0x2a8] sm:$0xff] %vm666, %v1791
        %2304 = vst.msk [vmem:[%s153 + $0x2b0] sm:$0xff] %vm666, %v1792
        %2305 = vst.msk [vmem:[%s153 + $0x2b8] sm:$0xff] %vm666, %v1793
        %2306 = vst.msk [vmem:[%s153 + $0x2c0] sm:$0xff] %vm666, %v1794
        %2307 = vst.msk [vmem:[%s153 + $0x2c8] sm:$0xff] %vm666, %v1795
        %2308 = vst.msk [vmem:[%s153 + $0x2d0] sm:$0xff] %vm666, %v1796
        %2309 = vst.msk [vmem:[%s153 + $0x2d8] sm:$0xff] %vm666, %v1797
        %2310 = vst.msk [vmem:[%s153 + $0x2e0] sm:$0xff] %vm666, %v1798
        %2311 = vst.msk [vmem:[%s153 + $0x2e8] sm:$0xff] %vm666, %v1799
        %2312 = vst.msk [vmem:[%s153 + $0x2f0] sm:$0xff] %vm666, %v1800
        %2313 = vst.msk [vmem:[%s153 + $0x2f8] sm:$0xff] %vm666, %v1801
        %2314 = vst.msk [vmem:[%s153 + $0x300] sm:$0xff] %vm666, %v1802
        %2315 = vst.msk [vmem:[%s153 + $0x308] sm:$0xff] %vm666, %v1803
        %2316 = vst.msk [vmem:[%s153 + $0x310] sm:$0xff] %vm666, %v1804
        %2317 = vst.msk [vmem:[%s153 + $0x318] sm:$0xff] %vm666, %v1805
        %2318 = vst.msk [vmem:[%s153 + $0x320] sm:$0xff] %vm666, %v1806
        %2319 = vst.msk [vmem:[%s153 + $0x328] sm:$0xff] %vm666, %v1807
        %2320 = vst.msk [vmem:[%s153 + $0x330] sm:$0xff] %vm666, %v1808
        %2321 = vst.msk [vmem:[%s153 + $0x338] sm:$0xff] %vm666, %v1809
        %2322 = vst.msk [vmem:[%s153 + $0x340] sm:$0xff] %vm666, %v1810
        %2323 = vst.msk [vmem:[%s153 + $0x348] sm:$0xff] %vm666, %v1811
        %2324 = vst.msk [vmem:[%s153 + $0x350] sm:$0xff] %vm666, %v1812
        %2325 = vst.msk [vmem:[%s153 + $0x358] sm:$0xff] %vm666, %v1813
        %2326 = vst.msk [vmem:[%s153 + $0x360] sm:$0xff] %vm666, %v1814
        %2327 = vst.msk [vmem:[%s153 + $0x368] sm:$0xff] %vm666, %v1815
        %2328 = vst.msk [vmem:[%s153 + $0x370] sm:$0xff] %vm666, %v1816
        %2329 = vst.msk [vmem:[%s153 + $0x378] sm:$0xff] %vm666, %v1817
        %2330 = vst.msk [vmem:[%s153 + $0x380] sm:$0xff] %vm666, %v1818
        %2331 = vst.msk [vmem:[%s153 + $0x388] sm:$0xff] %vm666, %v1819
        %2332 = vst.msk [vmem:[%s153 + $0x390] sm:$0xff] %vm666, %v1820
        %2333 = vst.msk [vmem:[%s153 + $0x398] sm:$0xff] %vm666, %v1821
        %2334 = vst.msk [vmem:[%s153 + $0x3a0] sm:$0xff] %vm666, %v1822
        %2335 = vst.msk [vmem:[%s153 + $0x3a8] sm:$0xff] %vm666, %v1823
        %2336 = vst.msk [vmem:[%s153 + $0x3b0] sm:$0xff] %vm666, %v1824
        %2337 = vst.msk [vmem:[%s153 + $0x3b8] sm:$0xff] %vm666, %v1825
        %2338 = vst.msk [vmem:[%s153 + $0x3c0] sm:$0xff] %vm666, %v1826
        %2339 = vst.msk [vmem:[%s153 + $0x3c8] sm:$0xff] %vm666, %v1827
        %2340 = vst.msk [vmem:[%s153 + $0x3d0] sm:$0xff] %vm666, %v1828
        %2341 = vst.msk [vmem:[%s153 + $0x3d8] sm:$0xff] %vm666, %v1829
        %2342 = vst.msk [vmem:[%s153 + $0x3e0] sm:$0xff] %vm666, %v1830
        %2343 = vst.msk [vmem:[%s153 + $0x3e8] sm:$0xff] %vm666, %v1831
        %2344 = vst.msk [vmem:[%s153 + $0x3f0] sm:$0xff] %vm666, %v1832
        %2345 = vst.msk [vmem:[%s153 + $0x3f8] sm:$0xff] %vm666, %v1833
        %2346 = vst.msk [vmem:[%s153 + $0x400] sm:$0xff] %vm666, %v1834
        %2347 = vst.msk [vmem:[%s153 + $0x408] sm:$0xff] %vm666, %v1835
        %2348 = vst.msk [vmem:[%s153 + $0x410] sm:$0xff] %vm666, %v1836
        %2349 = vst.msk [vmem:[%s153 + $0x418] sm:$0xff] %vm666, %v1837
        %2350 = vst.msk [vmem:[%s153 + $0x420] sm:$0xff] %vm666, %v1838
        %2351 = vst.msk [vmem:[%s153 + $0x428] sm:$0xff] %vm666, %v1839
        %2352 = vst.msk [vmem:[%s153 + $0x430] sm:$0xff] %vm666, %v1840
        %2353 = vst.msk [vmem:[%s153 + $0x438] sm:$0xff] %vm666, %v1841
        %2354 = vst.msk [vmem:[%s153 + $0x440] sm:$0xff] %vm666, %v1842
        %2355 = vst.msk [vmem:[%s153 + $0x448] sm:$0xff] %vm666, %v1843
        %2356 = vst.msk [vmem:[%s153 + $0x450] sm:$0xff] %vm666, %v1844
        %2357 = vst.msk [vmem:[%s153 + $0x458] sm:$0xff] %vm666, %v1845
        %2358 = vst.msk [vmem:[%s153 + $0x460] sm:$0xff] %vm666, %v1846
        %2359 = vst.msk [vmem:[%s153 + $0x468] sm:$0xff] %vm666, %v1847
        %2360 = vst.msk [vmem:[%s153 + $0x470] sm:$0xff] %vm666, %v1848
        %2361 = vst.msk [vmem:[%s153 + $0x478] sm:$0xff] %vm666, %v1849
        %2362 = vst.msk [vmem:[%s153 + $0x480] sm:$0xff] %vm666, %v1850
        %2363 = vst.msk [vmem:[%s153 + $0x488] sm:$0xff] %vm666, %v1851
        %2364 = vst.msk [vmem:[%s153 + $0x490] sm:$0xff] %vm666, %v1852
        %2365 = vst.msk [vmem:[%s153 + $0x498] sm:$0xff] %vm666, %v1853
        %2366 = vst.msk [vmem:[%s153 + $0x4a0] sm:$0xff] %vm666, %v1854
        %2367 = vst.msk [vmem:[%s153 + $0x4a8] sm:$0xff] %vm666, %v1855
        %2368 = vst.msk [vmem:[%s153 + $0x4b0] sm:$0xff] %vm666, %v1856
        %2369 = vst.msk [vmem:[%s153 + $0x4b8] sm:$0xff] %vm666, %v1857
        %2370 = vst.msk [vmem:[%s153 + $0x4c0] sm:$0xff] %vm666, %v1858
        %2371 = vst.msk [vmem:[%s153 + $0x4c8] sm:$0xff] %vm666, %v1859
        %2372 = vst.msk [vmem:[%s153 + $0x4d0] sm:$0xff] %vm666, %v1860
        %2373 = vst.msk [vmem:[%s153 + $0x4d8] sm:$0xff] %vm666, %v1861
        %2374 = vst.msk [vmem:[%s153 + $0x4e0] sm:$0xff] %vm666, %v1862
        %2375 = vst.msk [vmem:[%s153 + $0x4e8] sm:$0xff] %vm666, %v1863
        %2376 = vst.msk [vmem:[%s153 + $0x4f0] sm:$0xff] %vm666, %v1864
        %2377 = vst.msk [vmem:[%s153 + $0x4f8] sm:$0xff] %vm666, %v1865
        %2378 = vst.msk [vmem:[%s153 + $0x500] sm:$0xff] %vm666, %v1866
        %2379 = vst.msk [vmem:[%s153 + $0x508] sm:$0xff] %vm666, %v1867
        %2380 = vst.msk [vmem:[%s153 + $0x510] sm:$0xff] %vm666, %v1868
        %2381 = vst.msk [vmem:[%s153 + $0x518] sm:$0xff] %vm666, %v1869
        %2382 = vst.msk [vmem:[%s153 + $0x520] sm:$0xff] %vm666, %v1870
        %2383 = vst.msk [vmem:[%s153 + $0x528] sm:$0xff] %vm666, %v1871
        %2384 = vst.msk [vmem:[%s153 + $0x530] sm:$0xff] %vm666, %v1872
        %2385 = vst.msk [vmem:[%s153 + $0x538] sm:$0xff] %vm666, %v1873
        %2386 = vst.msk [vmem:[%s153 + $0x540] sm:$0xff] %vm666, %v1874
        %2387 = vst.msk [vmem:[%s153 + $0x548] sm:$0xff] %vm666, %v1875
        %2388 = vst.msk [vmem:[%s153 + $0x550] sm:$0xff] %vm666, %v1876
        %2389 = vst.msk [vmem:[%s153 + $0x558] sm:$0xff] %vm666, %v1877
        %2390 = vst.msk [vmem:[%s153 + $0x560] sm:$0xff] %vm666, %v1878
        %2391 = vst.msk [vmem:[%s153 + $0x568] sm:$0xff] %vm666, %v1879
        %2392 = vst.msk [vmem:[%s153 + $0x570] sm:$0xff] %vm666, %v1880
        %2393 = vst.msk [vmem:[%s153 + $0x578] sm:$0xff] %vm666, %v1881
        %2394 = vst.msk [vmem:[%s153 + $0x580] sm:$0xff] %vm666, %v1882
        %2395 = vst.msk [vmem:[%s153 + $0x588] sm:$0xff] %vm666, %v1883
        %2396 = vst.msk [vmem:[%s153 + $0x590] sm:$0xff] %vm666, %v1884
        %2397 = vst.msk [vmem:[%s153 + $0x598] sm:$0xff] %vm666, %v1885
        %2398 = vst.msk [vmem:[%s153 + $0x5a0] sm:$0xff] %vm666, %v1886
        %2399 = vst.msk [vmem:[%s153 + $0x5a8] sm:$0xff] %vm666, %v1887
        %2400 = vst.msk [vmem:[%s153 + $0x5b0] sm:$0xff] %vm666, %v1888
        %2401 = vst.msk [vmem:[%s153 + $0x5b8] sm:$0xff] %vm666, %v1889
        %2402 = vst.msk [vmem:[%s153 + $0x5c0] sm:$0xff] %vm666, %v1890
        %2403 = vst.msk [vmem:[%s153 + $0x5c8] sm:$0xff] %vm666, %v1891
        %2404 = vst.msk [vmem:[%s153 + $0x5d0] sm:$0xff] %vm666, %v1892
        %2405 = vst.msk [vmem:[%s153 + $0x5d8] sm:$0xff] %vm666, %v1893
        %2406 = vst.msk [vmem:[%s153 + $0x5e0] sm:$0xff] %vm666, %v1894
        %2407 = vst.msk [vmem:[%s153 + $0x5e8] sm:$0xff] %vm666, %v1895
        %2408 = vst.msk [vmem:[%s153 + $0x5f0] sm:$0xff] %vm666, %v1896
        %2409 = vst.msk [vmem:[%s153 + $0x5f8] sm:$0xff] %vm666, %v1897
        %2410 = vst.msk [vmem:[%s153 + $0x600] sm:$0xff] %vm666, %v1898
        %2411 = vst.msk [vmem:[%s153 + $0x608] sm:$0xff] %vm666, %v1899
        %2412 = vst.msk [vmem:[%s153 + $0x610] sm:$0xff] %vm666, %v1900
        %2413 = vst.msk [vmem:[%s153 + $0x618] sm:$0xff] %vm666, %v1901
        %2414 = vst.msk [vmem:[%s153 + $0x620] sm:$0xff] %vm666, %v1902
        %2415 = vst.msk [vmem:[%s153 + $0x628] sm:$0xff] %vm666, %v1903
        %2416 = vst.msk [vmem:[%s153 + $0x630] sm:$0xff] %vm666, %v1904
        %2417 = vst.msk [vmem:[%s153 + $0x638] sm:$0xff] %vm666, %v1905
        %2418 = vst.msk [vmem:[%s153 + $0x640] sm:$0xff] %vm666, %v1906
        %2419 = vst.msk [vmem:[%s153 + $0x648] sm:$0xff] %vm666, %v1907
        %2420 = vst.msk [vmem:[%s153 + $0x650] sm:$0xff] %vm666, %v1908
        %2421 = vst.msk [vmem:[%s153 + $0x658] sm:$0xff] %vm666, %v1909
        %2422 = vst.msk [vmem:[%s153 + $0x660] sm:$0xff] %vm666, %v1910
        %2423 = vst.msk [vmem:[%s153 + $0x668] sm:$0xff] %vm666, %v1911
        %2424 = vst.msk [vmem:[%s153 + $0x670] sm:$0xff] %vm666, %v1912
        %2425 = vst.msk [vmem:[%s153 + $0x678] sm:$0xff] %vm666, %v1913
        %2426 = vst.msk [vmem:[%s153 + $0x680] sm:$0xff] %vm666, %v1914
        %2427 = vst.msk [vmem:[%s153 + $0x688] sm:$0xff] %vm666, %v1915
        %2428 = vst.msk [vmem:[%s153 + $0x690] sm:$0xff] %vm666, %v1916
        %2429 = vst.msk [vmem:[%s153 + $0x698] sm:$0xff] %vm666, %v1917
        %2430 = vst.msk [vmem:[%s153 + $0x6a0] sm:$0xff] %vm666, %v1918
        %2431 = vst.msk [vmem:[%s153 + $0x6a8] sm:$0xff] %vm666, %v1919
        %2432 = vst.msk [vmem:[%s153 + $0x6b0] sm:$0xff] %vm666, %v1920
        %2433 = vst.msk [vmem:[%s153 + $0x6b8] sm:$0xff] %vm666, %v1921
        %2434 = vst.msk [vmem:[%s153 + $0x6c0] sm:$0xff] %vm666, %v1922
        %2435 = vst.msk [vmem:[%s153 + $0x6c8] sm:$0xff] %vm666, %v1923
        %2436 = vst.msk [vmem:[%s153 + $0x6d0] sm:$0xff] %vm666, %v1924
        %2437 = vst.msk [vmem:[%s153 + $0x6d8] sm:$0xff] %vm666, %v1925
        %2438 = vst.msk [vmem:[%s153 + $0x6e0] sm:$0xff] %vm666, %v1926
        %2439 = vst.msk [vmem:[%s153 + $0x6e8] sm:$0xff] %vm666, %v1927
        %2440 = vst.msk [vmem:[%s153 + $0x6f0] sm:$0xff] %vm666, %v1928
        %2441 = vst.msk [vmem:[%s153 + $0x6f8] sm:$0xff] %vm666, %v1929
        %2442 = vst.msk [vmem:[%s153 + $0x700] sm:$0xff] %vm666, %v1930
        %2443 = vst.msk [vmem:[%s153 + $0x708] sm:$0xff] %vm666, %v1931
        %2444 = vst.msk [vmem:[%s153 + $0x710] sm:$0xff] %vm666, %v1932
        %2445 = vst.msk [vmem:[%s153 + $0x718] sm:$0xff] %vm666, %v1933
        %2446 = vst.msk [vmem:[%s153 + $0x720] sm:$0xff] %vm666, %v1934
        %2447 = vst.msk [vmem:[%s153 + $0x728] sm:$0xff] %vm666, %v1935
        %2448 = vst.msk [vmem:[%s153 + $0x730] sm:$0xff] %vm666, %v1936
        %2449 = vst.msk [vmem:[%s153 + $0x738] sm:$0xff] %vm666, %v1937
        %2450 = vst.msk [vmem:[%s153 + $0x740] sm:$0xff] %vm666, %v1938
        %2451 = vst.msk [vmem:[%s153 + $0x748] sm:$0xff] %vm666, %v1939
        %2452 = vst.msk [vmem:[%s153 + $0x750] sm:$0xff] %vm666, %v1940
        %2453 = vst.msk [vmem:[%s153 + $0x758] sm:$0xff] %vm666, %v1941
        %2454 = vst.msk [vmem:[%s153 + $0x760] sm:$0xff] %vm666, %v1942
        %2455 = vst.msk [vmem:[%s153 + $0x768] sm:$0xff] %vm666, %v1943
        %2456 = vst.msk [vmem:[%s153 + $0x770] sm:$0xff] %vm666, %v1944
        %2457 = vst.msk [vmem:[%s153 + $0x778] sm:$0xff] %vm666, %v1945
        %2458 = vst.msk [vmem:[%s153 + $0x780] sm:$0xff] %vm666, %v1946
        %2459 = vst.msk [vmem:[%s153 + $0x788] sm:$0xff] %vm666, %v1947
        %2460 = vst.msk [vmem:[%s153 + $0x790] sm:$0xff] %vm666, %v1948
        %2461 = vst.msk [vmem:[%s153 + $0x798] sm:$0xff] %vm666, %v1949
        %2462 = vst.msk [vmem:[%s153 + $0x7a0] sm:$0xff] %vm666, %v1950
        %2463 = vst.msk [vmem:[%s153 + $0x7a8] sm:$0xff] %vm666, %v1951
        %2464 = vst.msk [vmem:[%s153 + $0x7b0] sm:$0xff] %vm666, %v1952
        %2465 = vst.msk [vmem:[%s153 + $0x7b8] sm:$0xff] %vm666, %v1953
        %2466 = vst.msk [vmem:[%s153 + $0x7c0] sm:$0xff] %vm666, %v1954
        %2467 = vst.msk [vmem:[%s153 + $0x7c8] sm:$0xff] %vm666, %v1955
        %2468 = vst.msk [vmem:[%s153 + $0x7d0] sm:$0xff] %vm666, %v1956
        %2469 = vst.msk [vmem:[%s153 + $0x7d8] sm:$0xff] %vm666, %v1957
        %2470 = vst.msk [vmem:[%s153 + $0x7e0] sm:$0xff] %vm666, %v1958
        %2471 = vst.msk [vmem:[%s153 + $0x7e8] sm:$0xff] %vm666, %v1959
        %2472 = vst.msk [vmem:[%s153 + $0x7f0] sm:$0xff] %vm666, %v1960
        %2473 = vst.msk [vmem:[%s153 + $0x7f8] sm:$0xff] %vm666, %v1961
        %2474 = vst.msk [vmem:[%s153 + $0x800] sm:$0xff] %vm666, %v1962
        %2475 = vst.msk [vmem:[%s153 + $0x808] sm:$0xff] %vm666, %v1963
        %2476 = vst.msk [vmem:[%s153 + $0x810] sm:$0xff] %vm666, %v1964
        %2477 = vst.msk [vmem:[%s153 + $0x818] sm:$0xff] %vm666, %v1965
        %2478 = vst.msk [vmem:[%s153 + $0x820] sm:$0xff] %vm666, %v1966
        %2479 = vst.msk [vmem:[%s153 + $0x828] sm:$0xff] %vm666, %v1967
        %2480 = vst.msk [vmem:[%s153 + $0x830] sm:$0xff] %vm666, %v1968
        %2481 = vst.msk [vmem:[%s153 + $0x838] sm:$0xff] %vm666, %v1969
        %2482 = vst.msk [vmem:[%s153 + $0x840] sm:$0xff] %vm666, %v1970
        %2483 = vst.msk [vmem:[%s153 + $0x848] sm:$0xff] %vm666, %v1971
        %2484 = vst.msk [vmem:[%s153 + $0x850] sm:$0xff] %vm666, %v1972
        %2485 = vst.msk [vmem:[%s153 + $0x858] sm:$0xff] %vm666, %v1973
        %2486 = vst.msk [vmem:[%s153 + $0x860] sm:$0xff] %vm666, %v1974
        %2487 = vst.msk [vmem:[%s153 + $0x868] sm:$0xff] %vm666, %v1975
        %2488 = vst.msk [vmem:[%s153 + $0x870] sm:$0xff] %vm666, %v1976
        %2489 = vst.msk [vmem:[%s153 + $0x878] sm:$0xff] %vm666, %v1977
        %2490 = vst.msk [vmem:[%s153 + $0x880] sm:$0xff] %vm666, %v1978
        %2491 = vst.msk [vmem:[%s153 + $0x888] sm:$0xff] %vm666, %v1979
        %2492 = vst.msk [vmem:[%s153 + $0x890] sm:$0xff] %vm666, %v1980
        %2493 = vst.msk [vmem:[%s153 + $0x898] sm:$0xff] %vm666, %v1981
        %2494 = vst.msk [vmem:[%s153 + $0x8a0] sm:$0xff] %vm666, %v1982
        %2495 = vst.msk [vmem:[%s153 + $0x8a8] sm:$0xff] %vm666, %v1983
        %2496 = vst.msk [vmem:[%s153 + $0x8b0] sm:$0xff] %vm666, %v1984
        %2497 = vst.msk [vmem:[%s153 + $0x8b8] sm:$0xff] %vm666, %v1985
        %2498 = vst.msk [vmem:[%s153 + $0x8c0] sm:$0xff] %vm666, %v1986
        %2499 = vst.msk [vmem:[%s153 + $0x8c8] sm:$0xff] %vm666, %v1987
        %2500 = vst.msk [vmem:[%s153 + $0x8d0] sm:$0xff] %vm666, %v1988
        %2501 = vst.msk [vmem:[%s153 + $0x8d8] sm:$0xff] %vm666, %v1989
        %2502 = vst.msk [vmem:[%s153 + $0x8e0] sm:$0xff] %vm666, %v1990
        %2503 = vst.msk [vmem:[%s153 + $0x8e8] sm:$0xff] %vm666, %v1991
        %2504 = vst.msk [vmem:[%s153 + $0x8f0] sm:$0xff] %vm666, %v1992
        %2505 = vst.msk [vmem:[%s153 + $0x8f8] sm:$0xff] %vm666, %v1993
        %2506 = vst.msk [vmem:[%s153 + $0x900] sm:$0xff] %vm666, %v1994
        %2507 = vst.msk [vmem:[%s153 + $0x908] sm:$0xff] %vm666, %v1995
        %2508 = vst.msk [vmem:[%s153 + $0x910] sm:$0xff] %vm666, %v1996
        %2509 = vst.msk [vmem:[%s153 + $0x918] sm:$0xff] %vm666, %v1997
        %2510 = vst.msk [vmem:[%s153 + $0x920] sm:$0xff] %vm666, %v1998
        %2511 = vst.msk [vmem:[%s153 + $0x928] sm:$0xff] %vm666, %v1999
        %2512 = vst.msk [vmem:[%s153 + $0x930] sm:$0xff] %vm666, %v2000
        %2513 = vst.msk [vmem:[%s153 + $0x938] sm:$0xff] %vm666, %v2001
        %2514 = vst.msk [vmem:[%s153 + $0x940] sm:$0xff] %vm666, %v2002
        %2515 = vst.msk [vmem:[%s153 + $0x948] sm:$0xff] %vm666, %v2003
        %2516 = vst.msk [vmem:[%s153 + $0x950] sm:$0xff] %vm666, %v2004
        %2517 = vst.msk [vmem:[%s153 + $0x958] sm:$0xff] %vm666, %v2005
        %2518 = vst.msk [vmem:[%s153 + $0x960] sm:$0xff] %vm666, %v2006
        %2519 = vst.msk [vmem:[%s153 + $0x968] sm:$0xff] %vm666, %v2007
        %2520 = vst.msk [vmem:[%s153 + $0x970] sm:$0xff] %vm666, %v2008
        %2521 = vst.msk [vmem:[%s153 + $0x978] sm:$0xff] %vm666, %v2009
        %2522 = vst.msk [vmem:[%s153 + $0x980] sm:$0xff] %vm666, %v2010
        %2523 = vst.msk [vmem:[%s153 + $0x988] sm:$0xff] %vm666, %v2011
        %2524 = vst.msk [vmem:[%s153 + $0x990] sm:$0xff] %vm666, %v2012
        %2525 = vst.msk [vmem:[%s153 + $0x998] sm:$0xff] %vm666, %v2013
        %2526 = vst.msk [vmem:[%s153 + $0x9a0] sm:$0xff] %vm666, %v2014
        %2527 = vst.msk [vmem:[%s153 + $0x9a8] sm:$0xff] %vm666, %v2015
        %2528 = vst.msk [vmem:[%s153 + $0x9b0] sm:$0xff] %vm666, %v2016
        %2529 = vst.msk [vmem:[%s153 + $0x9b8] sm:$0xff] %vm666, %v2017
        %2530 = vst.msk [vmem:[%s153 + $0x9c0] sm:$0xff] %vm666, %v2018
        %2531 = vst.msk [vmem:[%s153 + $0x9c8] sm:$0xff] %vm666, %v2019
        %2532 = vst.msk [vmem:[%s153 + $0x9d0] sm:$0xff] %vm666, %v2020
        %2533 = vst.msk [vmem:[%s153 + $0x9d8] sm:$0xff] %vm666, %v2021
        %2534 = vst.msk [vmem:[%s153 + $0x9e0] sm:$0xff] %vm666, %v2022
        %2535 = vst.msk [vmem:[%s153 + $0x9e8] sm:$0xff] %vm666, %v2023
        %2536 = vst.msk [vmem:[%s153 + $0x9f0] sm:$0xff] %vm666, %v2024
        %2537 = vst.msk [vmem:[%s153 + $0x9f8] sm:$0xff] %vm666, %v2025
        %2538 = vst.msk [vmem:[%s153 + $0xa00] sm:$0xff] %vm666, %v2026
        %2539 = vst.msk [vmem:[%s153 + $0xa08] sm:$0xff] %vm666, %v2027
        %2540 = vst.msk [vmem:[%s153 + $0xa10] sm:$0xff] %vm666, %v2028
        %2541 = vst.msk [vmem:[%s153 + $0xa18] sm:$0xff] %vm666, %v2029
        %2542 = vst.msk [vmem:[%s153 + $0xa20] sm:$0xff] %vm666, %v2030
        %2543 = vst.msk [vmem:[%s153 + $0xa28] sm:$0xff] %vm666, %v2031
        %2544 = vst.msk [vmem:[%s153 + $0xa30] sm:$0xff] %vm666, %v2032
        %2545 = vst.msk [vmem:[%s153 + $0xa38] sm:$0xff] %vm666, %v2033
        %2546 = vst.msk [vmem:[%s153 + $0xa40] sm:$0xff] %vm666, %v2034
        %2547 = vst.msk [vmem:[%s153 + $0xa48] sm:$0xff] %vm666, %v2035
        %2548 = vst.msk [vmem:[%s153 + $0xa50] sm:$0xff] %vm666, %v2036
        %2549 = vst.msk [vmem:[%s153 + $0xa58] sm:$0xff] %vm666, %v2037
        %2550 = vst.msk [vmem:[%s153 + $0xa60] sm:$0xff] %vm666, %v2038
        %2551 = vst.msk [vmem:[%s153 + $0xa68] sm:$0xff] %vm666, %v2039
        %2552 = vst.msk [vmem:[%s153 + $0xa70] sm:$0xff] %vm666, %v2040
        %2553 = vst.msk [vmem:[%s153 + $0xa78] sm:$0xff] %vm666, %v2041
        %2554 = vst.msk [vmem:[%s153 + $0xa80] sm:$0xff] %vm666, %v2042
        %2555 = vst.msk [vmem:[%s153 + $0xa88] sm:$0xff] %vm666, %v2043
        %2556 = vst.msk [vmem:[%s153 + $0xa90] sm:$0xff] %vm666, %v2044
        %2557 = vst.msk [vmem:[%s153 + $0xa98] sm:$0xff] %vm666, %v2045
        %2558 = vst.msk [vmem:[%s153 + $0xaa0] sm:$0xff] %vm666, %v2046
        %2559 = vst.msk [vmem:[%s153 + $0xaa8] sm:$0xff] %vm666, %v2047
        %2560 = vst.msk [vmem:[%s153 + $0xab0] sm:$0xff] %vm666, %v2048
        %2561 = vst.msk [vmem:[%s153 + $0xab8] sm:$0xff] %vm666, %v2049
        %2562 = vst.msk [vmem:[%s153 + $0xac0] sm:$0xff] %vm666, %v2050
        %2563 = vst.msk [vmem:[%s153 + $0xac8] sm:$0xff] %vm666, %v2051
        %2564 = vst.msk [vmem:[%s153 + $0xad0] sm:$0xff] %vm666, %v2052
        %2565 = vst.msk [vmem:[%s153 + $0xad8] sm:$0xff] %vm666, %v2053
        %2566 = vst.msk [vmem:[%s153 + $0xae0] sm:$0xff] %vm666, %v2054
        %2567 = vst.msk [vmem:[%s153 + $0xae8] sm:$0xff] %vm666, %v2055
        %2568 = vst.msk [vmem:[%s153 + $0xaf0] sm:$0xff] %vm666, %v2056
        %2569 = vst.msk [vmem:[%s153 + $0xaf8] sm:$0xff] %vm666, %v2057
        %2570 = vst.msk [vmem:[%s153 + $0xb00] sm:$0xff] %vm666, %v2058
        %2571 = vst.msk [vmem:[%s153 + $0xb08] sm:$0xff] %vm666, %v2059
        %2572 = vst.msk [vmem:[%s153 + $0xb10] sm:$0xff] %vm666, %v2060
        %2573 = vst.msk [vmem:[%s153 + $0xb18] sm:$0xff] %vm666, %v2061
        %2574 = vst.msk [vmem:[%s153 + $0xb20] sm:$0xff] %vm666, %v2062
        %2575 = vst.msk [vmem:[%s153 + $0xb28] sm:$0xff] %vm666, %v2063
        %2576 = vst.msk [vmem:[%s153 + $0xb30] sm:$0xff] %vm666, %v2064
        %2577 = vst.msk [vmem:[%s153 + $0xb38] sm:$0xff] %vm666, %v2065
        %2578 = vst.msk [vmem:[%s153 + $0xb40] sm:$0xff] %vm666, %v2066
        %2579 = vst.msk [vmem:[%s153 + $0xb48] sm:$0xff] %vm666, %v2067
        %2580 = vst.msk [vmem:[%s153 + $0xb50] sm:$0xff] %vm666, %v2068
        %2581 = vst.msk [vmem:[%s153 + $0xb58] sm:$0xff] %vm666, %v2069
        %2582 = vst.msk [vmem:[%s153 + $0xb60] sm:$0xff] %vm666, %v2070
        %2583 = vst.msk [vmem:[%s153 + $0xb68] sm:$0xff] %vm666, %v2071
        %2584 = vst.msk [vmem:[%s153 + $0xb70] sm:$0xff] %vm666, %v2072
        %2585 = vst.msk [vmem:[%s153 + $0xb78] sm:$0xff] %vm666, %v2073
        %2586 = vst.msk [vmem:[%s153 + $0xb80] sm:$0xff] %vm666, %v2074
        %2587 = vst.msk [vmem:[%s153 + $0xb88] sm:$0xff] %vm666, %v2075
        %2588 = vst.msk [vmem:[%s153 + $0xb90] sm:$0xff] %vm666, %v2076
        %2589 = vst.msk [vmem:[%s153 + $0xb98] sm:$0xff] %vm666, %v2077
        %2590 = vst.msk [vmem:[%s153 + $0xba0] sm:$0xff] %vm666, %v2078
        %2591 = vst.msk [vmem:[%s153 + $0xba8] sm:$0xff] %vm666, %v2079
        %2592 = vst.msk [vmem:[%s153 + $0xbb0] sm:$0xff] %vm666, %v2080
        %2593 = vst.msk [vmem:[%s153 + $0xbb8] sm:$0xff] %vm666, %v2081
        %2594 = vst.msk [vmem:[%s153 + $0xbc0] sm:$0xff] %vm666, %v2082
        %2595 = vst.msk [vmem:[%s153 + $0xbc8] sm:$0xff] %vm666, %v2083
        %2596 = vst.msk [vmem:[%s153 + $0xbd0] sm:$0xff] %vm666, %v2084
        %2597 = vst.msk [vmem:[%s153 + $0xbd8] sm:$0xff] %vm666, %v2085
        %2598 = vst.msk [vmem:[%s153 + $0xbe0] sm:$0xff] %vm666, %v2086
        %2599 = vst.msk [vmem:[%s153 + $0xbe8] sm:$0xff] %vm666, %v2087
        %2600 = vst.msk [vmem:[%s153 + $0xbf0] sm:$0xff] %vm666, %v2088
        %2601 = vst.msk [vmem:[%s153 + $0xbf8] sm:$0xff] %vm666, %v2089
        %2602 = vst.msk [vmem:[%s153 + $0xc00] sm:$0xff] %vm666, %v2090
        %2603 = vst.msk [vmem:[%s153 + $0xc08] sm:$0xff] %vm666, %v2091
        %2604 = vst.msk [vmem:[%s153 + $0xc10] sm:$0xff] %vm666, %v2092
        %2605 = vst.msk [vmem:[%s153 + $0xc18] sm:$0xff] %vm666, %v2093
        %2606 = vst.msk [vmem:[%s153 + $0xc20] sm:$0xff] %vm666, %v2094
        %2607 = vst.msk [vmem:[%s153 + $0xc28] sm:$0xff] %vm666, %v2095
        %2608 = vst.msk [vmem:[%s153 + $0xc30] sm:$0xff] %vm666, %v2096
        %2609 = vst.msk [vmem:[%s153 + $0xc38] sm:$0xff] %vm666, %v2097
        %2610 = vst.msk [vmem:[%s153 + $0xc40] sm:$0xff] %vm666, %v2098
        %2611 = vst.msk [vmem:[%s153 + $0xc48] sm:$0xff] %vm666, %v2099
        %2612 = vst.msk [vmem:[%s153 + $0xc50] sm:$0xff] %vm666, %v2100
        %2613 = vst.msk [vmem:[%s153 + $0xc58] sm:$0xff] %vm666, %v2101
        %2614 = vst.msk [vmem:[%s153 + $0xc60] sm:$0xff] %vm666, %v2102
        %2615 = vst.msk [vmem:[%s153 + $0xc68] sm:$0xff] %vm666, %v2103
        %2616 = vst.msk [vmem:[%s153 + $0xc70] sm:$0xff] %vm666, %v2104
        %2617 = vst.msk [vmem:[%s153 + $0xc78] sm:$0xff] %vm666, %v2105
        %2618 = vst.msk [vmem:[%s153 + $0xc80] sm:$0xff] %vm666, %v2106
        %2619 = vst.msk [vmem:[%s153 + $0xc88] sm:$0xff] %vm666, %v2107
        %2620 = vst.msk [vmem:[%s153 + $0xc90] sm:$0xff] %vm666, %v2108
        %2621 = vst.msk [vmem:[%s153 + $0xc98] sm:$0xff] %vm666, %v2109
        %2622 = vst.msk [vmem:[%s153 + $0xca0] sm:$0xff] %vm666, %v2110
        %2623 = vst.msk [vmem:[%s153 + $0xca8] sm:$0xff] %vm666, %v2111
        %2624 = vst.msk [vmem:[%s153 + $0xcb0] sm:$0xff] %vm666, %v2112
        %2625 = vst.msk [vmem:[%s153 + $0xcb8] sm:$0xff] %vm666, %v2113
        %2626 = vst.msk [vmem:[%s153 + $0xcc0] sm:$0xff] %vm666, %v2114
        %2627 = vst.msk [vmem:[%s153 + $0xcc8] sm:$0xff] %vm666, %v2115
        %2628 = vst.msk [vmem:[%s153 + $0xcd0] sm:$0xff] %vm666, %v2116
        %2629 = vst.msk [vmem:[%s153 + $0xcd8] sm:$0xff] %vm666, %v2117
        %2630 = vst.msk [vmem:[%s153 + $0xce0] sm:$0xff] %vm666, %v2118
        %2631 = vst.msk [vmem:[%s153 + $0xce8] sm:$0xff] %vm666, %v2119
        %2632 = vst.msk [vmem:[%s153 + $0xcf0] sm:$0xff] %vm666, %v2120
        %2633 = vst.msk [vmem:[%s153 + $0xcf8] sm:$0xff] %vm666, %v2121
        %2634 = vst.msk [vmem:[%s153 + $0xd00] sm:$0xff] %vm666, %v2122
        %2635 = vst.msk [vmem:[%s153 + $0xd08] sm:$0xff] %vm666, %v2123
        %2636 = vst.msk [vmem:[%s153 + $0xd10] sm:$0xff] %vm666, %v2124
        %2637 = vst.msk [vmem:[%s153 + $0xd18] sm:$0xff] %vm666, %v2125
        %2638 = vst.msk [vmem:[%s153 + $0xd20] sm:$0xff] %vm666, %v2126
        %2639 = vst.msk [vmem:[%s153 + $0xd28] sm:$0xff] %vm666, %v2127
        %2640 = vst.msk [vmem:[%s153 + $0xd30] sm:$0xff] %vm666, %v2128
        %2641 = vst.msk [vmem:[%s153 + $0xd38] sm:$0xff] %vm666, %v2129
        %2642 = vst.msk [vmem:[%s153 + $0xd40] sm:$0xff] %vm666, %v2130
        %2643 = vst.msk [vmem:[%s153 + $0xd48] sm:$0xff] %vm666, %v2131
        %2644 = vst.msk [vmem:[%s153 + $0xd50] sm:$0xff] %vm666, %v2132
        %2645 = vst.msk [vmem:[%s153 + $0xd58] sm:$0xff] %vm666, %v2133
        %2646 = vst.msk [vmem:[%s153 + $0xd60] sm:$0xff] %vm666, %v2134
        %2647 = vst.msk [vmem:[%s153 + $0xd68] sm:$0xff] %vm666, %v2135
        %2648 = vst.msk [vmem:[%s153 + $0xd70] sm:$0xff] %vm666, %v2136
        %2649 = vst.msk [vmem:[%s153 + $0xd78] sm:$0xff] %vm666, %v2137
        %2650 = vst.msk [vmem:[%s153 + $0xd80] sm:$0xff] %vm666, %v2138
        %2651 = vst.msk [vmem:[%s153 + $0xd88] sm:$0xff] %vm666, %v2139
        %2652 = vst.msk [vmem:[%s153 + $0xd90] sm:$0xff] %vm666, %v2140
        %2653 = vst.msk [vmem:[%s153 + $0xd98] sm:$0xff] %vm666, %v2141
        %2654 = vst.msk [vmem:[%s153 + $0xda0] sm:$0xff] %vm666, %v2142
        %2655 = vst.msk [vmem:[%s153 + $0xda8] sm:$0xff] %vm666, %v2143
        %2656 = vst.msk [vmem:[%s153 + $0xdb0] sm:$0xff] %vm666, %v2144
        %2657 = vst.msk [vmem:[%s153 + $0xdb8] sm:$0xff] %vm666, %v2145
        %2658 = vst.msk [vmem:[%s153 + $0xdc0] sm:$0xff] %vm666, %v2146
        %2659 = vst.msk [vmem:[%s153 + $0xdc8] sm:$0xff] %vm666, %v2147
        %2660 = vst.msk [vmem:[%s153 + $0xdd0] sm:$0xff] %vm666, %v2148
        %2661 = vst.msk [vmem:[%s153 + $0xdd8] sm:$0xff] %vm666, %v2149
        %2662 = vst.msk [vmem:[%s153 + $0xde0] sm:$0xff] %vm666, %v2150
        %2663 = vst.msk [vmem:[%s153 + $0xde8] sm:$0xff] %vm666, %v2151
        %2664 = vst.msk [vmem:[%s153 + $0xdf0] sm:$0xff] %vm666, %v2152
        %2665 = vst.msk [vmem:[%s153 + $0xdf8] sm:$0xff] %vm666, %v2153
        %2666 = vst.msk [vmem:[%s153 + $0xe00] sm:$0xff] %vm666, %v2154
        %2667 = vst.msk [vmem:[%s153 + $0xe08] sm:$0xff] %vm666, %v2155
        %2668 = vst.msk [vmem:[%s153 + $0xe10] sm:$0xff] %vm666, %v2156
        %2669 = vst.msk [vmem:[%s153 + $0xe18] sm:$0xff] %vm666, %v2157
        %2670 = vst.msk [vmem:[%s153 + $0xe20] sm:$0xff] %vm666, %v2158
        %2671 = vst.msk [vmem:[%s153 + $0xe28] sm:$0xff] %vm666, %v2159
        %2672 = vst.msk [vmem:[%s153 + $0xe30] sm:$0xff] %vm666, %v2160
        %2673 = vst.msk [vmem:[%s153 + $0xe38] sm:$0xff] %vm666, %v2161
        %2674 = vst.msk [vmem:[%s153 + $0xe40] sm:$0xff] %vm666, %v2162
        %2675 = vst.msk [vmem:[%s153 + $0xe48] sm:$0xff] %vm666, %v2163
        %2676 = vst.msk [vmem:[%s153 + $0xe50] sm:$0xff] %vm666, %v2164
        %2677 = vst.msk [vmem:[%s153 + $0xe58] sm:$0xff] %vm666, %v2165
        %2678 = vst.msk [vmem:[%s153 + $0xe60] sm:$0xff] %vm666, %v2166
        %2679 = vst.msk [vmem:[%s153 + $0xe68] sm:$0xff] %vm666, %v2167
        %2680 = vst.msk [vmem:[%s153 + $0xe70] sm:$0xff] %vm666, %v2168
        %2681 = vst.msk [vmem:[%s153 + $0xe78] sm:$0xff] %vm666, %v2169
        %2682 = vst.msk [vmem:[%s153 + $0xe80] sm:$0xff] %vm666, %v2170
        %2683 = vst.msk [vmem:[%s153 + $0xe88] sm:$0xff] %vm666, %v2171
        %2684 = vst.msk [vmem:[%s153 + $0xe90] sm:$0xff] %vm666, %v2172
        %2685 = vst.msk [vmem:[%s153 + $0xe98] sm:$0xff] %vm666, %v2173
        %2686 = vst.msk [vmem:[%s153 + $0xea0] sm:$0xff] %vm666, %v2174
        %2687 = vst.msk [vmem:[%s153 + $0xea8] sm:$0xff] %vm666, %v2175
        %2688 = vst.msk [vmem:[%s153 + $0xeb0] sm:$0xff] %vm666, %v2176
        %2689 = vst.msk [vmem:[%s153 + $0xeb8] sm:$0xff] %vm666, %v2177
        %2690 = vst.msk [vmem:[%s153 + $0xec0] sm:$0xff] %vm666, %v2178
        %2691 = vst.msk [vmem:[%s153 + $0xec8] sm:$0xff] %vm666, %v2179
        %2692 = vst.msk [vmem:[%s153 + $0xed0] sm:$0xff] %vm666, %v2180
        %2693 = vst.msk [vmem:[%s153 + $0xed8] sm:$0xff] %vm666, %v2181
        %2694 = vst.msk [vmem:[%s153 + $0xee0] sm:$0xff] %vm666, %v2182
        %2695 = vst.msk [vmem:[%s153 + $0xee8] sm:$0xff] %vm666, %v2183
        %2696 = vst.msk [vmem:[%s153 + $0xef0] sm:$0xff] %vm666, %v2184
        %2697 = vst.msk [vmem:[%s153 + $0xef8] sm:$0xff] %vm666, %v2185
        %2698 = vst.msk [vmem:[%s153 + $0xf00] sm:$0xff] %vm666, %v2186
        %2699 = vst.msk [vmem:[%s153 + $0xf08] sm:$0xff] %vm666, %v2187
        %2700 = vst.msk [vmem:[%s153 + $0xf10] sm:$0xff] %vm666, %v2188
        %2701 = vst.msk [vmem:[%s153 + $0xf18] sm:$0xff] %vm666, %v2189
        %2702 = vst.msk [vmem:[%s153 + $0xf20] sm:$0xff] %vm666, %v2190
        %2703 = vst.msk [vmem:[%s153 + $0xf28] sm:$0xff] %vm666, %v2191
        %2704 = vst.msk [vmem:[%s153 + $0xf30] sm:$0xff] %vm666, %v2192
        %2705 = vst.msk [vmem:[%s153 + $0xf38] sm:$0xff] %vm666, %v2193
        %2706 = vst.msk [vmem:[%s153 + $0xf40] sm:$0xff] %vm666, %v2194
        %2707 = vst.msk [vmem:[%s153 + $0xf48] sm:$0xff] %vm666, %v2195
        %2708 = vst.msk [vmem:[%s153 + $0xf50] sm:$0xff] %vm666, %v2196
        %2709 = vst.msk [vmem:[%s153 + $0xf58] sm:$0xff] %vm666, %v2197
        %2710 = vst.msk [vmem:[%s153 + $0xf60] sm:$0xff] %vm666, %v2198
        %2711 = vst.msk [vmem:[%s153 + $0xf68] sm:$0xff] %vm666, %v2199
        %2712 = vst.msk [vmem:[%s153 + $0xf70] sm:$0xff] %vm666, %v2200
        %2713 = vst.msk [vmem:[%s153 + $0xf78] sm:$0xff] %vm666, %v2201
        %2714 = vst.msk [vmem:[%s153 + $0xf80] sm:$0xff] %vm666, %v2202
        %2715 = vst.msk [vmem:[%s153 + $0xf88] sm:$0xff] %vm666, %v2203
        %2716 = vst.msk [vmem:[%s153 + $0xf90] sm:$0xff] %vm666, %v2204
        %2717 = vst.msk [vmem:[%s153 + $0xf98] sm:$0xff] %vm666, %v2205
        %2718 = vst.msk [vmem:[%s153 + $0xfa0] sm:$0xff] %vm666, %v2206
        %2719 = vst.msk [vmem:[%s153 + $0xfa8] sm:$0xff] %vm666, %v2207
        %2720 = vst.msk [vmem:[%s153 + $0xfb0] sm:$0xff] %vm666, %v2208
        %2721 = vst.msk [vmem:[%s153 + $0xfb8] sm:$0xff] %vm666, %v2209
        %2722 = vst.msk [vmem:[%s153 + $0xfc0] sm:$0xff] %vm666, %v2210
        %2723 = vst.msk [vmem:[%s153 + $0xfc8] sm:$0xff] %vm666, %v2211
        %2724 = vst.msk [vmem:[%s153 + $0xfd0] sm:$0xff] %vm666, %v2212
        %2725 = vst.msk [vmem:[%s153 + $0xfd8] sm:$0xff] %vm666, %v2213
        %2726 = vst.msk [vmem:[%s153 + $0xfe0] sm:$0xff] %vm666, %v2214
        %2727 = vst.msk [vmem:[%s153 + $0xfe8] sm:$0xff] %vm666, %v2215
        %2728 = vst.msk [vmem:[%s153 + $0xff0] sm:$0xff] %vm666, %v2216
        %2729 = vst.msk [vmem:[%s153 + $0xff8] sm:$0xff] %vm666, %v2217
        %vm2730 = vcmask 16384
        %2731 = vst.msk [vmem:[%s143] sm:$0x1] %vm2730, %v1705
        %p2732 = scmp.lt.s32.totalorder %s17, 1
        %s2733 = scalar_select %p2732, %s17, 1
        %s2734 = smul.addr %s2733, 512
        %s2735 = smul.addr %s2734, 8
        %s2736 = scalar_lea.vmem %s1, %s2735
        %s2737 = sand.u32 %s77, 1
        %s2738 = scalar_lea.sflag [#allocation3], %s2737
        %s2739 = sand.u32 %s77, 1
        %s2740 = scalar_lea.vmem [#allocation2], %s2739
        // Predicated region
        $region25: #{_sub_mean.1} parent=23 // pred_check
          %p2741 = pneg %p61
        $region26: #{_sub_mean.1} parent=23 // pred_check_branch
          %2743 = sbr.rel (%p2741) target = $region28
        $region27: #{_sub_mean.1} parent=23 // pred_region
          _
        $region28: #{_sub_mean.1} parent=23 // pred_fallthru
          _
        // Predicated region
        $region29: #{_sub_mean.1} parent=23 // pred_check
          %p2744 = pneg %p87
        $region30: #{_sub_mean.1} parent=23 // pred_check_branch
          %2746 = sbr.rel (%p2744) target = $region32
        $region31: #{_sub_mean.1} parent=23 // pred_region
          %s2748 = ssub.s32 16, 16
          %2749 = vsyncadd %s2738, %s2748
          %s2750 = smul.addr %s17, 16
          %s2751 = scalar_lea.hbm %s2, %s2750
          %s2753 = sshll.u32 %s2740, 4
          %s2754 = int_to_ptr.vmem [resolvable:$true] %s2753
          %2756 = dma.vmem_to_hbm [thread:$0]  %s2754, 16, %s2751, %s2738
        $region32: #{_sub_mean.1} parent=23 // pred_fallthru
          _
      $region24: #{_sub_mean.1} parent=5 // pred_fallthru
        _
      %p2757 = scmp.le.s32.totalorder 2, %s12
      // Predicated region
      $region33: #{_sub_mean.1} parent=5 // pred_check
        %p2758 = pneg %p2757
      $region34: #{_sub_mean.1} parent=5 // pred_check_branch
        %2760 = sbr.rel (%p2758) target = $region36
      $region35: #{_sub_mean.1} parent=5 // pred_region
        %s2761 = ssub.s32 %s12, 2
        // Predicated region
        $region37: #{_sub_mean.1} parent=35 // pred_check
          %p2762 = pneg %p67
        $region38: #{_sub_mean.1} parent=35 // pred_check_branch
          %2764 = sbr.rel (%p2762) target = $region40
        $region39: #{_sub_mean.1} parent=35 // pred_region
          %p2765 = scmp.lt.s32.totalorder %s18, 1
          %s2766 = scalar_select %p2765, %s18, 1
          %s2767 = smul.addr %s2766, 512
          %s2768 = smul.addr %s2767, 8
          %s2769 = scalar_lea.vmem %s1, %s2768
        $region40: #{_sub_mean.1} parent=35 // pred_fallthru
          _
        // Predicated region
        $region41: #{_sub_mean.1} parent=35 // pred_check
          %p2770 = pneg %p93
        $region42: #{_sub_mean.1} parent=35 // pred_check_branch
          %2772 = sbr.rel (%p2770) target = $region44
        $region43: #{_sub_mean.1} parent=35 // pred_region
          %s2773 = sand.u32 %s78, 1
          %s2774 = scalar_lea.sflag [#allocation3], %s2773
          %s2775 = sand.u32 %s78, 1
          %s2776 = scalar_lea.vmem [#allocation2], %s2775
          %2777 = dma.done %s2774, 16
        $region44: #{_sub_mean.1} parent=35 // pred_fallthru
          _
      $region36: #{_sub_mean.1} parent=5 // pred_fallthru
        _
    $region6: #{_sub_mean.1} parent=1 // loop_footer
      %s16 = sadd.s32 1, %s12
    $region7: #{_sub_mean.1} parent=1 // loop_footer_branch
      %11 = sbr.rel target = $region3
    $region8: #{_sub_mean.1} parent=1 // loop_exit
      _
    %2778 = vsyncpa [#allocation3], 1
    %s2779 = scalar_lea.sflag [#allocation3], 1
    %2780 = vsyncpa %s2779, 1

</llo_original>
